<compile_context>
chip_gen: v7x
topology: tpu7x:2x2x1
jax: 0.10.0
libtpu: 0.0.40
codegen_flags: <defaults>
</compile_context>

<pallas_src>
import functools
import math

import jax
import jax.numpy as jnp
import numpy as np
from jax.experimental import pallas as pl
from jax.experimental.pallas import tpu as pltpu

BN_EPS = 1e-05


def _swish(x):
    return x * jax.nn.sigmoid(x)


@functools.lru_cache(maxsize=None)
def _vmem_limit_bytes():
    """Generation-aware VMEM budget: ~3/4 of physical (96 MiB v5e/v6e, 48 MiB v7x)."""
    cap = 64 * 1024 * 1024
    try:
        cap = int(pltpu.get_tpu_info().vmem_capacity_bytes)
    except Exception:
        pass
    return int(min(cap * 3 // 4, 112 * 1024 * 1024))


def _pick_rows(H, W, bytes_per_row, budget, mult=1, max_rows=None, align8=True):
    """Largest divisor of H that is a multiple of `mult`, fits the VMEM budget and
    (optionally) keeps th*W <= max_rows.  align8 additionally requires (th*W) % 8 == 0
    so the in-kernel (th*W, C) reshape stays a layout no-op."""
    if align8:
        a8 = 8 // math.gcd(W, 8)
        mult = mult * a8 // math.gcd(mult, a8)
    cands = [d for d in range(1, H + 1) if H % d == 0 and d % mult == 0]
    best = None
    for d in cands:
        if d * bytes_per_row <= budget and (max_rows is None or d * W <= max_rows):
            best = d
    if best is not None:
        return best
    # fall back to the smallest legal tile (may exceed the soft budget).
    # TODO(synk): add W-axis tiling for shapes where no row tiling is legal.
    return cands[0] if cands else H


def _finalize_bn(sum_p, m2_p, tile_count, total_count, gamma, beta):
    """Combine per-tile (sum, centered sum-of-squares) into global training-mode BN
    scale/shift using Chan's parallel-variance combine."""
    mu_t = sum_p / tile_count                               # (G, 1, C) per-tile means
    mu = jnp.sum(sum_p, axis=(0, 1)) / total_count          # (C,)
    m2 = (jnp.sum(m2_p, axis=(0, 1))
          + tile_count * jnp.sum(jnp.square(mu_t - mu), axis=(0, 1)))
    var = jnp.maximum(m2 / total_count, 0.0)
    scale = gamma.reshape(-1) * jax.lax.rsqrt(var + BN_EPS)
    shift = beta.reshape(-1) - mu * scale
    return scale, shift


# ---------------- Kernel S: per-channel sum / centered sumsq of an NHWC tile ---------
def _stats_kernel(x_ref, s_ref, q_ref):
    _, th, W, C = x_ref.shape
    rows = th * W
    x = x_ref[...].astype(jnp.float32).reshape(rows, C)
    ssum = jnp.sum(x, axis=0)
    mu = ssum * (1.0 / rows)
    d = x - mu
    s_ref[...] = ssum.reshape(s_ref.shape)
    q_ref[...] = jnp.sum(d * d, axis=0).reshape(q_ref.shape)


# ---------------- Kernel A: (BN0 folded) 1x1 expand conv + partial BN1 stats ---------
def _pw1_kernel(x_ref, w_ref, b_ref, h_ref, s_ref, q_ref):
    _, th, W, Cin = x_ref.shape
    rows = th * W
    x = x_ref[...].reshape(rows, Cin)                      # bf16 operands on the MXU
    h = jnp.dot(x, w_ref[...], preferred_element_type=jnp.float32) + b_ref[...]
    h_ref[...] = h.reshape(h_ref.shape).astype(h_ref.dtype)   # bf16 to HBM
    # stats of the f32 pre-rounded output (tiny mismatch vs. the bf16 data that BN1
    # normalizes later; benign at BN tolerances).
    ssum = jnp.sum(h, axis=0)
    mu = ssum * (1.0 / rows)
    d = h - mu
    s_ref[...] = ssum.reshape(s_ref.shape)
    q_ref[...] = jnp.sum(d * d, axis=0).reshape(q_ref.shape)


# ---- Kernel B: BN1 + swish + depthwise kxk (halo strips, H-stride) + BN2 stats ------
def _dw_kernel(h_ref, top_ref, bot_ref, sc_ref, sh_ref, w_ref,
               o_ref, s_ref, q_ref, zext_ref, *, k, dil, s):
    _, th, W, C = h_ref.shape
    pad = dil * (k - 1) // 2
    ho_t = th // s
    f32 = jnp.float32
    i = pl.program_id(1)
    sc = sc_ref[...]
    sh = sh_ref[...]

    # BN1 + swish on the body rows and on the pad-row halo strips fetched from the
    # neighbouring row tiles.  Out-of-image halo rows are zero (the reference applies
    # the conv zero padding AFTER BatchNorm+Swish).
    body = _swish(h_ref[...].astype(f32) * sc + sh)
    top = _swish(top_ref[...].astype(f32) * sc + sh)
    bot = _swish(bot_ref[...].astype(f32) * sc + sh)
    top = jnp.where(i > 0, top, 0.0)
    bot = jnp.where(i < pl.num_programs(1) - 1, bot, 0.0)

    # assemble the halo'd tile once in VMEM scratch (each row written exactly once).
    zext_ref[:, 0:pad] = top
    zext_ref[:, pad:pad + th] = body
    zext_ref[:, pad + th:pad + th + pad] = bot

    w = w_ref[...]                                         # (k*k, C)
    col = jax.lax.broadcasted_iota(jnp.int32, (1, 1, W, 1), 2)
    # one column mask per horizontal tap offset: pltpu.roll is circular, the mask
    # zeroes the wrapped-in columns (replaces sublane-misaligned W slices).
    masks = [jnp.logical_and(col + (dw * dil - pad) >= 0,
                             col + (dw * dil - pad) < W)
             for dw in range(k)]

    acc = jnp.zeros((1, ho_t, W, C), f32)
    for dh in range(k):
        zs = zext_ref[:, dh * dil: dh * dil + s * ho_t]    # (1, s*ho_t, W, C)
        if s > 1:
            # keep every s-th row (output H stride); major-dim-only reshape + index.
            zs = zs.reshape(1, ho_t, s, W, C)[:, :, 0]
        for dw in range(k):
            off = dw * dil - pad
            if off == 0:
                tap = zs
            else:
                tap = jnp.where(masks[dw],
                                pltpu.roll(zs, (-off) % W, axis=2), 0.0)
            acc = acc + tap * w[dh * k + dw]

    o_ref[...] = acc.astype(o_ref.dtype)                   # bf16 to HBM

    # partial BN2 stats (sum + centered sumsq) of the strided output; the W stride is
    # applied by masking to the columns the wrapper keeps.
    if s > 1:
        keep = (col % s) == 0
        cnt = ho_t * (W // s)
        ssum = jnp.sum(jnp.where(keep, acc, 0.0), axis=(0, 1, 2))
        mu = ssum * (1.0 / cnt)
        d = jnp.where(keep, acc - mu, 0.0)
    else:
        cnt = ho_t * W
        ssum = jnp.sum(acc, axis=(0, 1, 2))
        mu = ssum * (1.0 / cnt)
        d = acc - mu
    s_ref[...] = ssum.reshape(s_ref.shape)
    q_ref[...] = jnp.sum(d * d, axis=(0, 1, 2)).reshape(q_ref.shape)


# ---------------- Kernel C: BN2 + swish + 1x1 project conv + partial BN3 stats -------
def _pw2_kernel(h_ref, sc_ref, sh_ref, w_ref, y_ref, s_ref, q_ref):
    _, th, W, C = h_ref.shape
    rows = th * W
    h = h_ref[...].astype(jnp.float32).reshape(rows, C)
    z = _swish(h * sc_ref[...] + sh_ref[...])
    y = jnp.dot(z.astype(jnp.bfloat16), w_ref[...],
                preferred_element_type=jnp.float32)
    y_ref[...] = y.reshape(y_ref.shape)
    ssum = jnp.sum(y, axis=0)
    mu = ssum * (1.0 / rows)
    d = y - mu
    s_ref[...] = ssum.reshape(s_ref.shape)
    q_ref[...] = jnp.sum(d * d, axis=0).reshape(q_ref.shape)


def init_params(key, Cin, Cout, ex, k):
    """Deterministic synthetic parameters (shapes as implied by __init__)."""
    hidden = int(round(Cin * ex))
    ks = jax.random.split(key, 12)
    f32 = jnp.float32
    return {
        "g0": 1.0 + 0.1 * jax.random.normal(ks[0], (1, Cin), f32),
        "b0": 0.1 * jax.random.normal(ks[1], (1, Cin), f32),
        "w1": 0.2 * jax.random.normal(ks[2], (Cin, hidden), f32),
        "g1": 1.0 + 0.1 * jax.random.normal(ks[3], (1, hidden), f32),
        "b1": 0.1 * jax.random.normal(ks[4], (1, hidden), f32),
        "wdw": 0.3 * jax.random.normal(ks[5], (k * k, hidden), f32),
        "g2": 1.0 + 0.1 * jax.random.normal(ks[6], (1, hidden), f32),
        "b2": 0.1 * jax.random.normal(ks[7], (1, hidden), f32),
        "w3": 0.2 * jax.random.normal(ks[8], (hidden, Cout), f32),
        "g3": 1.0 + 0.1 * jax.random.normal(ks[9], (1, Cout), f32),
        "b3": 0.1 * jax.random.normal(ks[10], (1, Cout), f32),
    }


def inverted_residual_forward(x_nchw, p, *, stride, dil, k, g, max_rows=None):
    assert stride in (1, 2, -1)
    upsample = stride == -1
    s = abs(stride)
    hidden = p["w1"].shape[1]
    Cout = p["w3"].shape[1]
    # TODO(synk): general grouped conv (0 < g < hidden) not implemented; only depthwise.
    assert g == 0 or g == hidden
    pad = dil * (k - 1) // 2
    assert pad >= 1, "TODO(synk): k==1 depthwise path not implemented"

    f32, bf16 = jnp.float32, jnp.bfloat16
    x = jnp.transpose(x_nchw, (0, 2, 3, 1)).astype(bf16)      # NCHW->NHWC edge glue
    if upsample:
        # nn.UpsamplingNearest2d(scale_factor=2): pure data replication (glue).
        x = jnp.repeat(jnp.repeat(x, 2, axis=1), 2, axis=2)
    N, H, W, Cin = x.shape
    assert H % s == 0 and W % s == 0
    Ho, Wo = H // s, W // s
    M = N * H * W
    M2 = N * Ho * Wo

    vlim = _vmem_limit_bytes()
    budget = vlim // 2                 # per-step footprint target (headroom for Mosaic)
    cp2 = pltpu.CompilerParams(dimension_semantics=("parallel", "parallel"),
                               vmem_limit_bytes=vlim)

    # ---- pass 0: per-channel stats of x (so BN0 can be folded into W1) --------------
    th = _pick_rows(H, W, W * (8 * Cin + 20 * hidden), budget, max_rows=max_rows)
    Gh, G = H // th, N * (H // th)
    x_spec = pl.BlockSpec((1, th, W, Cin), lambda n, i: (n, i, 0, 0))
    stat_cin = pl.BlockSpec((1, 1, Cin), lambda n, i: (n * Gh + i, 0, 0))
    sum0, m20 = pl.pallas_call(
        _stats_kernel,
        out_shape=(jax.ShapeDtypeStruct((G, 1, Cin), f32),
                   jax.ShapeDtypeStruct((G, 1, Cin), f32)),
        grid=(N, Gh),
        in_specs=[x_spec],
        out_specs=(stat_cin, stat_cin),
        compiler_params=cp2,
        cost_estimate=pl.CostEstimate(flops=4 * M * Cin, transcendentals=0,
                                      bytes_accessed=2 * M * Cin),
    )(x)
    scale0, shift0 = _finalize_bn(sum0, m20, th * W, M, p["g0"], p["b0"])
    # fold BN0 into the expand conv:  BN0(x) @ W1 == x @ (scale0*W1) + shift0 @ W1
    w1f = (p["w1"] * scale0[:, None]).astype(bf16)
    b1f = (shift0 @ p["w1"]).reshape(1, hidden).astype(f32)

    # ---- pass 1: 1x1 expand conv (MXU, bf16 in/out, f32 acc) + partial BN1 stats ----
    stat_hid = pl.BlockSpec((1, 1, hidden), lambda n, i: (n * Gh + i, 0, 0))
    h1, sum1, m21 = pl.pallas_call(
        _pw1_kernel,
        out_shape=(jax.ShapeDtypeStruct((N, H, W, hidden), bf16),
                   jax.ShapeDtypeStruct((G, 1, hidden), f32),
                   jax.ShapeDtypeStruct((G, 1, hidden), f32)),
        grid=(N, Gh),
        in_specs=[x_spec,
                  pl.BlockSpec((Cin, hidden), lambda n, i: (0, 0)),
                  pl.BlockSpec((1, hidden), lambda n, i: (0, 0))],
        out_specs=(pl.BlockSpec((1, th, W, hidden), lambda n, i: (n, i, 0, 0)),
                   stat_hid, stat_hid),
        compiler_params=cp2,
        cost_estimate=pl.CostEstimate(
            flops=2 * M * Cin * hidden + 4 * M * hidden, transcendentals=0,
            bytes_accessed=2 * M * Cin + 2 * M * hidden),
    )(x, w1f, b1f)
    scale1, shift1 = _finalize_bn(sum1, m21, th * W, M, p["g1"], p["b1"])

    # ---- pass 2: BN1 + swish + depthwise kxk (row-tiled, halo strips) + BN2 stats ---
    thd = _pick_rows(H, W, 30 * W * hidden, budget,
                     mult=pad * s // math.gcd(pad, s), max_rows=max_rows, align8=False)
    Gd = H // thd
    ho_t = thd // s
    tpb = thd // pad                      # pad-row blocks per tile (halo index maps)
    Hb = (H + pad - 1) // pad             # pad-row blocks along H
    Gdw = N * Gd
    body_spec = pl.BlockSpec((1, thd, W, hidden), lambda n, i: (n, i, 0, 0))
    top_spec = pl.BlockSpec((1, pad, W, hidden),
                            lambda n, i: (n, jnp.maximum(i * tpb - 1, 0), 0, 0))
    bot_spec = pl.BlockSpec((1, pad, W, hidden),
                            lambda n, i: (n, jnp.minimum((i + 1) * tpb, Hb - 1), 0, 0))
    stat_dw = pl.BlockSpec((1, 1, hidden), lambda n, i: (n * Gd + i, 0, 0))
    h2w, sum2, m22 = pl.pallas_call(
        functools.partial(_dw_kernel, k=k, dil=dil, s=s),
        out_shape=(jax.ShapeDtypeStruct((N, Ho, W, hidden), bf16),
                   jax.ShapeDtypeStruct((Gdw, 1, hidden), f32),
                   jax.ShapeDtypeStruct((Gdw, 1, hidden), f32)),
        grid=(N, Gd),
        in_specs=[body_spec, top_spec, bot_spec,
                  pl.BlockSpec((1, hidden), lambda n, i: (0, 0)),
                  pl.BlockSpec((1, hidden), lambda n, i: (0, 0)),
                  pl.BlockSpec((k * k, hidden), lambda n, i: (0, 0))],
        out_specs=(pl.BlockSpec((1, ho_t, W, hidden), lambda n, i: (n, i, 0, 0)),
                   stat_dw, stat_dw),
        scratch_shapes=[pltpu.VMEM((1, thd + 2 * pad, W, hidden), f32)],
        compiler_params=cp2,
        cost_estimate=pl.CostEstimate(
            flops=(2 * k * k + 10) * (M // s) * hidden,
            transcendentals=M * hidden,
            bytes_accessed=2 * M * hidden + 2 * (M // s) * hidden),
    )(h1, h1, h1, scale1.reshape(1, hidden), shift1.reshape(1, hidden), p["wdw"])
    # TODO(synk): fold the W-stride into the kernel too (needs sublane-strided store);
    # today only the H-stride is done in-kernel and XLA drops the unused columns.
    h2 = h2w if s == 1 else h2w[:, :, ::s, :]
    scale2, shift2 = _finalize_bn(sum2, m22, ho_t * Wo, M2, p["g2"], p["b2"])

    # ---- pass 3: BN2 + swish + 1x1 project conv (MXU, bf16) + partial BN3 stats -----
    th2 = _pick_rows(Ho, Wo, Wo * (20 * hidden + 24 * Cout), budget, max_rows=max_rows)
    Gh2, G2 = Ho // th2, N * (Ho // th2)
    stat_cout = pl.BlockSpec((1, 1, Cout), lambda n, i: (n * Gh2 + i, 0, 0))
    y, sum3, m23 = pl.pallas_call(
        _pw2_kernel,
        out_shape=(jax.ShapeDtypeStruct((N, Ho, Wo, Cout), f32),
                   jax.ShapeDtypeStruct((G2, 1, Cout), f32),
                   jax.ShapeDtypeStruct((G2, 1, Cout), f32)),
        grid=(N, Gh2),
        in_specs=[pl.BlockSpec((1, th2, Wo, hidden), lambda n, i: (n, i, 0, 0)),
                  pl.BlockSpec((1, hidden), lambda n, i: (0, 0)),
                  pl.BlockSpec((1, hidden), lambda n, i: (0, 0)),
                  pl.BlockSpec((hidden, Cout), lambda n, i: (0, 0))],
        out_specs=(pl.BlockSpec((1, th2, Wo, Cout), lambda n, i: (n, i, 0, 0)),
                   stat_cout, stat_cout),
        compiler_params=cp2,
        cost_estimate=pl.CostEstimate(
            flops=2 * M2 * hidden * Cout + 6 * M2 * hidden,
            transcendentals=M2 * hidden,
            bytes_accessed=2 * M2 * hidden + 4 * M2 * Cout),
    )(h2, scale2.reshape(1, hidden), shift2.reshape(1, hidden), p["w3"].astype(bf16))
    scale3, shift3 = _finalize_bn(sum3, m23, th2 * Wo, M2, p["g3"], p["b3"])

    # final BN3 affine: tiny elementwise op, fused by XLA with the NHWC->NCHW transpose.
    y = y * scale3.reshape(1, 1, 1, Cout) + shift3.reshape(1, 1, 1, Cout)
    return jnp.transpose(y, (0, 3, 1, 2))                      # NHWC -> NCHW


# -------------------------- pure-JAX reference (f32) ---------------------------------
def _bn_ref(x, gamma, beta, axes):
    mu = jnp.mean(x, axis=axes, keepdims=True)
    var = jnp.mean(jnp.square(x - mu), axis=axes, keepdims=True)
    return (x - mu) * jax.lax.rsqrt(var + BN_EPS) * gamma + beta


def reference_forward(x_nchw, p, *, stride, dil, k, g):
    upsample = stride == -1
    s = abs(stride)
    x = jnp.transpose(x_nchw, (0, 2, 3, 1)).astype(jnp.float32)
    if upsample:
        x = jnp.repeat(jnp.repeat(x, 2, axis=1), 2, axis=2)
    N, H, W, Cin = x.shape
    hidden = p["w1"].shape[1]
    h = _bn_ref(x.reshape(-1, Cin), p["g0"], p["b0"], (0,))
    h = jnp.dot(h, p["w1"])
    h = _swish(_bn_ref(h, p["g1"], p["b1"], (0,))).reshape(N, H, W, hidden)
    pad = dil * (k - 1) // 2
    wdw = p["wdw"].reshape(k, k, 1, hidden)
    h2 = jax.lax.conv_general_dilated(
        h, wdw, window_strides=(s, s), padding=[(pad, pad), (pad, pad)],
        rhs_dilation=(dil, dil), dimension_numbers=("NHWC", "HWIO", "NHWC"),
        feature_group_count=hidden)
    h2 = _swish(_bn_ref(h2, p["g2"], p["b2"], (0, 1, 2)))
    _, Ho, Wo, _ = h2.shape
    y = jnp.dot(h2.reshape(-1, hidden), p["w3"])
    y = _bn_ref(y, p["g3"], p["b3"], (0,)).reshape(N, Ho, Wo, -1)
    return jnp.transpose(y, (0, 3, 1, 2))


if __name__ == "__main__":
    # InvertedResidual(Cin=8, Cout=8, stride in {1,2,-1}, ex=4, dil=1, k=3, g=0)
    N, Cin, H, W = 2, 8, 16, 16
    Cout, ex, dil, k, g = 8, 4.0, 1, 3, 0

    key = jax.random.PRNGKey(0)
    kx, kp = jax.random.split(key)
    x = jax.random.normal(kx, (N, Cin, H, W), jnp.float32)
    params = init_params(kp, Cin, Cout, ex, k)

    for stride in (1, 2, -1):
        fwd = jax.jit(functools.partial(
            inverted_residual_forward, stride=stride, dil=dil, k=k, g=g,
            max_rows=64))   # small row cap so the multi-tile / halo path is exercised
        out = jax.block_until_ready(fwd(x, params))
        ref = reference_forward(x, params, stride=stride, dil=dil, k=k, g=g)
        assert out.shape == ref.shape
        np.testing.assert_allclose(np.asarray(out), np.asarray(ref),
                                   rtol=5e-2, atol=5e-2)
    print("KERNEL_OK")
</pallas_src>

<mosaic_0001>
module attributes {stable_mosaic.version = 11 : i64} {
  func.func @_stats_kernel(%arg0: i32, %arg1: i32, %arg2: memref<1x4x16x8xbf16, #tpu.memory_space<vmem>>, %arg3: memref<1x1x8xf32, #tpu.memory_space<vmem>>, %arg4: memref<1x1x8xf32, #tpu.memory_space<vmem>>) attributes {dimension_semantics = [#tpu.dimension_semantics<parallel>, #tpu.dimension_semantics<parallel>], iteration_bounds = array<i64: 2, 4>, scalar_prefetch = 0 : i64, scratch_operands = 0 : i64, tpu.core_type = #tpu.core_type<tc>, window_params = [{transform_indices = @transform_0, window_bounds = array<i64: 1, 4, 16, 8>}, {transform_indices = @transform_1, window_bounds = array<i64: 1, 1, 8>}, {transform_indices = @transform_2, window_bounds = array<i64: 1, 1, 8>}]} {
    %c0 = arith.constant 0 : index
    %c0_0 = arith.constant 0 : index
    %c0_1 = arith.constant 0 : index
    %c0_2 = arith.constant 0 : index
    %0 = vector.load %arg2[%c0, %c0_0, %c0_1, %c0_2] : memref<1x4x16x8xbf16, #tpu.memory_space<vmem>>, vector<1x4x16x8xbf16>
    %1 = arith.extf %0 : vector<1x4x16x8xbf16> to vector<1x4x16x8xf32>
    %2 = vector.shape_cast %1 : vector<1x4x16x8xf32> to vector<64x8xf32>
    %cst = arith.constant dense<0.000000e+00> : vector<8xf32>
    %3 = vector.multi_reduction <add>, %2, %cst [0] : vector<64x8xf32> to vector<8xf32>
    %cst_3 = arith.constant 1.562500e-02 : f32
    %4 = vector.broadcast %cst_3 : f32 to vector<8xf32>
    %5 = arith.mulf %3, %4 : vector<8xf32>
    %6 = vector.shape_cast %5 : vector<8xf32> to vector<1x8xf32>
    %7 = vector.broadcast %6 : vector<1x8xf32> to vector<64x8xf32>
    %8 = arith.subf %2, %7 : vector<64x8xf32>
    %9 = vector.shape_cast %3 : vector<8xf32> to vector<1x1x8xf32>
    %c0_4 = arith.constant 0 : index
    %c0_5 = arith.constant 0 : index
    %c0_6 = arith.constant 0 : index
    %10 = vector.load %arg3[%c0_4, %c0_5, %c0_6] : memref<1x1x8xf32, #tpu.memory_space<vmem>>, vector<1x1x8xf32>
    tpu.vector_store %arg3[%c0_4, %c0_5, %c0_6], %9 {strides = array<i32>} : memref<1x1x8xf32, #tpu.memory_space<vmem>>, vector<1x1x8xf32>,
    %11 = arith.mulf %8, %8 : vector<64x8xf32>
    %cst_7 = arith.constant dense<0.000000e+00> : vector<8xf32>
    %12 = vector.multi_reduction <add>, %11, %cst_7 [0] : vector<64x8xf32> to vector<8xf32>
    %13 = vector.shape_cast %12 : vector<8xf32> to vector<1x1x8xf32>
    %c0_8 = arith.constant 0 : index
    %c0_9 = arith.constant 0 : index
    %c0_10 = arith.constant 0 : index
    %14 = vector.load %arg4[%c0_8, %c0_9, %c0_10] : memref<1x1x8xf32, #tpu.memory_space<vmem>>, vector<1x1x8xf32>
    tpu.vector_store %arg4[%c0_8, %c0_9, %c0_10], %13 {strides = array<i32>} : memref<1x1x8xf32, #tpu.memory_space<vmem>>, vector<1x1x8xf32>,
    return
  }
  func.func @transform_0(%arg0: i32, %arg1: i32) -> (i32, i32, i32, i32) {
    %c0_i32 = arith.constant 0 : i32
    %c0_i32_0 = arith.constant 0 : i32
    %c0_i32_1 = arith.constant 0 : i32
    return %arg0, %arg1, %c0_i32, %c0_i32_0 : i32, i32, i32, i32
  }
  func.func @transform_1(%arg0: i32, %arg1: i32) -> (i32, i32, i32) {
    %c4_i32 = arith.constant 4 : i32
    %0 = arith.muli %arg0, %c4_i32 : i32
    %1 = arith.addi %0, %arg1 : i32
    %c0_i32 = arith.constant 0 : i32
    %c0_i32_0 = arith.constant 0 : i32
    %c0_i32_1 = arith.constant 0 : i32
    return %1, %c0_i32, %c0_i32_0 : i32, i32, i32
  }
  func.func @transform_2(%arg0: i32, %arg1: i32) -> (i32, i32, i32) {
    %c4_i32 = arith.constant 4 : i32
    %0 = arith.muli %arg0, %c4_i32 : i32
    %1 = arith.addi %0, %arg1 : i32
    %c0_i32 = arith.constant 0 : i32
    %c0_i32_0 = arith.constant 0 : i32
    %c0_i32_1 = arith.constant 0 : i32
    return %1, %c0_i32, %c0_i32_0 : i32, i32, i32
  }
}

module attributes {stable_mosaic.version = 11 : i64} {
  func.func @_pw1_kernel(%arg0: i32, %arg1: i32, %arg2: memref<1x4x16x8xbf16, #tpu.memory_space<vmem>>, %arg3: memref<8x32xbf16, #tpu.memory_space<vmem>>, %arg4: memref<1x32xf32, #tpu.memory_space<vmem>>, %arg5: memref<1x4x16x32xbf16, #tpu.memory_space<vmem>>, %arg6: memref<1x1x32xf32, #tpu.memory_space<vmem>>, %arg7: memref<1x1x32xf32, #tpu.memory_space<vmem>>) attributes {dimension_semantics = [#tpu.dimension_semantics<parallel>, #tpu.dimension_semantics<parallel>], iteration_bounds = array<i64: 2, 4>, scalar_prefetch = 0 : i64, scratch_operands = 0 : i64, tpu.core_type = #tpu.core_type<tc>, window_params = [{transform_indices = @transform_0, window_bounds = array<i64: 1, 4, 16, 8>}, {pipeline_mode = #tpu.pipeline_mode<synchronous>, transform_indices = @transform_1, window_bounds = array<i64: 8, 32>}, {pipeline_mode = #tpu.pipeline_mode<synchronous>, transform_indices = @transform_2, window_bounds = array<i64: 1, 32>}, {transform_indices = @transform_3, window_bounds = array<i64: 1, 4, 16, 32>}, {transform_indices = @transform_4, window_bounds = array<i64: 1, 1, 32>}, {transform_indices = @transform_5, window_bounds = array<i64: 1, 1, 32>}]} {
    %c0 = arith.constant 0 : index
    %c0_0 = arith.constant 0 : index
    %c0_1 = arith.constant 0 : index
    %c0_2 = arith.constant 0 : index
    %0 = vector.load %arg2[%c0, %c0_0, %c0_1, %c0_2] : memref<1x4x16x8xbf16, #tpu.memory_space<vmem>>, vector<1x4x16x8xbf16>
    %1 = vector.shape_cast %0 : vector<1x4x16x8xbf16> to vector<64x8xbf16>
    %c0_3 = arith.constant 0 : index
    %c0_4 = arith.constant 0 : index
    %2 = vector.load %arg3[%c0_3, %c0_4] : memref<8x32xbf16, #tpu.memory_space<vmem>>, vector<8x32xbf16>
    %cst = arith.constant dense<0.000000e+00> : vector<64x32xf32>
    %3 = tpu.matmul %1, %2, %cst {dimension_numbers = #tpu.dot_dimension_numbers<[1], [0], [0], [1], [0, 0, 1, 1], [], []>} : vector<64x8xbf16>, vector<8x32xbf16>, vector<64x32xf32> -> vector<64x32xf32>
    %c0_5 = arith.constant 0 : index
    %c0_6 = arith.constant 0 : index
    %4 = vector.load %arg4[%c0_5, %c0_6] : memref<1x32xf32, #tpu.memory_space<vmem>>, vector<1x32xf32>
    %5 = vector.broadcast %4 : vector<1x32xf32> to vector<64x32xf32>
    %6 = arith.addf %3, %5 : vector<64x32xf32>
    %7 = vector.shape_cast %6 : vector<64x32xf32> to vector<1x4x16x32xf32>
    %8 = arith.truncf %7 : vector<1x4x16x32xf32> to vector<1x4x16x32xbf16>
    %c0_7 = arith.constant 0 : index
    %c0_8 = arith.constant 0 : index
    %c0_9 = arith.constant 0 : index
    %c0_10 = arith.constant 0 : index
    %9 = vector.load %arg5[%c0_7, %c0_8, %c0_9, %c0_10] : memref<1x4x16x32xbf16, #tpu.memory_space<vmem>>, vector<1x4x16x32xbf16>
    tpu.vector_store %arg5[%c0_7, %c0_8, %c0_9, %c0_10], %8 {strides = array<i32>} : memref<1x4x16x32xbf16, #tpu.memory_space<vmem>>, vector<1x4x16x32xbf16>,
    %cst_11 = arith.constant dense<0.000000e+00> : vector<32xf32>
    %10 = vector.multi_reduction <add>, %6, %cst_11 [0] : vector<64x32xf32> to vector<32xf32>
    %cst_12 = arith.constant 1.562500e-02 : f32
    %11 = vector.broadcast %cst_12 : f32 to vector<32xf32>
    %12 = arith.mulf %10, %11 : vector<32xf32>
    %13 = vector.shape_cast %12 : vector<32xf32> to vector<1x32xf32>
    %14 = vector.broadcast %13 : vector<1x32xf32> to vector<64x32xf32>
    %15 = arith.subf %6, %14 : vector<64x32xf32>
    %16 = vector.shape_cast %10 : vector<32xf32> to vector<1x1x32xf32>
    %c0_13 = arith.constant 0 : index
    %c0_14 = arith.constant 0 : index
    %c0_15 = arith.constant 0 : index
    %17 = vector.load %arg6[%c0_13, %c0_14, %c0_15] : memref<1x1x32xf32, #tpu.memory_space<vmem>>, vector<1x1x32xf32>
    tpu.vector_store %arg6[%c0_13, %c0_14, %c0_15], %16 {strides = array<i32>} : memref<1x1x32xf32, #tpu.memory_space<vmem>>, vector<1x1x32xf32>,
    %18 = arith.mulf %15, %15 : vector<64x32xf32>
    %cst_16 = arith.constant dense<0.000000e+00> : vector<32xf32>
    %19 = vector.multi_reduction <add>, %18, %cst_16 [0] : vector<64x32xf32> to vector<32xf32>
    %20 = vector.shape_cast %19 : vector<32xf32> to vector<1x1x32xf32>
    %c0_17 = arith.constant 0 : index
    %c0_18 = arith.constant 0 : index
    %c0_19 = arith.constant 0 : index
    %21 = vector.load %arg7[%c0_17, %c0_18, %c0_19] : memref<1x1x32xf32, #tpu.memory_space<vmem>>, vector<1x1x32xf32>
    tpu.vector_store %arg7[%c0_17, %c0_18, %c0_19], %20 {strides = array<i32>} : memref<1x1x32xf32, #tpu.memory_space<vmem>>, vector<1x1x32xf32>,
    return
  }
  func.func @transform_0(%arg0: i32, %arg1: i32) -> (i32, i32, i32, i32) {
    %c0_i32 = arith.constant 0 : i32
    %c0_i32_0 = arith.constant 0 : i32
    %c0_i32_1 = arith.constant 0 : i32
    return %arg0, %arg1, %c0_i32, %c0_i32_0 : i32, i32, i32, i32
  }
  func.func @transform_1(%arg0: i32, %arg1: i32) -> (i32, i32) {
    %c0_i32 = arith.constant 0 : i32
    %c0_i32_0 = arith.constant 0 : i32
    %c0_i32_1 = arith.constant 0 : i32
    return %c0_i32, %c0_i32_0 : i32, i32
  }
  func.func @transform_2(%arg0: i32, %arg1: i32) -> (i32, i32) {
    %c0_i32 = arith.constant 0 : i32
    %c0_i32_0 = arith.constant 0 : i32
    %c0_i32_1 = arith.constant 0 : i32
    return %c0_i32, %c0_i32_0 : i32, i32
  }
  func.func @transform_3(%arg0: i32, %arg1: i32) -> (i32, i32, i32, i32) {
    %c0_i32 = arith.constant 0 : i32
    %c0_i32_0 = arith.constant 0 : i32
    %c0_i32_1 = arith.constant 0 : i32
    return %arg0, %arg1, %c0_i32, %c0_i32_0 : i32, i32, i32, i32
  }
  func.func @transform_4(%arg0: i32, %arg1: i32) -> (i32, i32, i32) {
    %c4_i32 = arith.constant 4 : i32
    %0 = arith.muli %arg0, %c4_i32 : i32
    %1 = arith.addi %0, %arg1 : i32
    %c0_i32 = arith.constant 0 : i32
    %c0_i32_0 = arith.constant 0 : i32
    %c0_i32_1 = arith.constant 0 : i32
    return %1, %c0_i32, %c0_i32_0 : i32, i32, i32
  }
  func.func @transform_5(%arg0: i32, %arg1: i32) -> (i32, i32, i32) {
    %c4_i32 = arith.constant 4 : i32
    %0 = arith.muli %arg0, %c4_i32 : i32
    %1 = arith.addi %0, %arg1 : i32
    %c0_i32 = arith.constant 0 : i32
    %c0_i32_0 = arith.constant 0 : i32
    %c0_i32_1 = arith.constant 0 : i32
    return %1, %c0_i32, %c0_i32_0 : i32, i32, i32
  }
}

module attributes {stable_mosaic.version = 11 : i64} {
  func.func @_dw_kernel(%arg0: i32, %arg1: i32, %arg2: memref<1x4x16x32xbf16, #tpu.memory_space<vmem>>, %arg3: memref<1x1x16x32xbf16, #tpu.memory_space<vmem>>, %arg4: memref<1x1x16x32xbf16, #tpu.memory_space<vmem>>, %arg5: memref<1x32xf32, #tpu.memory_space<vmem>>, %arg6: memref<1x32xf32, #tpu.memory_space<vmem>>, %arg7: memref<9x32xf32, #tpu.memory_space<vmem>>, %arg8: memref<1x4x16x32xbf16, #tpu.memory_space<vmem>>, %arg9: memref<1x1x32xf32, #tpu.memory_space<vmem>>, %arg10: memref<1x1x32xf32, #tpu.memory_space<vmem>>, %arg11: memref<1x6x16x32xf32, #tpu.memory_space<vmem>>) attributes {dimension_semantics = [#tpu.dimension_semantics<parallel>, #tpu.dimension_semantics<parallel>], iteration_bounds = array<i64: 2, 4>, scalar_prefetch = 0 : i64, scratch_operands = 1 : i64, tpu.core_type = #tpu.core_type<tc>, window_params = [{transform_indices = @transform_0, window_bounds = array<i64: 1, 4, 16, 32>}, {transform_indices = @transform_1, window_bounds = array<i64: 1, 1, 16, 32>}, {transform_indices = @transform_2, window_bounds = array<i64: 1, 1, 16, 32>}, {pipeline_mode = #tpu.pipeline_mode<synchronous>, transform_indices = @transform_3, window_bounds = array<i64: 1, 32>}, {pipeline_mode = #tpu.pipeline_mode<synchronous>, transform_indices = @transform_4, window_bounds = array<i64: 1, 32>}, {pipeline_mode = #tpu.pipeline_mode<synchronous>, transform_indices = @transform_5, window_bounds = array<i64: 9, 32>}, {transform_indices = @transform_6, window_bounds = array<i64: 1, 4, 16, 32>}, {transform_indices = @transform_7, window_bounds = array<i64: 1, 1, 32>}, {transform_indices = @transform_8, window_bounds = array<i64: 1, 1, 32>}]} {
    %c0 = arith.constant 0 : index
    %c0_0 = arith.constant 0 : index
    %0 = vector.load %arg5[%c0, %c0_0] : memref<1x32xf32, #tpu.memory_space<vmem>>, vector<1x32xf32>
    %c0_1 = arith.constant 0 : index
    %c0_2 = arith.constant 0 : index
    %1 = vector.load %arg6[%c0_1, %c0_2] : memref<1x32xf32, #tpu.memory_space<vmem>>, vector<1x32xf32>
    %c0_3 = arith.constant 0 : index
    %c0_4 = arith.constant 0 : index
    %c0_5 = arith.constant 0 : index
    %c0_6 = arith.constant 0 : index
    %2 = vector.load %arg2[%c0_3, %c0_4, %c0_5, %c0_6] : memref<1x4x16x32xbf16, #tpu.memory_space<vmem>>, vector<1x4x16x32xbf16>
    %3 = arith.extf %2 : vector<1x4x16x32xbf16> to vector<1x4x16x32xf32>
    %4 = vector.shape_cast %0 : vector<1x32xf32> to vector<1x1x1x32xf32>
    %5 = vector.broadcast %4 : vector<1x1x1x32xf32> to vector<1x4x16x32xf32>
    %6 = arith.mulf %3, %5 : vector<1x4x16x32xf32>
    %7 = vector.shape_cast %1 : vector<1x32xf32> to vector<1x1x1x32xf32>
    %8 = vector.broadcast %7 : vector<1x1x1x32xf32> to vector<1x4x16x32xf32>
    %9 = arith.addf %6, %8 : vector<1x4x16x32xf32>
    %10 = arith.negf %9 : vector<1x4x16x32xf32>
    %11 = math.exp %10 : vector<1x4x16x32xf32>
    %cst = arith.constant 1.000000e+00 : f32
    %12 = vector.broadcast %cst : f32 to vector<1x4x16x32xf32>
    %13 = arith.addf %12, %11 : vector<1x4x16x32xf32>
    %14 = arith.divf %12, %13 : vector<1x4x16x32xf32>
    %15 = arith.mulf %9, %14 : vector<1x4x16x32xf32>
    %c0_7 = arith.constant 0 : index
    %c0_8 = arith.constant 0 : index
    %c0_9 = arith.constant 0 : index
    %c0_10 = arith.constant 0 : index
    %16 = vector.load %arg3[%c0_7, %c0_8, %c0_9, %c0_10] : memref<1x1x16x32xbf16, #tpu.memory_space<vmem>>, vector<1x1x16x32xbf16>
    %17 = arith.extf %16 : vector<1x1x16x32xbf16> to vector<1x1x16x32xf32>
    %18 = vector.shape_cast %0 : vector<1x32xf32> to vector<1x1x1x32xf32>
    %19 = vector.broadcast %18 : vector<1x1x1x32xf32> to vector<1x1x16x32xf32>
    %20 = arith.mulf %17, %19 : vector<1x1x16x32xf32>
    %21 = vector.shape_cast %1 : vector<1x32xf32> to vector<1x1x1x32xf32>
    %22 = vector.broadcast %21 : vector<1x1x1x32xf32> to vector<1x1x16x32xf32>
    %23 = arith.addf %20, %22 : vector<1x1x16x32xf32>
    %24 = arith.negf %23 : vector<1x1x16x32xf32>
    %25 = math.exp %24 : vector<1x1x16x32xf32>
    %cst_11 = arith.constant 1.000000e+00 : f32
    %26 = vector.broadcast %cst_11 : f32 to vector<1x1x16x32xf32>
    %27 = arith.addf %26, %25 : vector<1x1x16x32xf32>
    %28 = arith.divf %26, %27 : vector<1x1x16x32xf32>
    %29 = arith.mulf %23, %28 : vector<1x1x16x32xf32>
    %c0_12 = arith.constant 0 : index
    %c0_13 = arith.constant 0 : index
    %c0_14 = arith.constant 0 : index
    %c0_15 = arith.constant 0 : index
    %30 = vector.load %arg4[%c0_12, %c0_13, %c0_14, %c0_15] : memref<1x1x16x32xbf16, #tpu.memory_space<vmem>>, vector<1x1x16x32xbf16>
    %31 = arith.extf %30 : vector<1x1x16x32xbf16> to vector<1x1x16x32xf32>
    %32 = vector.shape_cast %0 : vector<1x32xf32> to vector<1x1x1x32xf32>
    %33 = vector.broadcast %32 : vector<1x1x1x32xf32> to vector<1x1x16x32xf32>
    %34 = arith.mulf %31, %33 : vector<1x1x16x32xf32>
    %35 = vector.shape_cast %1 : vector<1x32xf32> to vector<1x1x1x32xf32>
    %36 = vector.broadcast %35 : vector<1x1x1x32xf32> to vector<1x1x16x32xf32>
    %37 = arith.addf %34, %36 : vector<1x1x16x32xf32>
    %38 = arith.negf %37 : vector<1x1x16x32xf32>
    %39 = math.exp %38 : vector<1x1x16x32xf32>
    %cst_16 = arith.constant 1.000000e+00 : f32
    %40 = vector.broadcast %cst_16 : f32 to vector<1x1x16x32xf32>
    %41 = arith.addf %40, %39 : vector<1x1x16x32xf32>
    %42 = arith.divf %40, %41 : vector<1x1x16x32xf32>
    %43 = arith.mulf %37, %42 : vector<1x1x16x32xf32>
    %c0_i32 = arith.constant 0 : i32
    %44 = arith.cmpi sgt, %arg1, %c0_i32 : i32
    %cst_17 = arith.constant 0.000000e+00 : f32
    %45 = vector.broadcast %cst_17 : f32 to vector<1x1x16x32xf32>
    %46 = arith.select %44, %29, %45 : vector<1x1x16x32xf32>
    %c3_i32 = arith.constant 3 : i32
    %47 = arith.cmpi slt, %arg1, %c3_i32 : i32
    %cst_18 = arith.constant 0.000000e+00 : f32
    %48 = vector.broadcast %cst_18 : f32 to vector<1x1x16x32xf32>
    %49 = arith.select %47, %43, %48 : vector<1x1x16x32xf32>
    %c0_19 = arith.constant 0 : index
    %c0_20 = arith.constant 0 : index
    %c0_21 = arith.constant 0 : index
    %c0_22 = arith.constant 0 : index
    %50 = vector.load %arg11[%c0_19, %c0_20, %c0_21, %c0_22] : memref<1x6x16x32xf32, #tpu.memory_space<vmem>>, vector<1x1x16x32xf32>
    tpu.vector_store %arg11[%c0_19, %c0_20, %c0_21, %c0_22], %46 {strides = array<i32>} : memref<1x6x16x32xf32, #tpu.memory_space<vmem>>, vector<1x1x16x32xf32>,
    %c0_23 = arith.constant 0 : index
    %c1 = arith.constant 1 : index
    %c0_24 = arith.constant 0 : index
    %c0_25 = arith.constant 0 : index
    %51 = vector.load %arg11[%c0_23, %c1, %c0_24, %c0_25] : memref<1x6x16x32xf32, #tpu.memory_space<vmem>>, vector<1x4x16x32xf32>
    tpu.vector_store %arg11[%c0_23, %c1, %c0_24, %c0_25], %15 {strides = array<i32>} : memref<1x6x16x32xf32, #tpu.memory_space<vmem>>, vector<1x4x16x32xf32>,
    %c0_26 = arith.constant 0 : index
    %c5 = arith.constant 5 : index
    %c0_27 = arith.constant 0 : index
    %c0_28 = arith.constant 0 : index
    %52 = vector.load %arg11[%c0_26, %c5, %c0_27, %c0_28] : memref<1x6x16x32xf32, #tpu.memory_space<vmem>>, vector<1x1x16x32xf32>
    tpu.vector_store %arg11[%c0_26, %c5, %c0_27, %c0_28], %49 {strides = array<i32>} : memref<1x6x16x32xf32, #tpu.memory_space<vmem>>, vector<1x1x16x32xf32>,
    %c0_29 = arith.constant 0 : index
    %c0_30 = arith.constant 0 : index
    %53 = vector.load %arg7[%c0_29, %c0_30] : memref<9x32xf32, #tpu.memory_space<vmem>>, vector<9x32xf32>
    %54 = tpu.iota {dimensions = array<i32: 2>} : vector<1x1x16x1xi32>
    %c-1_i32 = arith.constant -1 : i32
    %55 = vector.broadcast %c-1_i32 : i32 to vector<1x1x16x1xi32>
    %56 = arith.addi %54, %55 : vector<1x1x16x1xi32>
    %c0_i32_31 = arith.constant 0 : i32
    %57 = vector.broadcast %c0_i32_31 : i32 to vector<1x1x16x1xi32>
    %58 = arith.cmpi sge, %56, %57 : vector<1x1x16x1xi32>
    %c-1_i32_32 = arith.constant -1 : i32
    %59 = vector.broadcast %c-1_i32_32 : i32 to vector<1x1x16x1xi32>
    %60 = arith.addi %54, %59 : vector<1x1x16x1xi32>
    %c16_i32 = arith.constant 16 : i32
    %61 = vector.broadcast %c16_i32 : i32 to vector<1x1x16x1xi32>
    %62 = arith.cmpi slt, %60, %61 : vector<1x1x16x1xi32>
    %63 = arith.andi %58, %62 : vector<1x1x16x1xi1>
    %c1_i32 = arith.constant 1 : i32
    %64 = vector.broadcast %c1_i32 : i32 to vector<1x1x16x1xi32>
    %65 = arith.addi %54, %64 : vector<1x1x16x1xi32>
    %c0_i32_33 = arith.constant 0 : i32
    %66 = vector.broadcast %c0_i32_33 : i32 to vector<1x1x16x1xi32>
    %67 = arith.cmpi sge, %65, %66 : vector<1x1x16x1xi32>
    %c1_i32_34 = arith.constant 1 : i32
    %68 = vector.broadcast %c1_i32_34 : i32 to vector<1x1x16x1xi32>
    %69 = arith.addi %54, %68 : vector<1x1x16x1xi32>
    %c16_i32_35 = arith.constant 16 : i32
    %70 = vector.broadcast %c16_i32_35 : i32 to vector<1x1x16x1xi32>
    %71 = arith.cmpi slt, %69, %70 : vector<1x1x16x1xi32>
    %72 = arith.andi %67, %71 : vector<1x1x16x1xi1>
    %cst_36 = arith.constant 0.000000e+00 : f32
    %73 = vector.broadcast %cst_36 : f32 to vector<1x4x16x32xf32>
    %c0_37 = arith.constant 0 : index
    %c0_38 = arith.constant 0 : index
    %c0_39 = arith.constant 0 : index
    %c0_40 = arith.constant 0 : index
    %74 = vector.load %arg11[%c0_37, %c0_38, %c0_39, %c0_40] : memref<1x6x16x32xf32, #tpu.memory_space<vmem>>, vector<1x4x16x32xf32>
    %c1_i32_41 = arith.constant 1 : i32
    %75 = tpu.dynamic_rotate %74 by %c1_i32_41 dim 2 : vector<1x4x16x32xf32>, i32 -> vector<1x4x16x32xf32>
    %cst_42 = arith.constant 0.000000e+00 : f32
    %76 = vector.shape_cast %63 : vector<1x1x16x1xi1> to vector<1x1x16x1xi1>
    %77 = vector.broadcast %76 : vector<1x1x16x1xi1> to vector<1x4x16x32xi1>
    %78 = vector.broadcast %cst_42 : f32 to vector<1x4x16x32xf32>
    %79 = arith.select %77, %75, %78 : vector<1x4x16x32xi1>, vector<1x4x16x32xf32>
    %80 = vector.extract_strided_slice %53 {offsets = [0, 0], sizes = [1, 32], strides = [1, 1]} : vector<9x32xf32> to vector<1x32xf32>
    %81 = vector.shape_cast %80 : vector<1x32xf32> to vector<32xf32>
    %82 = vector.shape_cast %81 : vector<32xf32> to vector<1x1x1x32xf32>
    %83 = vector.broadcast %82 : vector<1x1x1x32xf32> to vector<1x4x16x32xf32>
    %84 = arith.mulf %79, %83 : vector<1x4x16x32xf32>
    %85 = arith.addf %73, %84 : vector<1x4x16x32xf32>
    %86 = vector.extract_strided_slice %53 {offsets = [1, 0], sizes = [1, 32], strides = [1, 1]} : vector<9x32xf32> to vector<1x32xf32>
    %87 = vector.shape_cast %86 : vector<1x32xf32> to vector<32xf32>
    %88 = vector.shape_cast %87 : vector<32xf32> to vector<1x1x1x32xf32>
    %89 = vector.broadcast %88 : vector<1x1x1x32xf32> to vector<1x4x16x32xf32>
    %90 = arith.mulf %74, %89 : vector<1x4x16x32xf32>
    %91 = arith.addf %85, %90 : vector<1x4x16x32xf32>
    %c15_i32 = arith.constant 15 : i32
    %92 = tpu.dynamic_rotate %74 by %c15_i32 dim 2 : vector<1x4x16x32xf32>, i32 -> vector<1x4x16x32xf32>
    %cst_43 = arith.constant 0.000000e+00 : f32
    %93 = vector.shape_cast %72 : vector<1x1x16x1xi1> to vector<1x1x16x1xi1>
    %94 = vector.broadcast %93 : vector<1x1x16x1xi1> to vector<1x4x16x32xi1>
    %95 = vector.broadcast %cst_43 : f32 to vector<1x4x16x32xf32>
    %96 = arith.select %94, %92, %95 : vector<1x4x16x32xi1>, vector<1x4x16x32xf32>
    %97 = vector.extract_strided_slice %53 {offsets = [2, 0], sizes = [1, 32], strides = [1, 1]} : vector<9x32xf32> to vector<1x32xf32>
    %98 = vector.shape_cast %97 : vector<1x32xf32> to vector<32xf32>
    %99 = vector.shape_cast %98 : vector<32xf32> to vector<1x1x1x32xf32>
    %100 = vector.broadcast %99 : vector<1x1x1x32xf32> to vector<1x4x16x32xf32>
    %101 = arith.mulf %96, %100 : vector<1x4x16x32xf32>
    %102 = arith.addf %91, %101 : vector<1x4x16x32xf32>
    %c0_44 = arith.constant 0 : index
    %c1_45 = arith.constant 1 : index
    %c0_46 = arith.constant 0 : index
    %c0_47 = arith.constant 0 : index
    %103 = vector.load %arg11[%c0_44, %c1_45, %c0_46, %c0_47] : memref<1x6x16x32xf32, #tpu.memory_space<vmem>>, vector<1x4x16x32xf32>
    %c1_i32_48 = arith.constant 1 : i32
    %104 = tpu.dynamic_rotate %103 by %c1_i32_48 dim 2 : vector<1x4x16x32xf32>, i32 -> vector<1x4x16x32xf32>
    %cst_49 = arith.constant 0.000000e+00 : f32
    %105 = vector.shape_cast %63 : vector<1x1x16x1xi1> to vector<1x1x16x1xi1>
    %106 = vector.broadcast %105 : vector<1x1x16x1xi1> to vector<1x4x16x32xi1>
    %107 = vector.broadcast %cst_49 : f32 to vector<1x4x16x32xf32>
    %108 = arith.select %106, %104, %107 : vector<1x4x16x32xi1>, vector<1x4x16x32xf32>
    %109 = vector.extract_strided_slice %53 {offsets = [3, 0], sizes = [1, 32], strides = [1, 1]} : vector<9x32xf32> to vector<1x32xf32>
    %110 = vector.shape_cast %109 : vector<1x32xf32> to vector<32xf32>
    %111 = vector.shape_cast %110 : vector<32xf32> to vector<1x1x1x32xf32>
    %112 = vector.broadcast %111 : vector<1x1x1x32xf32> to vector<1x4x16x32xf32>
    %113 = arith.mulf %108, %112 : vector<1x4x16x32xf32>
    %114 = arith.addf %102, %113 : vector<1x4x16x32xf32>
    %115 = vector.extract_strided_slice %53 {offsets = [4, 0], sizes = [1, 32], strides = [1, 1]} : vector<9x32xf32> to vector<1x32xf32>
    %116 = vector.shape_cast %115 : vector<1x32xf32> to vector<32xf32>
    %117 = vector.shape_cast %116 : vector<32xf32> to vector<1x1x1x32xf32>
    %118 = vector.broadcast %117 : vector<1x1x1x32xf32> to vector<1x4x16x32xf32>
    %119 = arith.mulf %103, %118 : vector<1x4x16x32xf32>
    %120 = arith.addf %114, %119 : vector<1x4x16x32xf32>
    %c15_i32_50 = arith.constant 15 : i32
    %121 = tpu.dynamic_rotate %103 by %c15_i32_50 dim 2 : vector<1x4x16x32xf32>, i32 -> vector<1x4x16x32xf32>
    %cst_51 = arith.constant 0.000000e+00 : f32
    %122 = vector.shape_cast %72 : vector<1x1x16x1xi1> to vector<1x1x16x1xi1>
    %123 = vector.broadcast %122 : vector<1x1x16x1xi1> to vector<1x4x16x32xi1>
    %124 = vector.broadcast %cst_51 : f32 to vector<1x4x16x32xf32>
    %125 = arith.select %123, %121, %124 : vector<1x4x16x32xi1>, vector<1x4x16x32xf32>
    %126 = vector.extract_strided_slice %53 {offsets = [5, 0], sizes = [1, 32], strides = [1, 1]} : vector<9x32xf32> to vector<1x32xf32>
    %127 = vector.shape_cast %126 : vector<1x32xf32> to vector<32xf32>
    %128 = vector.shape_cast %127 : vector<32xf32> to vector<1x1x1x32xf32>
    %129 = vector.broadcast %128 : vector<1x1x1x32xf32> to vector<1x4x16x32xf32>
    %130 = arith.mulf %125, %129 : vector<1x4x16x32xf32>
    %131 = arith.addf %120, %130 : vector<1x4x16x32xf32>
    %c0_52 = arith.constant 0 : index
    %c2 = arith.constant 2 : index
    %c0_53 = arith.constant 0 : index
    %c0_54 = arith.constant 0 : index
    %132 = vector.load %arg11[%c0_52, %c2, %c0_53, %c0_54] : memref<1x6x16x32xf32, #tpu.memory_space<vmem>>, vector<1x4x16x32xf32>
    %c1_i32_55 = arith.constant 1 : i32
    %133 = tpu.dynamic_rotate %132 by %c1_i32_55 dim 2 : vector<1x4x16x32xf32>, i32 -> vector<1x4x16x32xf32>
    %cst_56 = arith.constant 0.000000e+00 : f32
    %134 = vector.shape_cast %63 : vector<1x1x16x1xi1> to vector<1x1x16x1xi1>
    %135 = vector.broadcast %134 : vector<1x1x16x1xi1> to vector<1x4x16x32xi1>
    %136 = vector.broadcast %cst_56 : f32 to vector<1x4x16x32xf32>
    %137 = arith.select %135, %133, %136 : vector<1x4x16x32xi1>, vector<1x4x16x32xf32>
    %138 = vector.extract_strided_slice %53 {offsets = [6, 0], sizes = [1, 32], strides = [1, 1]} : vector<9x32xf32> to vector<1x32xf32>
    %139 = vector.shape_cast %138 : vector<1x32xf32> to vector<32xf32>
    %140 = vector.shape_cast %139 : vector<32xf32> to vector<1x1x1x32xf32>
    %141 = vector.broadcast %140 : vector<1x1x1x32xf32> to vector<1x4x16x32xf32>
    %142 = arith.mulf %137, %141 : vector<1x4x16x32xf32>
    %143 = arith.addf %131, %142 : vector<1x4x16x32xf32>
    %144 = vector.extract_strided_slice %53 {offsets = [7, 0], sizes = [1, 32], strides = [1, 1]} : vector<9x32xf32> to vector<1x32xf32>
    %145 = vector.shape_cast %144 : vector<1x32xf32> to vector<32xf32>
    %146 = vector.shape_cast %145 : vector<32xf32> to vector<1x1x1x32xf32>
    %147 = vector.broadcast %146 : vector<1x1x1x32xf32> to vector<1x4x16x32xf32>
    %148 = arith.mulf %132, %147 : vector<1x4x16x32xf32>
    %149 = arith.addf %143, %148 : vector<1x4x16x32xf32>
    %c15_i32_57 = arith.constant 15 : i32
    %150 = tpu.dynamic_rotate %132 by %c15_i32_57 dim 2 : vector<1x4x16x32xf32>, i32 -> vector<1x4x16x32xf32>
    %cst_58 = arith.constant 0.000000e+00 : f32
    %151 = vector.shape_cast %72 : vector<1x1x16x1xi1> to vector<1x1x16x1xi1>
    %152 = vector.broadcast %151 : vector<1x1x16x1xi1> to vector<1x4x16x32xi1>
    %153 = vector.broadcast %cst_58 : f32 to vector<1x4x16x32xf32>
    %154 = arith.select %152, %150, %153 : vector<1x4x16x32xi1>, vector<1x4x16x32xf32>
    %155 = vector.extract_strided_slice %53 {offsets = [8, 0], sizes = [1, 32], strides = [1, 1]} : vector<9x32xf32> to vector<1x32xf32>
    %156 = vector.shape_cast %155 : vector<1x32xf32> to vector<32xf32>
    %157 = vector.shape_cast %156 : vector<32xf32> to vector<1x1x1x32xf32>
    %158 = vector.broadcast %157 : vector<1x1x1x32xf32> to vector<1x4x16x32xf32>
    %159 = arith.mulf %154, %158 : vector<1x4x16x32xf32>
    %160 = arith.addf %149, %159 : vector<1x4x16x32xf32>
    %161 = arith.truncf %160 : vector<1x4x16x32xf32> to vector<1x4x16x32xbf16>
    %c0_59 = arith.constant 0 : index
    %c0_60 = arith.constant 0 : index
    %c0_61 = arith.constant 0 : index
    %c0_62 = arith.constant 0 : index
    %162 = vector.load %arg8[%c0_59, %c0_60, %c0_61, %c0_62] : memref<1x4x16x32xbf16, #tpu.memory_space<vmem>>, vector<1x4x16x32xbf16>
    tpu.vector_store %arg8[%c0_59, %c0_60, %c0_61, %c0_62], %161 {strides = array<i32>} : memref<1x4x16x32xbf16, #tpu.memory_space<vmem>>, vector<1x4x16x32xbf16>,
    %cst_63 = arith.constant dense<0.000000e+00> : vector<32xf32>
    %163 = vector.multi_reduction <add>, %160, %cst_63 [0, 1, 2] : vector<1x4x16x32xf32> to vector<32xf32>
    %cst_64 = arith.constant 1.562500e-02 : f32
    %164 = vector.broadcast %cst_64 : f32 to vector<32xf32>
    %165 = arith.mulf %163, %164 : vector<32xf32>
    %166 = vector.shape_cast %165 : vector<32xf32> to vector<1x1x1x32xf32>
    %167 = vector.broadcast %166 : vector<1x1x1x32xf32> to vector<1x4x16x32xf32>
    %168 = arith.subf %160, %167 : vector<1x4x16x32xf32>
    %169 = vector.shape_cast %163 : vector<32xf32> to vector<1x1x32xf32>
    %c0_65 = arith.constant 0 : index
    %c0_66 = arith.constant 0 : index
    %c0_67 = arith.constant 0 : index
    %170 = vector.load %arg9[%c0_65, %c0_66, %c0_67] : memref<1x1x32xf32, #tpu.memory_space<vmem>>, vector<1x1x32xf32>
    tpu.vector_store %arg9[%c0_65, %c0_66, %c0_67], %169 {strides = array<i32>} : memref<1x1x32xf32, #tpu.memory_space<vmem>>, vector<1x1x32xf32>,
    %171 = arith.mulf %168, %168 : vector<1x4x16x32xf32>
    %cst_68 = arith.constant dense<0.000000e+00> : vector<32xf32>
    %172 = vector.multi_reduction <add>, %171, %cst_68 [0, 1, 2] : vector<1x4x16x32xf32> to vector<32xf32>
    %173 = vector.shape_cast %172 : vector<32xf32> to vector<1x1x32xf32>
    %c0_69 = arith.constant 0 : index
    %c0_70 = arith.constant 0 : index
    %c0_71 = arith.constant 0 : index
    %174 = vector.load %arg10[%c0_69, %c0_70, %c0_71] : memref<1x1x32xf32, #tpu.memory_space<vmem>>, vector<1x1x32xf32>
    tpu.vector_store %arg10[%c0_69, %c0_70, %c0_71], %173 {strides = array<i32>} : memref<1x1x32xf32, #tpu.memory_space<vmem>>, vector<1x1x32xf32>,
    return
  }
  func.func @transform_0(%arg0: i32, %arg1: i32) -> (i32, i32, i32, i32) {
    %c0_i32 = arith.constant 0 : i32
    %c0_i32_0 = arith.constant 0 : i32
    %c0_i32_1 = arith.constant 0 : i32
    return %arg0, %arg1, %c0_i32, %c0_i32_0 : i32, i32, i32, i32
  }
  func.func @transform_1(%arg0: i32, %arg1: i32) -> (i32, i32, i32, i32) {
    %c4_i32 = arith.constant 4 : i32
    %0 = arith.muli %arg1, %c4_i32 : i32
    %c1_i32 = arith.constant 1 : i32
    %1 = arith.subi %0, %c1_i32 : i32
    %c0_i32 = arith.constant 0 : i32
    %2 = arith.maxsi %1, %c0_i32 : i32
    %c0_i32_0 = arith.constant 0 : i32
    %c0_i32_1 = arith.constant 0 : i32
    %c0_i32_2 = arith.constant 0 : i32
    return %arg0, %2, %c0_i32_0, %c0_i32_1 : i32, i32, i32, i32
  }
  func.func @transform_2(%arg0: i32, %arg1: i32) -> (i32, i32, i32, i32) {
    %c1_i32 = arith.constant 1 : i32
    %0 = arith.addi %arg1, %c1_i32 : i32
    %c4_i32 = arith.constant 4 : i32
    %1 = arith.muli %0, %c4_i32 : i32
    %c15_i32 = arith.constant 15 : i32
    %2 = arith.minsi %1, %c15_i32 : i32
    %c0_i32 = arith.constant 0 : i32
    %c0_i32_0 = arith.constant 0 : i32
    %c0_i32_1 = arith.constant 0 : i32
    return %arg0, %2, %c0_i32, %c0_i32_0 : i32, i32, i32, i32
  }
  func.func @transform_3(%arg0: i32, %arg1: i32) -> (i32, i32) {
    %c0_i32 = arith.constant 0 : i32
    %c0_i32_0 = arith.constant 0 : i32
    %c0_i32_1 = arith.constant 0 : i32
    return %c0_i32, %c0_i32_0 : i32, i32
  }
  func.func @transform_4(%arg0: i32, %arg1: i32) -> (i32, i32) {
    %c0_i32 = arith.constant 0 : i32
    %c0_i32_0 = arith.constant 0 : i32
    %c0_i32_1 = arith.constant 0 : i32
    return %c0_i32, %c0_i32_0 : i32, i32
  }
  func.func @transform_5(%arg0: i32, %arg1: i32) -> (i32, i32) {
    %c0_i32 = arith.constant 0 : i32
    %c0_i32_0 = arith.constant 0 : i32
    %c0_i32_1 = arith.constant 0 : i32
    return %c0_i32, %c0_i32_0 : i32, i32
  }
  func.func @transform_6(%arg0: i32, %arg1: i32) -> (i32, i32, i32, i32) {
    %c0_i32 = arith.constant 0 : i32
    %c0_i32_0 = arith.constant 0 : i32
    %c0_i32_1 = arith.constant 0 : i32
    return %arg0, %arg1, %c0_i32, %c0_i32_0 : i32, i32, i32, i32
  }
  func.func @transform_7(%arg0: i32, %arg1: i32) -> (i32, i32, i32) {
    %c4_i32 = arith.constant 4 : i32
    %0 = arith.muli %arg0, %c4_i32 : i32
    %1 = arith.addi %0, %arg1 : i32
    %c0_i32 = arith.constant 0 : i32
    %c0_i32_0 = arith.constant 0 : i32
    %c0_i32_1 = arith.constant 0 : i32
    return %1, %c0_i32, %c0_i32_0 : i32, i32, i32
  }
  func.func @transform_8(%arg0: i32, %arg1: i32) -> (i32, i32, i32) {
    %c4_i32 = arith.constant 4 : i32
    %0 = arith.muli %arg0, %c4_i32 : i32
    %1 = arith.addi %0, %arg1 : i32
    %c0_i32 = arith.constant 0 : i32
    %c0_i32_0 = arith.constant 0 : i32
    %c0_i32_1 = arith.constant 0 : i32
    return %1, %c0_i32, %c0_i32_0 : i32, i32, i32
  }
}

module attributes {stable_mosaic.version = 11 : i64} {
  func.func @_pw2_kernel(%arg0: i32, %arg1: i32, %arg2: memref<1x4x16x32xbf16, #tpu.memory_space<vmem>>, %arg3: memref<1x32xf32, #tpu.memory_space<vmem>>, %arg4: memref<1x32xf32, #tpu.memory_space<vmem>>, %arg5: memref<32x8xbf16, #tpu.memory_space<vmem>>, %arg6: memref<1x4x16x8xf32, #tpu.memory_space<vmem>>, %arg7: memref<1x1x8xf32, #tpu.memory_space<vmem>>, %arg8: memref<1x1x8xf32, #tpu.memory_space<vmem>>) attributes {dimension_semantics = [#tpu.dimension_semantics<parallel>, #tpu.dimension_semantics<parallel>], iteration_bounds = array<i64: 2, 4>, scalar_prefetch = 0 : i64, scratch_operands = 0 : i64, tpu.core_type = #tpu.core_type<tc>, window_params = [{transform_indices = @transform_0, window_bounds = array<i64: 1, 4, 16, 32>}, {pipeline_mode = #tpu.pipeline_mode<synchronous>, transform_indices = @transform_1, window_bounds = array<i64: 1, 32>}, {pipeline_mode = #tpu.pipeline_mode<synchronous>, transform_indices = @transform_2, window_bounds = array<i64: 1, 32>}, {pipeline_mode = #tpu.pipeline_mode<synchronous>, transform_indices = @transform_3, window_bounds = array<i64: 32, 8>}, {transform_indices = @transform_4, window_bounds = array<i64: 1, 4, 16, 8>}, {transform_indices = @transform_5, window_bounds = array<i64: 1, 1, 8>}, {transform_indices = @transform_6, window_bounds = array<i64: 1, 1, 8>}]} {
    %c0 = arith.constant 0 : index
    %c0_0 = arith.constant 0 : index
    %c0_1 = arith.constant 0 : index
    %c0_2 = arith.constant 0 : index
    %0 = vector.load %arg2[%c0, %c0_0, %c0_1, %c0_2] : memref<1x4x16x32xbf16, #tpu.memory_space<vmem>>, vector<1x4x16x32xbf16>
    %1 = arith.extf %0 : vector<1x4x16x32xbf16> to vector<1x4x16x32xf32>
    %2 = vector.shape_cast %1 : vector<1x4x16x32xf32> to vector<64x32xf32>
    %c0_3 = arith.constant 0 : index
    %c0_4 = arith.constant 0 : index
    %3 = vector.load %arg3[%c0_3, %c0_4] : memref<1x32xf32, #tpu.memory_space<vmem>>, vector<1x32xf32>
    %4 = vector.broadcast %3 : vector<1x32xf32> to vector<64x32xf32>
    %5 = arith.mulf %2, %4 : vector<64x32xf32>
    %c0_5 = arith.constant 0 : index
    %c0_6 = arith.constant 0 : index
    %6 = vector.load %arg4[%c0_5, %c0_6] : memref<1x32xf32, #tpu.memory_space<vmem>>, vector<1x32xf32>
    %7 = vector.broadcast %6 : vector<1x32xf32> to vector<64x32xf32>
    %8 = arith.addf %5, %7 : vector<64x32xf32>
    %9 = arith.negf %8 : vector<64x32xf32>
    %10 = math.exp %9 : vector<64x32xf32>
    %cst = arith.constant 1.000000e+00 : f32
    %11 = vector.broadcast %cst : f32 to vector<64x32xf32>
    %12 = arith.addf %11, %10 : vector<64x32xf32>
    %13 = arith.divf %11, %12 : vector<64x32xf32>
    %14 = arith.mulf %8, %13 : vector<64x32xf32>
    %15 = arith.truncf %14 : vector<64x32xf32> to vector<64x32xbf16>
    %c0_7 = arith.constant 0 : index
    %c0_8 = arith.constant 0 : index
    %16 = vector.load %arg5[%c0_7, %c0_8] : memref<32x8xbf16, #tpu.memory_space<vmem>>, vector<32x8xbf16>
    %cst_9 = arith.constant dense<0.000000e+00> : vector<64x8xf32>
    %17 = tpu.matmul %15, %16, %cst_9 {dimension_numbers = #tpu.dot_dimension_numbers<[1], [0], [0], [1], [0, 0, 1, 1], [], []>} : vector<64x32xbf16>, vector<32x8xbf16>, vector<64x8xf32> -> vector<64x8xf32>
    %18 = vector.shape_cast %17 : vector<64x8xf32> to vector<1x4x16x8xf32>
    %c0_10 = arith.constant 0 : index
    %c0_11 = arith.constant 0 : index
    %c0_12 = arith.constant 0 : index
    %c0_13 = arith.constant 0 : index
    %19 = vector.load %arg6[%c0_10, %c0_11, %c0_12, %c0_13] : memref<1x4x16x8xf32, #tpu.memory_space<vmem>>, vector<1x4x16x8xf32>
    tpu.vector_store %arg6[%c0_10, %c0_11, %c0_12, %c0_13], %18 {strides = array<i32>} : memref<1x4x16x8xf32, #tpu.memory_space<vmem>>, vector<1x4x16x8xf32>,
    %cst_14 = arith.constant dense<0.000000e+00> : vector<8xf32>
    %20 = vector.multi_reduction <add>, %17, %cst_14 [0] : vector<64x8xf32> to vector<8xf32>
    %cst_15 = arith.constant 1.562500e-02 : f32
    %21 = vector.broadcast %cst_15 : f32 to vector<8xf32>
    %22 = arith.mulf %20, %21 : vector<8xf32>
    %23 = vector.shape_cast %22 : vector<8xf32> to vector<1x8xf32>
    %24 = vector.broadcast %23 : vector<1x8xf32> to vector<64x8xf32>
    %25 = arith.subf %17, %24 : vector<64x8xf32>
    %26 = vector.shape_cast %20 : vector<8xf32> to vector<1x1x8xf32>
    %c0_16 = arith.constant 0 : index
    %c0_17 = arith.constant 0 : index
    %c0_18 = arith.constant 0 : index
    %27 = vector.load %arg7[%c0_16, %c0_17, %c0_18] : memref<1x1x8xf32, #tpu.memory_space<vmem>>, vector<1x1x8xf32>
    tpu.vector_store %arg7[%c0_16, %c0_17, %c0_18], %26 {strides = array<i32>} : memref<1x1x8xf32, #tpu.memory_space<vmem>>, vector<1x1x8xf32>,
    %28 = arith.mulf %25, %25 : vector<64x8xf32>
    %cst_19 = arith.constant dense<0.000000e+00> : vector<8xf32>
    %29 = vector.multi_reduction <add>, %28, %cst_19 [0] : vector<64x8xf32> to vector<8xf32>
    %30 = vector.shape_cast %29 : vector<8xf32> to vector<1x1x8xf32>
    %c0_20 = arith.constant 0 : index
    %c0_21 = arith.constant 0 : index
    %c0_22 = arith.constant 0 : index
    %31 = vector.load %arg8[%c0_20, %c0_21, %c0_22] : memref<1x1x8xf32, #tpu.memory_space<vmem>>, vector<1x1x8xf32>
    tpu.vector_store %arg8[%c0_20, %c0_21, %c0_22], %30 {strides = array<i32>} : memref<1x1x8xf32, #tpu.memory_space<vmem>>, vector<1x1x8xf32>,
    return
  }
  func.func @transform_0(%arg0: i32, %arg1: i32) -> (i32, i32, i32, i32) {
    %c0_i32 = arith.constant 0 : i32
    %c0_i32_0 = arith.constant 0 : i32
    %c0_i32_1 = arith.constant 0 : i32
    return %arg0, %arg1, %c0_i32, %c0_i32_0 : i32, i32, i32, i32
  }
  func.func @transform_1(%arg0: i32, %arg1: i32) -> (i32, i32) {
    %c0_i32 = arith.constant 0 : i32
    %c0_i32_0 = arith.constant 0 : i32
    %c0_i32_1 = arith.constant 0 : i32
    return %c0_i32, %c0_i32_0 : i32, i32
  }
  func.func @transform_2(%arg0: i32, %arg1: i32) -> (i32, i32) {
    %c0_i32 = arith.constant 0 : i32
    %c0_i32_0 = arith.constant 0 : i32
    %c0_i32_1 = arith.constant 0 : i32
    return %c0_i32, %c0_i32_0 : i32, i32
  }
  func.func @transform_3(%arg0: i32, %arg1: i32) -> (i32, i32) {
    %c0_i32 = arith.constant 0 : i32
    %c0_i32_0 = arith.constant 0 : i32
    %c0_i32_1 = arith.constant 0 : i32
    return %c0_i32, %c0_i32_0 : i32, i32
  }
  func.func @transform_4(%arg0: i32, %arg1: i32) -> (i32, i32, i32, i32) {
    %c0_i32 = arith.constant 0 : i32
    %c0_i32_0 = arith.constant 0 : i32
    %c0_i32_1 = arith.constant 0 : i32
    return %arg0, %arg1, %c0_i32, %c0_i32_0 : i32, i32, i32, i32
  }
  func.func @transform_5(%arg0: i32, %arg1: i32) -> (i32, i32, i32) {
    %c4_i32 = arith.constant 4 : i32
    %0 = arith.muli %arg0, %c4_i32 : i32
    %1 = arith.addi %0, %arg1 : i32
    %c0_i32 = arith.constant 0 : i32
    %c0_i32_0 = arith.constant 0 : i32
    %c0_i32_1 = arith.constant 0 : i32
    return %1, %c0_i32, %c0_i32_0 : i32, i32, i32
  }
  func.func @transform_6(%arg0: i32, %arg1: i32) -> (i32, i32, i32) {
    %c4_i32 = arith.constant 4 : i32
    %0 = arith.muli %arg0, %c4_i32 : i32
    %1 = arith.addi %0, %arg1 : i32
    %c0_i32 = arith.constant 0 : i32
    %c0_i32_0 = arith.constant 0 : i32
    %c0_i32_1 = arith.constant 0 : i32
    return %1, %c0_i32, %c0_i32_0 : i32, i32, i32
  }
}

</mosaic_0001>

<llo_original>
// kernel: inverted_residual_forward.5
$region0: #{inverted_residual_forward.5}
  #allocation0 [shape = 'u32[]', space=smem, size = 0x4, offset = 0x4, fixed_abs, tag = 'smem constant byte address 0x4 - core index']
  #allocation1 [shape = 'u32[144,128]{1,0:T(1,128)}', space=vmem, size = 0x12000, scoped, tag = 'internal scratch']
  %s0 = inlined_call_operand.vmem [shape: bf16[2,16,16,8], index: 0, kind: input, shape index: {}]
  %s1 = inlined_call_operand.vmem [shape: bf16[8,32], index: 1, kind: input, shape index: {}]
  %s2 = inlined_call_operand.vmem [shape: f32[1,32], index: 2, kind: input, shape index: {}]
  %s3 = inlined_call_operand.vmem [shape: bf16[2,16,16,32], index: 3, kind: output, shape index: {0}]
  %s4 = inlined_call_operand.vmem [shape: f32[8,1,32], index: 4, kind: output, shape index: {1}]
  %s5 = inlined_call_operand.vmem [shape: f32[8,1,32], index: 5, kind: output, shape index: {2}]
  %6 = xla_tuple %s3, %s4, %s5
  %s7 = sld [smem:[#allocation0]]
  $region61: #{inverted_residual_forward.5} parent=0
    _
  %s9 = ssub.s32 1, %s7
  %s10 = scalar_select 0, %s9, %s7
  loop: start=0, step=1, limit=10
  $region2: #{inverted_residual_forward.5} parent=0 // loop_pre_header
    _
  $region3: #{inverted_residual_forward.5} parent=0 // loop_header
    %s12 = sphi 0, %s16
    %p13 = scmp.ge.s32.totalorder %s12, 10
    %s19 = sphi 0, %s31
    %s20 = sphi 0, %s27
    %s21 = sphi 0, %s19
    %s22 = sphi 0, %s20
    %s23 = sphi 0, %s21
    %s24 = sphi 0, %s22
    %s36 = sphi 0, %s38
    %s39 = sphi 0, %s36
    %s40 = sphi 0, %s39
    %s56 = sphi 0, %s40
    %s60 = sphi 0, %s60
    %s62 = sphi 0, %s60
    %s63 = sphi 0, %s62
    %s77 = sphi 0, %s63
    %s81 = sphi 0, %s81
    %s83 = sphi 0, %s81
    %s84 = sphi 0, %s83
    %s98 = sphi 0, %s84
    %s106 = sphi 0, %s108
    %s109 = sphi 0, %s106
    %s110 = sphi 0, %s109
    %s126 = sphi 0, %s110
    %s136 = sphi 0, %s138
    %s139 = sphi 0, %s136
    %s140 = sphi 0, %s139
    %s156 = sphi 0, %s140
    %s166 = sphi 0, %s168
    %s169 = sphi 0, %s166
    %s170 = sphi 0, %s169
    %s186 = sphi 0, %s170
  $region4: #{inverted_residual_forward.5} parent=0 // loop_header_branch
    %15 = sbr.rel (%p13) target = $region8
  $region5: #{inverted_residual_forward.5} parent=0 // loop_body
    %s17 = ssub.s32 %s12, 1
    %s18 = ssub.s32 %s12, 2
    %s25 = sadd.s32 1, %s20
    %p26 = scmp.ge.s32.totalorder %s25, 4
    %s27 = scalar_select %p26, 0, %s25
    %s28 = sadd.s32 1, %s19
    %s29 = scalar_select %p26, %s28, %s19
    %p30 = scmp.ge.s32.totalorder %s29, 2
    %s31 = scalar_select %p30, 0, %s29
    %s32 = ssub.s32 %s19, %s31
    %s33 = ssub.s32 %s20, %s27
    %s34 = sor.u32 %s32, %s33
    %p35 = scmp.eq.s32.totalorder %s34, 0
    %s37 = sadd.s32 %s36, 1
    %s38 = scalar_select %p35, %s36, %s37
    %p41 = pneg %p35
    %p42 = scmp.eq.s32.totalorder %s12, 7
    %p43 = por %p41, %p42
    %p44 = scmp.ne.s32.totalorder %s36, %s39
    %p45 = scmp.eq.s32.totalorder %s12, 0
    %p46 = por %p44, %p45
    %p47 = scmp.ne.s32.totalorder %s36, %s39
    %p48 = scmp.eq.s32.totalorder %s17, 7
    %p49 = por %p47, %p48
    %p50 = scmp.ne.s32.totalorder %s39, %s40
    %p51 = scmp.eq.s32.totalorder %s17, 0
    %p52 = por %p50, %p51
    %p53 = scmp.ne.s32.totalorder %s39, %s40
    %p54 = scmp.eq.s32.totalorder %s18, 7
    %p55 = por %p53, %p54
    %p57 = scmp.ne.s32.totalorder %s40, %s56
    %p58 = scmp.eq.s32.totalorder %s18, 0
    %p59 = por %p57, %p58
    %s61 = sadd.s32 %s60, 1
    %p64 = scmp.eq.s32.totalorder %s12, 7
    %p65 = scmp.ne.s32.totalorder %s60, %s62
    %p66 = scmp.eq.s32.totalorder %s12, 0
    %p67 = por %p65, %p66
    %p68 = scmp.ne.s32.totalorder %s60, %s62
    %p69 = scmp.eq.s32.totalorder %s17, 7
    %p70 = por %p68, %p69
    %p71 = scmp.ne.s32.totalorder %s62, %s63
    %p72 = scmp.eq.s32.totalorder %s17, 0
    %p73 = por %p71, %p72
    %p74 = scmp.ne.s32.totalorder %s62, %s63
    %p75 = scmp.eq.s32.totalorder %s18, 7
    %p76 = por %p74, %p75
    %p78 = scmp.ne.s32.totalorder %s63, %s77
    %p79 = scmp.eq.s32.totalorder %s18, 0
    %p80 = por %p78, %p79
    %s82 = sadd.s32 %s81, 1
    %p85 = scmp.eq.s32.totalorder %s12, 7
    %p86 = scmp.ne.s32.totalorder %s81, %s83
    %p87 = scmp.eq.s32.totalorder %s12, 0
    %p88 = por %p86, %p87
    %p89 = scmp.ne.s32.totalorder %s81, %s83
    %p90 = scmp.eq.s32.totalorder %s17, 7
    %p91 = por %p89, %p90
    %p92 = scmp.ne.s32.totalorder %s83, %s84
    %p93 = scmp.eq.s32.totalorder %s17, 0
    %p94 = por %p92, %p93
    %p95 = scmp.ne.s32.totalorder %s83, %s84
    %p96 = scmp.eq.s32.totalorder %s18, 7
    %p97 = por %p95, %p96
    %p99 = scmp.ne.s32.totalorder %s84, %s98
    %p100 = scmp.eq.s32.totalorder %s18, 0
    %p101 = por %p99, %p100
    %s102 = ssub.s32 %s19, %s31
    %s103 = ssub.s32 %s20, %s27
    %s104 = sor.u32 %s102, %s103
    %p105 = scmp.eq.s32.totalorder %s104, 0
    %s107 = sadd.s32 %s106, 1
    %s108 = scalar_select %p105, %s106, %s107
    %p111 = pneg %p105
    %p112 = scmp.eq.s32.totalorder %s12, 7
    %p113 = por %p111, %p112
    %p114 = scmp.ne.s32.totalorder %s106, %s109
    %p115 = scmp.eq.s32.totalorder %s12, 0
    %p116 = por %p114, %p115
    %p117 = scmp.ne.s32.totalorder %s106, %s109
    %p118 = scmp.eq.s32.totalorder %s17, 7
    %p119 = por %p117, %p118
    %p120 = scmp.ne.s32.totalorder %s109, %s110
    %p121 = scmp.eq.s32.totalorder %s17, 0
    %p122 = por %p120, %p121
    %p123 = scmp.ne.s32.totalorder %s109, %s110
    %p124 = scmp.eq.s32.totalorder %s18, 7
    %p125 = por %p123, %p124
    %p127 = scmp.ne.s32.totalorder %s110, %s126
    %p128 = scmp.eq.s32.totalorder %s18, 0
    %p129 = por %p127, %p128
    %s130 = smul.u32 %s19, 4
    %s131 = sadd.s32 %s130, %s20
    %s132 = smul.u32 %s31, 4
    %s133 = sadd.s32 %s132, %s27
    %s134 = ssub.s32 %s131, %s133
    %p135 = scmp.eq.s32.totalorder %s134, 0
    %s137 = sadd.s32 %s136, 1
    %s138 = scalar_select %p135, %s136, %s137
    %p141 = pneg %p135
    %p142 = scmp.eq.s32.totalorder %s12, 7
    %p143 = por %p141, %p142
    %p144 = scmp.ne.s32.totalorder %s136, %s139
    %p145 = scmp.eq.s32.totalorder %s12, 0
    %p146 = por %p144, %p145
    %p147 = scmp.ne.s32.totalorder %s136, %s139
    %p148 = scmp.eq.s32.totalorder %s17, 7
    %p149 = por %p147, %p148
    %p150 = scmp.ne.s32.totalorder %s139, %s140
    %p151 = scmp.eq.s32.totalorder %s17, 0
    %p152 = por %p150, %p151
    %p153 = scmp.ne.s32.totalorder %s139, %s140
    %p154 = scmp.eq.s32.totalorder %s18, 7
    %p155 = por %p153, %p154
    %p157 = scmp.ne.s32.totalorder %s140, %s156
    %p158 = scmp.eq.s32.totalorder %s18, 0
    %p159 = por %p157, %p158
    %s160 = smul.u32 %s19, 4
    %s161 = sadd.s32 %s160, %s20
    %s162 = smul.u32 %s31, 4
    %s163 = sadd.s32 %s162, %s27
    %s164 = ssub.s32 %s161, %s163
    %p165 = scmp.eq.s32.totalorder %s164, 0
    %s167 = sadd.s32 %s166, 1
    %s168 = scalar_select %p165, %s166, %s167
    %p171 = pneg %p165
    %p172 = scmp.eq.s32.totalorder %s12, 7
    %p173 = por %p171, %p172
    %p174 = scmp.ne.s32.totalorder %s166, %s169
    %p175 = scmp.eq.s32.totalorder %s12, 0
    %p176 = por %p174, %p175
    %p177 = scmp.ne.s32.totalorder %s166, %s169
    %p178 = scmp.eq.s32.totalorder %s17, 7
    %p179 = por %p177, %p178
    %p180 = scmp.ne.s32.totalorder %s169, %s170
    %p181 = scmp.eq.s32.totalorder %s17, 0
    %p182 = por %p180, %p181
    %p183 = scmp.ne.s32.totalorder %s169, %s170
    %p184 = scmp.eq.s32.totalorder %s18, 7
    %p185 = por %p183, %p184
    %p187 = scmp.ne.s32.totalorder %s170, %s186
    %p188 = scmp.eq.s32.totalorder %s18, 0
    %p189 = por %p187, %p188
    %p190 = scmp.le.s32.totalorder 1, %s12
    %p191 = scmp.lt.s32.totalorder %s12, 9
    %p192 = pnand %p190, %p191
    %p193 = pneg %p192
    // Predicated region
    $region9: #{inverted_residual_forward.5} parent=5 // pred_check
      _
    $region10: #{inverted_residual_forward.5} parent=5 // pred_check_branch
      %195 = sbr.rel (%p192) target = $region12
    $region11: #{inverted_residual_forward.5} parent=5 // pred_region
      %s196 = ssub.s32 %s12, 1
      // Predicated region
      $region13: #{inverted_residual_forward.5} parent=11 // pred_check
        %p197 = pneg %p73
      $region14: #{inverted_residual_forward.5} parent=11 // pred_check_branch
        %199 = sbr.rel (%p197) target = $region16
      $region15: #{inverted_residual_forward.5} parent=11 // pred_region
        _
      $region16: #{inverted_residual_forward.5} parent=11 // pred_fallthru
        _
      // Predicated region
      $region17: #{inverted_residual_forward.5} parent=11 // pred_check
        %p200 = pneg %p94
      $region18: #{inverted_residual_forward.5} parent=11 // pred_check_branch
        %202 = sbr.rel (%p200) target = $region20
      $region19: #{inverted_residual_forward.5} parent=11 // pred_region
        _
      $region20: #{inverted_residual_forward.5} parent=11 // pred_fallthru
        _
    $region12: #{inverted_residual_forward.5} parent=5 // pred_fallthru
      _
    %p203 = scmp.lt.s32.totalorder %s12, 8
    // Predicated region
    $region21: #{inverted_residual_forward.5} parent=5 // pred_check
      %p204 = pneg %p203
    $region22: #{inverted_residual_forward.5} parent=5 // pred_check_branch
      %206 = sbr.rel (%p204) target = $region24
    $region23: #{inverted_residual_forward.5} parent=5 // pred_region
      // Predicated region
      $region25: #{inverted_residual_forward.5} parent=23 // pred_check
        %p207 = pneg %p46
      $region26: #{inverted_residual_forward.5} parent=23 // pred_check_branch
        %209 = sbr.rel (%p207) target = $region28
      $region27: #{inverted_residual_forward.5} parent=23 // pred_region
        %s210 = smul.u32 4, %s20
        %p211 = scmp.lt.s32.totalorder %s19, 1
        %s212 = scalar_select %p211, %s19, 1
        %p213 = scmp.lt.s32.totalorder %s210, 15
        %s214 = scalar_select %p213, %s210, 15
        %s215 = smul.addr %s214, 2
        %s216 = smul.addr %s212, 32
        %s217 = sadd.s32 %s215, %s216
        %s218 = smul.addr %s217, 4
        %s219 = scalar_lea.vmem %s0, %s218
        %s220 = smul.u32 4, %s20
      $region28: #{inverted_residual_forward.5} parent=23 // pred_fallthru
        _
    $region24: #{inverted_residual_forward.5} parent=5 // pred_fallthru
      _
    %p221 = scmp.le.s32.totalorder 1, %s12
    %p222 = scmp.lt.s32.totalorder %s12, 9
    %p223 = pnand %p221, %p222
    %p224 = pneg %p223
    // Predicated region
    $region29: #{inverted_residual_forward.5} parent=5 // pred_check
      _
    $region30: #{inverted_residual_forward.5} parent=5 // pred_check_branch
      %226 = sbr.rel (%p223) target = $region32
    $region31: #{inverted_residual_forward.5} parent=5 // pred_region
      %s227 = ssub.s32 %s12, 1
      %s228 = smul.u32 4, %s22
      %p229 = scmp.lt.s32.totalorder %s21, 1
      %s230 = scalar_select %p229, %s21, 1
      %p231 = scmp.lt.s32.totalorder %s228, 15
      %s232 = scalar_select %p231, %s228, 15
      %s233 = smul.addr %s232, 2
      %s234 = smul.addr %s230, 32
      %s235 = sadd.s32 %s233, %s234
      %s236 = smul.addr %s235, 4
      %s237 = scalar_lea.vmem %s0, %s236
      %p238 = pneg %p52
      %p239 = pneg %p49
      %p240 = pneg %p73
      %p241 = pneg %p70
      %p242 = pneg %p94
      %p243 = pneg %p91
      %p244 = pneg %p122
      %p245 = pneg %p119
      %s246 = smul.u32 4, %s22
      %p247 = scmp.lt.s32.totalorder %s21, 1
      %s248 = scalar_select %p247, %s21, 1
      %p249 = scmp.lt.s32.totalorder %s246, 15
      %s250 = scalar_select %p249, %s246, 15
      %s251 = smul.addr %s250, 2
      %s252 = smul.addr %s248, 32
      %s253 = sadd.s32 %s251, %s252
      %s254 = smul.addr %s253, 4
      %s255 = scalar_lea.vmem %s3, %s254
      %p256 = pneg %p152
      %p257 = pneg %p149
      %s258 = smul.u32 %s21, 4
      %s259 = sadd.s32 %s258, %s22
      %p260 = scmp.lt.s32.totalorder %s259, 7
      %s261 = scalar_select %p260, %s259, 7
      %s262 = scalar_lea.vmem %s4, %s261
      %p263 = pneg %p182
      %p264 = pneg %p179
      %s265 = smul.u32 %s21, 4
      %s266 = sadd.s32 %s265, %s22
      %p267 = scmp.lt.s32.totalorder %s266, 7
      %s268 = scalar_select %p267, %s266, 7
      %s269 = scalar_lea.vmem %s5, %s268
      %s270 = smul.u32 4, %s22
      %p271 = scmp.lt.s32.totalorder %s21, 1
      %s272 = scalar_select %p271, %s21, 1
      %p273 = scmp.lt.s32.totalorder %s270, 15
      %s274 = scalar_select %p273, %s270, 15
      %s275 = smul.addr %s274, 2
      %s276 = smul.addr %s272, 32
      %s277 = sadd.s32 %s275, %s276
      %s278 = smul.addr %s277, 4
      %s279 = scalar_lea.vmem %s0, %s278
      %s280 = smul.u32 4, %s22
      %s281 = smul.u32 4, %s22
      %p282 = scmp.lt.s32.totalorder %s21, 1
      %s283 = scalar_select %p282, %s21, 1
      %p284 = scmp.lt.s32.totalorder %s281, 15
      %s285 = scalar_select %p284, %s281, 15
      %s286 = smul.addr %s285, 2
      %s287 = smul.addr %s283, 32
      %s288 = sadd.s32 %s286, %s287
      %s289 = smul.addr %s288, 4
      %s290 = scalar_lea.vmem %s3, %s289
      %s291 = smul.u32 4, %s22
      %s292 = smul.u32 %s21, 4
      %s293 = sadd.s32 %s292, %s22
      %p294 = scmp.lt.s32.totalorder %s293, 7
      %s295 = scalar_select %p294, %s293, 7
      %s296 = scalar_lea.vmem %s4, %s295
      %s297 = smul.u32 %s21, 4
      %s298 = sadd.s32 %s297, %s22
      %s299 = smul.u32 %s21, 4
      %s300 = sadd.s32 %s299, %s22
      %p301 = scmp.lt.s32.totalorder %s300, 7
      %s302 = scalar_select %p301, %s300, 7
      %s303 = scalar_lea.vmem %s5, %s302
      %s304 = smul.u32 %s21, 4
      %s305 = sadd.s32 %s304, %s22
      %v307 = vld [vmem:[%s279] sm:$0xf]
      %v308 = vld [vmem:[%s279 + $0x4] sm:$0xf]
      %v309 = vld [vmem:[%s279 + $0x8] sm:$0xf]
      %v310 = vld [vmem:[%s279 + $0xc] sm:$0xf]
      %v311 = vld [vmem:[%s279 + $0x10] sm:$0xf]
      %v312 = vld [vmem:[%s279 + $0x14] sm:$0xf]
      %v313 = vld [vmem:[%s279 + $0x18] sm:$0xf]
      %v314 = vld [vmem:[%s279 + $0x1c] sm:$0xf]
      %v315 = vld [vmem:[%s1] sm:$0xf]
      %v316 = vld [vmem:[%s2] sm:$0x1]
      %v318 = vlaneseq
      %v319 = vshrl.u32 %v318, 7
      %v320 = vsub.s32 0, %v319
      %v321 = vrot.slane %v316, %v320
      %v331 = vunpack.c.l.b16 %v307
      %v332 = vunpack.c.l.b16 %v308
      %v333 = vunpack.c.l.b16 %v309
      %v334 = vunpack.c.l.b16 %v310
      %v335 = vunpack.c.l.b16 %v311
      %v336 = vunpack.c.l.b16 %v312
      %v337 = vunpack.c.l.b16 %v313
      %v338 = vunpack.c.l.b16 %v314
      %v339 = vpack.c.b16 %v332, %v331
      %v340 = vpack.c.b16 %v334, %v333
      %v341 = vpack.c.b16 %v336, %v335
      %v342 = vpack.c.b16 %v338, %v337
      %vm343 = vcmask 64512
      %v345 = vsel %vm343, %v339, 0
      %v348 = vsel %vm343, %v340, 0
      %v351 = vsel %vm343, %v341, 0
      %v354 = vsel %vm343, %v342, 0
      %vm356 = vcmask 1043456
      %v358 = vsel %vm356, %v315, 0
      %360 = vmatprep.subr.bf16.mxu0 0
      %361 = vmatpush1.bf16.msra.mxu0 %v358
      %362 = vmatprep.subr.bf16.mxu0 0
      %363 = vmatpush1.bf16.msra.mxu0 0
      %364 = vmatprep.subr.bf16.mxu0 0
      %365 = vmatpush1.bf16.msra.mxu0 0
      %366 = vmatprep.subr.bf16.mxu0 0
      %367 = vmatpush1.bf16.msra.mxu0 0
      %368 = vmatprep.subr.bf16.mxu0 0
      %369 = vmatpush1.bf16.msra.mxu0 0
      %370 = vmatprep.subr.bf16.mxu0 0
      %371 = vmatpush1.bf16.msra.mxu0 0
      %372 = vmatprep.subr.bf16.mxu0 0
      %373 = vmatpush1.bf16.msra.mxu0 0
      %374 = vmatprep.subr.bf16.mxu0 0
      %375 = vmatpush1.bf16.msra.mxu0 0
      %376 = vmatprep.subr.bf16.mxu0 0
      %377 = vmatpush1.bf16.msra.mxu0 0
      %378 = vmatprep.subr.bf16.mxu0 0
      %379 = vmatpush1.bf16.msra.mxu0 0
      %380 = vmatprep.subr.bf16.mxu0 0
      %381 = vmatpush1.bf16.msra.mxu0 0
      %382 = vmatprep.subr.bf16.mxu0 0
      %383 = vmatpush1.bf16.msra.mxu0 0
      %384 = vmatprep.subr.bf16.mxu0 0
      %385 = vmatpush1.bf16.msra.mxu0 0
      %386 = vmatprep.subr.bf16.mxu0 0
      %387 = vmatpush1.bf16.msra.mxu0 0
      %388 = vmatprep.subr.bf16.mxu0 0
      %389 = vmatpush1.bf16.msra.mxu0 0
      %390 = vmatprep.subr.bf16.mxu0 0
      %391 = vmatpush1.bf16.msra.mxu0 0
      %392 = vmatprep.mubr.bf16.mxu0 0
      %393 = vmatmul.mubr.bf16.gmra.mrb[0].mxu0 %v345
      %v394 = vpop.f32.mrb[0].mxu0
      %v395 = vadd.f32 %v321, %v394
      %v396 = vpop.f32.mrb[0].mxu0
      %v397 = vpop.f32.mrb[0].mxu0
      %v398 = vadd.f32 %v321, %v397
      %v399 = vpop.f32.mrb[0].mxu0
      %400 = vmatprep.mubr.bf16.mxu0 0
      %401 = vmatmul.mubr.bf16.gmra.mrb[0].mxu0 %v348
      %v402 = vpop.f32.mrb[0].mxu0
      %v403 = vadd.f32 %v321, %v402
      %v404 = vpop.f32.mrb[0].mxu0
      %v405 = vpop.f32.mrb[0].mxu0
      %v406 = vadd.f32 %v321, %v405
      %v407 = vpop.f32.mrb[0].mxu0
      %408 = vmatprep.mubr.bf16.mxu0 0
      %409 = vmatmul.mubr.bf16.gmra.mrb[0].mxu0 %v351
      %v410 = vpop.f32.mrb[0].mxu0
      %v411 = vadd.f32 %v321, %v410
      %v412 = vpop.f32.mrb[0].mxu0
      %v413 = vpop.f32.mrb[0].mxu0
      %v414 = vadd.f32 %v321, %v413
      %v415 = vpop.f32.mrb[0].mxu0
      %416 = vmatprep.mubr.bf16.mxu0 0
      %417 = vmatmul.mubr.bf16.gmra.mrb[0].mxu0 %v354
      %v418 = vpop.f32.mrb[0].mxu0
      %v419 = vadd.f32 %v321, %v418
      %v420 = vpop.f32.mrb[0].mxu0
      %v421 = vpop.f32.mrb[0].mxu0
      %v422 = vadd.f32 %v321, %v421
      %v423 = vpop.f32.mrb[0].mxu0
      %424 = vdwg.mxu0
      %v425 = vpack.c.bf16 %v398, %v395
      %v426 = vpack.c.bf16 %v406, %v403
      %v427 = vpack.c.bf16 %v414, %v411
      %v428 = vpack.c.bf16 %v422, %v419
      %v433 = vunpack.c.l.b16 %v425
      %v434 = vunpack.c.h.b16 %v425
      %v435 = vunpack.c.l.b16 %v426
      %v436 = vunpack.c.h.b16 %v426
      %v437 = vunpack.c.l.b16 %v427
      %v438 = vunpack.c.h.b16 %v427
      %v439 = vunpack.c.l.b16 %v428
      %v440 = vunpack.c.h.b16 %v428
      %v441 = vpack.c.b16 %v433, %v433
      %v442 = vpack.c.b16 %v434, %v434
      %v443 = vpack.c.b16 %v435, %v435
      %v444 = vpack.c.b16 %v436, %v436
      %v445 = vpack.c.b16 %v437, %v437
      %v446 = vpack.c.b16 %v438, %v438
      %v447 = vpack.c.b16 %v439, %v439
      %v448 = vpack.c.b16 %v440, %v440
      %vm457 = vcmask 257024
      %458 = vst.msk [vmem:[%s290] sm:$0xf] %vm457, %v441
      %459 = vst.msk [vmem:[%s290 + $0x4] sm:$0xf] %vm457, %v442
      %460 = vst.msk [vmem:[%s290 + $0x8] sm:$0xf] %vm457, %v443
      %461 = vst.msk [vmem:[%s290 + $0xc] sm:$0xf] %vm457, %v444
      %462 = vst.msk [vmem:[%s290 + $0x10] sm:$0xf] %vm457, %v445
      %463 = vst.msk [vmem:[%s290 + $0x14] sm:$0xf] %vm457, %v446
      %464 = vst.msk [vmem:[%s290 + $0x18] sm:$0xf] %vm457, %v447
      %465 = vst.msk [vmem:[%s290 + $0x1c] sm:$0xf] %vm457, %v448
      %vm466 = vcmask 261120
      %v467 = vsel %vm466, %v395, 0.0
      %v468 = vsel %vm466, %v398, 0.0
      %v469 = vadd.f32 %v467, %v468
      %v470 = vsel %vm466, %v403, 0.0
      %v471 = vadd.f32 %v469, %v470
      %v472 = vsel %vm466, %v406, 0.0
      %v473 = vadd.f32 %v471, %v472
      %v474 = vsel %vm466, %v411, 0.0
      %v475 = vadd.f32 %v473, %v474
      %v476 = vsel %vm466, %v414, 0.0
      %v477 = vadd.f32 %v475, %v476
      %v478 = vsel %vm466, %v419, 0.0
      %v479 = vadd.f32 %v477, %v478
      %v480 = vsel %vm466, %v422, 0.0
      %v481 = vadd.f32 %v479, %v480
      %v482 = vrot.slane %v481, 4
      %v483 = vadd.f32 %v481, %v482
      %v484 = vrot.slane %v483, 2
      %v485 = vadd.f32 %v483, %v484
      %v486 = vrot.slane %v485, 1
      %v487 = vadd.f32 %v485, %v486
      %v488 = vmul.f32 %v487, 0.015625
      %v489 = vsub.f32 %v395, %v488
      %v490 = vsub.f32 %v398, %v488
      %v491 = vsub.f32 %v403, %v488
      %v492 = vsub.f32 %v406, %v488
      %v493 = vsub.f32 %v411, %v488
      %v494 = vsub.f32 %v414, %v488
      %v495 = vsub.f32 %v419, %v488
      %v496 = vsub.f32 %v422, %v488
      %vm497 = vcmask 253952
      %498 = vst.msk [vmem:[%s296] sm:$0x1] %vm497, %v487
      %v499 = vmul.f32 %v489, %v489
      %v500 = vmul.f32 %v490, %v490
      %v501 = vmul.f32 %v491, %v491
      %v502 = vmul.f32 %v492, %v492
      %v503 = vmul.f32 %v493, %v493
      %v504 = vmul.f32 %v494, %v494
      %v505 = vmul.f32 %v495, %v495
      %v506 = vmul.f32 %v496, %v496
      %v507 = vsel %vm466, %v499, 0.0
      %v508 = vsel %vm466, %v500, 0.0
      %v509 = vadd.f32 %v507, %v508
      %v510 = vsel %vm466, %v501, 0.0
      %v511 = vadd.f32 %v509, %v510
      %v512 = vsel %vm466, %v502, 0.0
      %v513 = vadd.f32 %v511, %v512
      %v514 = vsel %vm466, %v503, 0.0
      %v515 = vadd.f32 %v513, %v514
      %v516 = vsel %vm466, %v504, 0.0
      %v517 = vadd.f32 %v515, %v516
      %v518 = vsel %vm466, %v505, 0.0
      %v519 = vadd.f32 %v517, %v518
      %v520 = vsel %vm466, %v506, 0.0
      %v521 = vadd.f32 %v519, %v520
      %v522 = vrot.slane %v521, 4
      %v523 = vadd.f32 %v521, %v522
      %v524 = vrot.slane %v523, 2
      %v525 = vadd.f32 %v523, %v524
      %v526 = vrot.slane %v525, 1
      %v527 = vadd.f32 %v525, %v526
      %528 = vst.msk [vmem:[%s303] sm:$0x1] %vm497, %v527
      %s529 = smul.u32 4, %s22
      %p530 = scmp.lt.s32.totalorder %s21, 1
      %s531 = scalar_select %p530, %s21, 1
      %p532 = scmp.lt.s32.totalorder %s529, 15
      %s533 = scalar_select %p532, %s529, 15
      %s534 = smul.addr %s533, 2
      %s535 = smul.addr %s531, 32
      %s536 = sadd.s32 %s534, %s535
      %s537 = smul.addr %s536, 4
      %s538 = scalar_lea.vmem %s3, %s537
      %s539 = smul.u32 %s21, 4
      %s540 = sadd.s32 %s539, %s22
      %p541 = scmp.lt.s32.totalorder %s540, 7
      %s542 = scalar_select %p541, %s540, 7
      %s543 = scalar_lea.vmem %s4, %s542
      %s544 = smul.u32 %s21, 4
      %s545 = sadd.s32 %s544, %s22
      %p546 = scmp.lt.s32.totalorder %s545, 7
      %s547 = scalar_select %p546, %s545, 7
      %s548 = scalar_lea.vmem %s5, %s547
      // Predicated region
      $region33: #{inverted_residual_forward.5} parent=31 // pred_check
        %p549 = pneg %p119
      $region34: #{inverted_residual_forward.5} parent=31 // pred_check_branch
        %551 = sbr.rel (%p549) target = $region36
      $region35: #{inverted_residual_forward.5} parent=31 // pred_region
        %s552 = smul.u32 4, %s22
      $region36: #{inverted_residual_forward.5} parent=31 // pred_fallthru
        _
      // Predicated region
      $region37: #{inverted_residual_forward.5} parent=31 // pred_check
        %p553 = pneg %p149
      $region38: #{inverted_residual_forward.5} parent=31 // pred_check_branch
        %555 = sbr.rel (%p553) target = $region40
      $region39: #{inverted_residual_forward.5} parent=31 // pred_region
        %s556 = smul.u32 %s21, 4
        %s557 = sadd.s32 %s556, %s22
      $region40: #{inverted_residual_forward.5} parent=31 // pred_fallthru
        _
      // Predicated region
      $region41: #{inverted_residual_forward.5} parent=31 // pred_check
        %p558 = pneg %p179
      $region42: #{inverted_residual_forward.5} parent=31 // pred_check_branch
        %560 = sbr.rel (%p558) target = $region44
      $region43: #{inverted_residual_forward.5} parent=31 // pred_region
        %s561 = smul.u32 %s21, 4
        %s562 = sadd.s32 %s561, %s22
      $region44: #{inverted_residual_forward.5} parent=31 // pred_fallthru
        _
    $region32: #{inverted_residual_forward.5} parent=5 // pred_fallthru
      _
    %p563 = scmp.le.s32.totalorder 2, %s12
    // Predicated region
    $region45: #{inverted_residual_forward.5} parent=5 // pred_check
      %p564 = pneg %p563
    $region46: #{inverted_residual_forward.5} parent=5 // pred_check_branch
      %566 = sbr.rel (%p564) target = $region48
    $region47: #{inverted_residual_forward.5} parent=5 // pred_region
      %s567 = ssub.s32 %s12, 2
      // Predicated region
      $region49: #{inverted_residual_forward.5} parent=47 // pred_check
        %p568 = pneg %p125
      $region50: #{inverted_residual_forward.5} parent=47 // pred_check_branch
        %570 = sbr.rel (%p568) target = $region52
      $region51: #{inverted_residual_forward.5} parent=47 // pred_region
        %s571 = smul.u32 4, %s24
        %p572 = scmp.lt.s32.totalorder %s23, 1
        %s573 = scalar_select %p572, %s23, 1
        %p574 = scmp.lt.s32.totalorder %s571, 15
        %s575 = scalar_select %p574, %s571, 15
        %s576 = smul.addr %s575, 2
        %s577 = smul.addr %s573, 32
        %s578 = sadd.s32 %s576, %s577
        %s579 = smul.addr %s578, 4
        %s580 = scalar_lea.vmem %s3, %s579
      $region52: #{inverted_residual_forward.5} parent=47 // pred_fallthru
        _
      // Predicated region
      $region53: #{inverted_residual_forward.5} parent=47 // pred_check
        %p581 = pneg %p155
      $region54: #{inverted_residual_forward.5} parent=47 // pred_check_branch
        %583 = sbr.rel (%p581) target = $region56
      $region55: #{inverted_residual_forward.5} parent=47 // pred_region
        %s584 = smul.u32 %s23, 4
        %s585 = sadd.s32 %s584, %s24
        %p586 = scmp.lt.s32.totalorder %s585, 7
        %s587 = scalar_select %p586, %s585, 7
        %s588 = scalar_lea.vmem %s4, %s587
      $region56: #{inverted_residual_forward.5} parent=47 // pred_fallthru
        _
      // Predicated region
      $region57: #{inverted_residual_forward.5} parent=47 // pred_check
        %p589 = pneg %p185
      $region58: #{inverted_residual_forward.5} parent=47 // pred_check_branch
        %591 = sbr.rel (%p589) target = $region60
      $region59: #{inverted_residual_forward.5} parent=47 // pred_region
        %s592 = smul.u32 %s23, 4
        %s593 = sadd.s32 %s592, %s24
        %p594 = scmp.lt.s32.totalorder %s593, 7
        %s595 = scalar_select %p594, %s593, 7
        %s596 = scalar_lea.vmem %s5, %s595
      $region60: #{inverted_residual_forward.5} parent=47 // pred_fallthru
        _
    $region48: #{inverted_residual_forward.5} parent=5 // pred_fallthru
      _
  $region6: #{inverted_residual_forward.5} parent=0 // loop_footer
    %s16 = sadd.s32 1, %s12
  $region7: #{inverted_residual_forward.5} parent=0 // loop_footer_branch
    %11 = sbr.rel target = $region3
  $region8: #{inverted_residual_forward.5} parent=0 // loop_exit
    _

// kernel: inverted_residual_forward.7
$region0: #{inverted_residual_forward.7}
  #allocation0 [shape = 'u32[]', space=smem, size = 0x4, offset = 0x4, fixed_abs, tag = 'smem constant byte address 0x4 - core index']
  #allocation1 [shape = 'u32[144,128]{1,0:T(1,128)}', space=vmem, size = 0x12000, scoped, tag = 'internal scratch']
  %s0 = inlined_call_operand.vmem [shape: bf16[2,16,16,32], index: 0, kind: input, shape index: {}]
  %s1 = inlined_call_operand.vmem [shape: f32[1,32], index: 1, kind: input, shape index: {}]
  %s2 = inlined_call_operand.vmem [shape: f32[1,32], index: 2, kind: input, shape index: {}]
  %s3 = inlined_call_operand.vmem [shape: bf16[32,8], index: 3, kind: input, shape index: {}]
  %s4 = inlined_call_operand.vmem [shape: f32[2,16,16,8], index: 4, kind: output, shape index: {0}]
  %s5 = inlined_call_operand.vmem [shape: f32[8,1,8], index: 5, kind: output, shape index: {1}]
  %s6 = inlined_call_operand.vmem [shape: f32[8,1,8], index: 6, kind: output, shape index: {2}]
  %7 = xla_tuple %s4, %s5, %s6
  %s8 = sld [smem:[#allocation0]]
  $region65: #{inverted_residual_forward.7} parent=0
    _
  %s10 = ssub.s32 1, %s8
  %s11 = scalar_select 0, %s10, %s8
  loop: start=0, step=1, limit=10
  $region2: #{inverted_residual_forward.7} parent=0 // loop_pre_header
    _
  $region3: #{inverted_residual_forward.7} parent=0 // loop_header
    %s13 = sphi 0, %s17
    %p14 = scmp.ge.s32.totalorder %s13, 10
    %s20 = sphi 0, %s32
    %s21 = sphi 0, %s28
    %s22 = sphi 0, %s20
    %s23 = sphi 0, %s21
    %s24 = sphi 0, %s22
    %s25 = sphi 0, %s23
    %s37 = sphi 0, %s39
    %s40 = sphi 0, %s37
    %s41 = sphi 0, %s40
    %s57 = sphi 0, %s41
    %s61 = sphi 0, %s61
    %s63 = sphi 0, %s61
    %s64 = sphi 0, %s63
    %s78 = sphi 0, %s64
    %s82 = sphi 0, %s82
    %s84 = sphi 0, %s82
    %s85 = sphi 0, %s84
    %s99 = sphi 0, %s85
    %s103 = sphi 0, %s103
    %s105 = sphi 0, %s103
    %s106 = sphi 0, %s105
    %s120 = sphi 0, %s106
    %s128 = sphi 0, %s130
    %s131 = sphi 0, %s128
    %s132 = sphi 0, %s131
    %s148 = sphi 0, %s132
    %s158 = sphi 0, %s160
    %s161 = sphi 0, %s158
    %s162 = sphi 0, %s161
    %s178 = sphi 0, %s162
    %s188 = sphi 0, %s190
    %s191 = sphi 0, %s188
    %s192 = sphi 0, %s191
    %s208 = sphi 0, %s192
  $region4: #{inverted_residual_forward.7} parent=0 // loop_header_branch
    %16 = sbr.rel (%p14) target = $region8
  $region5: #{inverted_residual_forward.7} parent=0 // loop_body
    %s18 = ssub.s32 %s13, 1
    %s19 = ssub.s32 %s13, 2
    %s26 = sadd.s32 1, %s21
    %p27 = scmp.ge.s32.totalorder %s26, 4
    %s28 = scalar_select %p27, 0, %s26
    %s29 = sadd.s32 1, %s20
    %s30 = scalar_select %p27, %s29, %s20
    %p31 = scmp.ge.s32.totalorder %s30, 2
    %s32 = scalar_select %p31, 0, %s30
    %s33 = ssub.s32 %s20, %s32
    %s34 = ssub.s32 %s21, %s28
    %s35 = sor.u32 %s33, %s34
    %p36 = scmp.eq.s32.totalorder %s35, 0
    %s38 = sadd.s32 %s37, 1
    %s39 = scalar_select %p36, %s37, %s38
    %p42 = pneg %p36
    %p43 = scmp.eq.s32.totalorder %s13, 7
    %p44 = por %p42, %p43
    %p45 = scmp.ne.s32.totalorder %s37, %s40
    %p46 = scmp.eq.s32.totalorder %s13, 0
    %p47 = por %p45, %p46
    %p48 = scmp.ne.s32.totalorder %s37, %s40
    %p49 = scmp.eq.s32.totalorder %s18, 7
    %p50 = por %p48, %p49
    %p51 = scmp.ne.s32.totalorder %s40, %s41
    %p52 = scmp.eq.s32.totalorder %s18, 0
    %p53 = por %p51, %p52
    %p54 = scmp.ne.s32.totalorder %s40, %s41
    %p55 = scmp.eq.s32.totalorder %s19, 7
    %p56 = por %p54, %p55
    %p58 = scmp.ne.s32.totalorder %s41, %s57
    %p59 = scmp.eq.s32.totalorder %s19, 0
    %p60 = por %p58, %p59
    %s62 = sadd.s32 %s61, 1
    %p65 = scmp.eq.s32.totalorder %s13, 7
    %p66 = scmp.ne.s32.totalorder %s61, %s63
    %p67 = scmp.eq.s32.totalorder %s13, 0
    %p68 = por %p66, %p67
    %p69 = scmp.ne.s32.totalorder %s61, %s63
    %p70 = scmp.eq.s32.totalorder %s18, 7
    %p71 = por %p69, %p70
    %p72 = scmp.ne.s32.totalorder %s63, %s64
    %p73 = scmp.eq.s32.totalorder %s18, 0
    %p74 = por %p72, %p73
    %p75 = scmp.ne.s32.totalorder %s63, %s64
    %p76 = scmp.eq.s32.totalorder %s19, 7
    %p77 = por %p75, %p76
    %p79 = scmp.ne.s32.totalorder %s64, %s78
    %p80 = scmp.eq.s32.totalorder %s19, 0
    %p81 = por %p79, %p80
    %s83 = sadd.s32 %s82, 1
    %p86 = scmp.eq.s32.totalorder %s13, 7
    %p87 = scmp.ne.s32.totalorder %s82, %s84
    %p88 = scmp.eq.s32.totalorder %s13, 0
    %p89 = por %p87, %p88
    %p90 = scmp.ne.s32.totalorder %s82, %s84
    %p91 = scmp.eq.s32.totalorder %s18, 7
    %p92 = por %p90, %p91
    %p93 = scmp.ne.s32.totalorder %s84, %s85
    %p94 = scmp.eq.s32.totalorder %s18, 0
    %p95 = por %p93, %p94
    %p96 = scmp.ne.s32.totalorder %s84, %s85
    %p97 = scmp.eq.s32.totalorder %s19, 7
    %p98 = por %p96, %p97
    %p100 = scmp.ne.s32.totalorder %s85, %s99
    %p101 = scmp.eq.s32.totalorder %s19, 0
    %p102 = por %p100, %p101
    %s104 = sadd.s32 %s103, 1
    %p107 = scmp.eq.s32.totalorder %s13, 7
    %p108 = scmp.ne.s32.totalorder %s103, %s105
    %p109 = scmp.eq.s32.totalorder %s13, 0
    %p110 = por %p108, %p109
    %p111 = scmp.ne.s32.totalorder %s103, %s105
    %p112 = scmp.eq.s32.totalorder %s18, 7
    %p113 = por %p111, %p112
    %p114 = scmp.ne.s32.totalorder %s105, %s106
    %p115 = scmp.eq.s32.totalorder %s18, 0
    %p116 = por %p114, %p115
    %p117 = scmp.ne.s32.totalorder %s105, %s106
    %p118 = scmp.eq.s32.totalorder %s19, 7
    %p119 = por %p117, %p118
    %p121 = scmp.ne.s32.totalorder %s106, %s120
    %p122 = scmp.eq.s32.totalorder %s19, 0
    %p123 = por %p121, %p122
    %s124 = ssub.s32 %s20, %s32
    %s125 = ssub.s32 %s21, %s28
    %s126 = sor.u32 %s124, %s125
    %p127 = scmp.eq.s32.totalorder %s126, 0
    %s129 = sadd.s32 %s128, 1
    %s130 = scalar_select %p127, %s128, %s129
    %p133 = pneg %p127
    %p134 = scmp.eq.s32.totalorder %s13, 7
    %p135 = por %p133, %p134
    %p136 = scmp.ne.s32.totalorder %s128, %s131
    %p137 = scmp.eq.s32.totalorder %s13, 0
    %p138 = por %p136, %p137
    %p139 = scmp.ne.s32.totalorder %s128, %s131
    %p140 = scmp.eq.s32.totalorder %s18, 7
    %p141 = por %p139, %p140
    %p142 = scmp.ne.s32.totalorder %s131, %s132
    %p143 = scmp.eq.s32.totalorder %s18, 0
    %p144 = por %p142, %p143
    %p145 = scmp.ne.s32.totalorder %s131, %s132
    %p146 = scmp.eq.s32.totalorder %s19, 7
    %p147 = por %p145, %p146
    %p149 = scmp.ne.s32.totalorder %s132, %s148
    %p150 = scmp.eq.s32.totalorder %s19, 0
    %p151 = por %p149, %p150
    %s152 = smul.u32 %s20, 4
    %s153 = sadd.s32 %s152, %s21
    %s154 = smul.u32 %s32, 4
    %s155 = sadd.s32 %s154, %s28
    %s156 = ssub.s32 %s153, %s155
    %p157 = scmp.eq.s32.totalorder %s156, 0
    %s159 = sadd.s32 %s158, 1
    %s160 = scalar_select %p157, %s158, %s159
    %p163 = pneg %p157
    %p164 = scmp.eq.s32.totalorder %s13, 7
    %p165 = por %p163, %p164
    %p166 = scmp.ne.s32.totalorder %s158, %s161
    %p167 = scmp.eq.s32.totalorder %s13, 0
    %p168 = por %p166, %p167
    %p169 = scmp.ne.s32.totalorder %s158, %s161
    %p170 = scmp.eq.s32.totalorder %s18, 7
    %p171 = por %p169, %p170
    %p172 = scmp.ne.s32.totalorder %s161, %s162
    %p173 = scmp.eq.s32.totalorder %s18, 0
    %p174 = por %p172, %p173
    %p175 = scmp.ne.s32.totalorder %s161, %s162
    %p176 = scmp.eq.s32.totalorder %s19, 7
    %p177 = por %p175, %p176
    %p179 = scmp.ne.s32.totalorder %s162, %s178
    %p180 = scmp.eq.s32.totalorder %s19, 0
    %p181 = por %p179, %p180
    %s182 = smul.u32 %s20, 4
    %s183 = sadd.s32 %s182, %s21
    %s184 = smul.u32 %s32, 4
    %s185 = sadd.s32 %s184, %s28
    %s186 = ssub.s32 %s183, %s185
    %p187 = scmp.eq.s32.totalorder %s186, 0
    %s189 = sadd.s32 %s188, 1
    %s190 = scalar_select %p187, %s188, %s189
    %p193 = pneg %p187
    %p194 = scmp.eq.s32.totalorder %s13, 7
    %p195 = por %p193, %p194
    %p196 = scmp.ne.s32.totalorder %s188, %s191
    %p197 = scmp.eq.s32.totalorder %s13, 0
    %p198 = por %p196, %p197
    %p199 = scmp.ne.s32.totalorder %s188, %s191
    %p200 = scmp.eq.s32.totalorder %s18, 7
    %p201 = por %p199, %p200
    %p202 = scmp.ne.s32.totalorder %s191, %s192
    %p203 = scmp.eq.s32.totalorder %s18, 0
    %p204 = por %p202, %p203
    %p205 = scmp.ne.s32.totalorder %s191, %s192
    %p206 = scmp.eq.s32.totalorder %s19, 7
    %p207 = por %p205, %p206
    %p209 = scmp.ne.s32.totalorder %s192, %s208
    %p210 = scmp.eq.s32.totalorder %s19, 0
    %p211 = por %p209, %p210
    %p212 = scmp.le.s32.totalorder 1, %s13
    %p213 = scmp.lt.s32.totalorder %s13, 9
    %p214 = pnand %p212, %p213
    %p215 = pneg %p214
    // Predicated region
    $region9: #{inverted_residual_forward.7} parent=5 // pred_check
      _
    $region10: #{inverted_residual_forward.7} parent=5 // pred_check_branch
      %217 = sbr.rel (%p214) target = $region12
    $region11: #{inverted_residual_forward.7} parent=5 // pred_region
      %s218 = ssub.s32 %s13, 1
      // Predicated region
      $region13: #{inverted_residual_forward.7} parent=11 // pred_check
        %p219 = pneg %p74
      $region14: #{inverted_residual_forward.7} parent=11 // pred_check_branch
        %221 = sbr.rel (%p219) target = $region16
      $region15: #{inverted_residual_forward.7} parent=11 // pred_region
        _
      $region16: #{inverted_residual_forward.7} parent=11 // pred_fallthru
        _
      // Predicated region
      $region17: #{inverted_residual_forward.7} parent=11 // pred_check
        %p222 = pneg %p95
      $region18: #{inverted_residual_forward.7} parent=11 // pred_check_branch
        %224 = sbr.rel (%p222) target = $region20
      $region19: #{inverted_residual_forward.7} parent=11 // pred_region
        _
      $region20: #{inverted_residual_forward.7} parent=11 // pred_fallthru
        _
      // Predicated region
      $region21: #{inverted_residual_forward.7} parent=11 // pred_check
        %p225 = pneg %p116
      $region22: #{inverted_residual_forward.7} parent=11 // pred_check_branch
        %227 = sbr.rel (%p225) target = $region24
      $region23: #{inverted_residual_forward.7} parent=11 // pred_region
        _
      $region24: #{inverted_residual_forward.7} parent=11 // pred_fallthru
        _
    $region12: #{inverted_residual_forward.7} parent=5 // pred_fallthru
      _
    %p228 = scmp.lt.s32.totalorder %s13, 8
    // Predicated region
    $region25: #{inverted_residual_forward.7} parent=5 // pred_check
      %p229 = pneg %p228
    $region26: #{inverted_residual_forward.7} parent=5 // pred_check_branch
      %231 = sbr.rel (%p229) target = $region28
    $region27: #{inverted_residual_forward.7} parent=5 // pred_region
      // Predicated region
      $region29: #{inverted_residual_forward.7} parent=27 // pred_check
        %p232 = pneg %p47
      $region30: #{inverted_residual_forward.7} parent=27 // pred_check_branch
        %234 = sbr.rel (%p232) target = $region32
      $region31: #{inverted_residual_forward.7} parent=27 // pred_region
        %s235 = smul.u32 4, %s21
        %p236 = scmp.lt.s32.totalorder %s20, 1
        %s237 = scalar_select %p236, %s20, 1
        %p238 = scmp.lt.s32.totalorder %s235, 15
        %s239 = scalar_select %p238, %s235, 15
        %s240 = smul.addr %s239, 2
        %s241 = smul.addr %s237, 32
        %s242 = sadd.s32 %s240, %s241
        %s243 = smul.addr %s242, 4
        %s244 = scalar_lea.vmem %s0, %s243
        %s245 = smul.u32 4, %s21
      $region32: #{inverted_residual_forward.7} parent=27 // pred_fallthru
        _
    $region28: #{inverted_residual_forward.7} parent=5 // pred_fallthru
      _
    %p246 = scmp.le.s32.totalorder 1, %s13
    %p247 = scmp.lt.s32.totalorder %s13, 9
    %p248 = pnand %p246, %p247
    %p249 = pneg %p248
    // Predicated region
    $region33: #{inverted_residual_forward.7} parent=5 // pred_check
      _
    $region34: #{inverted_residual_forward.7} parent=5 // pred_check_branch
      %251 = sbr.rel (%p248) target = $region36
    $region35: #{inverted_residual_forward.7} parent=5 // pred_region
      %s252 = ssub.s32 %s13, 1
      %s253 = smul.u32 4, %s23
      %p254 = scmp.lt.s32.totalorder %s22, 1
      %s255 = scalar_select %p254, %s22, 1
      %p256 = scmp.lt.s32.totalorder %s253, 15
      %s257 = scalar_select %p256, %s253, 15
      %s258 = smul.addr %s257, 2
      %s259 = smul.addr %s255, 32
      %s260 = sadd.s32 %s258, %s259
      %s261 = smul.addr %s260, 4
      %s262 = scalar_lea.vmem %s0, %s261
      %p263 = pneg %p53
      %p264 = pneg %p50
      %p265 = pneg %p74
      %p266 = pneg %p71
      %p267 = pneg %p95
      %p268 = pneg %p92
      %p269 = pneg %p116
      %p270 = pneg %p113
      %p271 = pneg %p144
      %p272 = pneg %p141
      %s273 = smul.u32 4, %s23
      %p274 = scmp.lt.s32.totalorder %s22, 1
      %s275 = scalar_select %p274, %s22, 1
      %p276 = scmp.lt.s32.totalorder %s273, 15
      %s277 = scalar_select %p276, %s273, 15
      %s278 = smul.addr %s277, 2
      %s279 = smul.addr %s275, 32
      %s280 = sadd.s32 %s278, %s279
      %s281 = smul.addr %s280, 8
      %s282 = scalar_lea.vmem %s4, %s281
      %p283 = pneg %p174
      %p284 = pneg %p171
      %s285 = smul.u32 %s22, 4
      %s286 = sadd.s32 %s285, %s23
      %p287 = scmp.lt.s32.totalorder %s286, 7
      %s288 = scalar_select %p287, %s286, 7
      %s289 = scalar_lea.vmem %s5, %s288
      %p290 = pneg %p204
      %p291 = pneg %p201
      %s292 = smul.u32 %s22, 4
      %s293 = sadd.s32 %s292, %s23
      %p294 = scmp.lt.s32.totalorder %s293, 7
      %s295 = scalar_select %p294, %s293, 7
      %s296 = scalar_lea.vmem %s6, %s295
      %s297 = smul.u32 4, %s23
      %p298 = scmp.lt.s32.totalorder %s22, 1
      %s299 = scalar_select %p298, %s22, 1
      %p300 = scmp.lt.s32.totalorder %s297, 15
      %s301 = scalar_select %p300, %s297, 15
      %s302 = smul.addr %s301, 2
      %s303 = smul.addr %s299, 32
      %s304 = sadd.s32 %s302, %s303
      %s305 = smul.addr %s304, 4
      %s306 = scalar_lea.vmem %s0, %s305
      %s307 = smul.u32 4, %s23
      %s308 = smul.u32 4, %s23
      %p309 = scmp.lt.s32.totalorder %s22, 1
      %s310 = scalar_select %p309, %s22, 1
      %p311 = scmp.lt.s32.totalorder %s308, 15
      %s312 = scalar_select %p311, %s308, 15
      %s313 = smul.addr %s312, 2
      %s314 = smul.addr %s310, 32
      %s315 = sadd.s32 %s313, %s314
      %s316 = smul.addr %s315, 8
      %s317 = scalar_lea.vmem %s4, %s316
      %s318 = smul.u32 4, %s23
      %s319 = smul.u32 %s22, 4
      %s320 = sadd.s32 %s319, %s23
      %p321 = scmp.lt.s32.totalorder %s320, 7
      %s322 = scalar_select %p321, %s320, 7
      %s323 = scalar_lea.vmem %s5, %s322
      %s324 = smul.u32 %s22, 4
      %s325 = sadd.s32 %s324, %s23
      %s326 = smul.u32 %s22, 4
      %s327 = sadd.s32 %s326, %s23
      %p328 = scmp.lt.s32.totalorder %s327, 7
      %s329 = scalar_select %p328, %s327, 7
      %s330 = scalar_lea.vmem %s6, %s329
      %s331 = smul.u32 %s22, 4
      %s332 = sadd.s32 %s331, %s23
      %v334 = vld [vmem:[%s306] sm:$0xf]
      %v335 = vld [vmem:[%s306 + $0x4] sm:$0xf]
      %v336 = vld [vmem:[%s306 + $0x8] sm:$0xf]
      %v337 = vld [vmem:[%s306 + $0xc] sm:$0xf]
      %v338 = vld [vmem:[%s306 + $0x10] sm:$0xf]
      %v339 = vld [vmem:[%s306 + $0x14] sm:$0xf]
      %v340 = vld [vmem:[%s306 + $0x18] sm:$0xf]
      %v341 = vld [vmem:[%s306 + $0x1c] sm:$0xf]
      %v342 = vunpack.c.l.bf16 %v334
      %v343 = vunpack.c.l.bf16 %v335
      %v344 = vunpack.c.l.bf16 %v336
      %v345 = vunpack.c.l.bf16 %v337
      %v346 = vunpack.c.l.bf16 %v338
      %v347 = vunpack.c.l.bf16 %v339
      %v348 = vunpack.c.l.bf16 %v340
      %v349 = vunpack.c.l.bf16 %v341
      %v350 = vld [vmem:[%s1] sm:$0x1]
      %v352 = vlaneseq
      %v353 = vshrl.u32 %v352, 7
      %v354 = vsub.s32 0, %v353
      %v355 = vrot.slane %v350, %v354
      %v357 = vmul.f32 %v342, %v355
      %v358 = vmul.f32 %v343, %v355
      %v359 = vmul.f32 %v344, %v355
      %v360 = vmul.f32 %v345, %v355
      %v361 = vmul.f32 %v346, %v355
      %v362 = vmul.f32 %v347, %v355
      %v363 = vmul.f32 %v348, %v355
      %v364 = vmul.f32 %v349, %v355
      %v365 = vld [vmem:[%s2] sm:$0x1]
      %v367 = vlaneseq
      %v368 = vshrl.u32 %v367, 7
      %v369 = vsub.s32 0, %v368
      %v370 = vrot.slane %v365, %v369
      %v372 = vadd.f32 %v357, %v370
      %v373 = vadd.f32 %v358, %v370
      %v374 = vadd.f32 %v359, %v370
      %v375 = vadd.f32 %v360, %v370
      %v376 = vadd.f32 %v361, %v370
      %v377 = vadd.f32 %v362, %v370
      %v378 = vadd.f32 %v363, %v370
      %v379 = vadd.f32 %v364, %v370
      %v380 = vxor.u32 %v372, 2147483648
      %v381 = vxor.u32 %v373, 2147483648
      %v382 = vxor.u32 %v374, 2147483648
      %v383 = vxor.u32 %v375, 2147483648
      %v384 = vxor.u32 %v376, 2147483648
      %v385 = vxor.u32 %v377, 2147483648
      %v386 = vxor.u32 %v378, 2147483648
      %v387 = vxor.u32 %v379, 2147483648
      %v388 = vmul.f32 %v380, 1.442695
      %v389 = vpow.pop %v388
      %v390 = vmul.f32 %v381, 1.442695
      %v391 = vpow.pop %v390
      %v392 = vmul.f32 %v382, 1.442695
      %v393 = vpow.pop %v392
      %v394 = vmul.f32 %v383, 1.442695
      %v395 = vpow.pop %v394
      %v396 = vmul.f32 %v384, 1.442695
      %v397 = vpow.pop %v396
      %v398 = vmul.f32 %v385, 1.442695
      %v399 = vpow.pop %v398
      %v400 = vmul.f32 %v386, 1.442695
      %v401 = vpow.pop %v400
      %v402 = vmul.f32 %v387, 1.442695
      %v403 = vpow.pop %v402
      %v404 = vadd.f32 %v389, 1.0
      %v405 = vadd.f32 %v391, 1.0
      %v406 = vadd.f32 %v393, 1.0
      %v407 = vadd.f32 %v395, 1.0
      %v408 = vadd.f32 %v397, 1.0
      %v409 = vadd.f32 %v399, 1.0
      %v410 = vadd.f32 %v401, 1.0
      %v411 = vadd.f32 %v403, 1.0
      %v412 = vrcp.pop %v404
      %v413 = vmul.f32 1.0, %v412
      %v414 = vrcp.pop %v405
      %v415 = vmul.f32 1.0, %v414
      %v416 = vrcp.pop %v406
      %v417 = vmul.f32 1.0, %v416
      %v418 = vrcp.pop %v407
      %v419 = vmul.f32 1.0, %v418
      %v420 = vrcp.pop %v408
      %v421 = vmul.f32 1.0, %v420
      %v422 = vrcp.pop %v409
      %v423 = vmul.f32 1.0, %v422
      %v424 = vrcp.pop %v410
      %v425 = vmul.f32 1.0, %v424
      %v426 = vrcp.pop %v411
      %v427 = vmul.f32 1.0, %v426
      %v428 = vmul.f32 %v372, %v413
      %v429 = vmul.f32 %v373, %v415
      %v430 = vmul.f32 %v374, %v417
      %v431 = vmul.f32 %v375, %v419
      %v432 = vmul.f32 %v376, %v421
      %v433 = vmul.f32 %v377, %v423
      %v434 = vmul.f32 %v378, %v425
      %v435 = vmul.f32 %v379, %v427
      %v436 = vpack.c.bf16 %v429, %v428
      %v437 = vpack.c.bf16 %v431, %v430
      %v438 = vpack.c.bf16 %v433, %v432
      %v439 = vpack.c.bf16 %v435, %v434
      %v440 = vld [vmem:[%s3] sm:$0xf]
      %v441 = vld [vmem:[%s3 + $0x4] sm:$0xf]
      %v442 = vld [vmem:[%s3 + $0x8] sm:$0xf]
      %v443 = vld [vmem:[%s3 + $0xc] sm:$0xf]
      %v448 = vunpack.c.l.b16 %v440
      %v449 = vunpack.c.l.b16 %v441
      %v450 = vunpack.c.l.b16 %v442
      %v451 = vunpack.c.l.b16 %v443
      %v452 = vpack.c.b16 %v449, %v448
      %v453 = vpack.c.b16 %v451, %v450
      %vm456 = vcmask 261120
      %v458 = vsel %vm456, %v436, 0
      %v461 = vsel %vm456, %v437, 0
      %v464 = vsel %vm456, %v438, 0
      %v467 = vsel %vm456, %v439, 0
      %469 = vmatprep.subr.bf16.mxu0 0
      %470 = vmatpush1.bf16.msra.mxu0 %v452
      %471 = vmatprep.subr.bf16.mxu0 0
      %472 = vmatpush1.bf16.msra.mxu0 %v453
      %473 = vmatprep.subr.bf16.mxu0 0
      %474 = vmatpush1.bf16.msra.mxu0 0
      %475 = vmatprep.subr.bf16.mxu0 0
      %476 = vmatpush1.bf16.msra.mxu0 0
      %477 = vmatprep.subr.bf16.mxu0 0
      %478 = vmatpush1.bf16.msra.mxu0 0
      %479 = vmatprep.subr.bf16.mxu0 0
      %480 = vmatpush1.bf16.msra.mxu0 0
      %481 = vmatprep.subr.bf16.mxu0 0
      %482 = vmatpush1.bf16.msra.mxu0 0
      %483 = vmatprep.subr.bf16.mxu0 0
      %484 = vmatpush1.bf16.msra.mxu0 0
      %485 = vmatprep.subr.bf16.mxu0 0
      %486 = vmatpush1.bf16.msra.mxu0 0
      %487 = vmatprep.subr.bf16.mxu0 0
      %488 = vmatpush1.bf16.msra.mxu0 0
      %489 = vmatprep.subr.bf16.mxu0 0
      %490 = vmatpush1.bf16.msra.mxu0 0
      %491 = vmatprep.subr.bf16.mxu0 0
      %492 = vmatpush1.bf16.msra.mxu0 0
      %493 = vmatprep.subr.bf16.mxu0 0
      %494 = vmatpush1.bf16.msra.mxu0 0
      %495 = vmatprep.subr.bf16.mxu0 0
      %496 = vmatpush1.bf16.msra.mxu0 0
      %497 = vmatprep.subr.bf16.mxu0 0
      %498 = vmatpush1.bf16.msra.mxu0 0
      %499 = vmatprep.subr.bf16.mxu0 0
      %500 = vmatpush1.bf16.msra.mxu0 0
      %501 = vmatprep.mubr.bf16.mxu0 0
      %502 = vmatmul.mubr.bf16.gmra.mrb[0].mxu0 %v458
      %v503 = vpop.f32.mrb[0].mxu0
      %v504 = vadd.f32 0.0, %v503
      %v505 = vpop.f32.mrb[0].mxu0
      %v506 = vpop.f32.mrb[0].mxu0
      %v507 = vadd.f32 0.0, %v506
      %v508 = vpop.f32.mrb[0].mxu0
      %509 = vmatprep.mubr.bf16.mxu0 0
      %510 = vmatmul.mubr.bf16.gmra.mrb[0].mxu0 %v461
      %v511 = vpop.f32.mrb[0].mxu0
      %v512 = vadd.f32 0.0, %v511
      %v513 = vpop.f32.mrb[0].mxu0
      %v514 = vpop.f32.mrb[0].mxu0
      %v515 = vadd.f32 0.0, %v514
      %v516 = vpop.f32.mrb[0].mxu0
      %517 = vmatprep.mubr.bf16.mxu0 0
      %518 = vmatmul.mubr.bf16.gmra.mrb[0].mxu0 %v464
      %v519 = vpop.f32.mrb[0].mxu0
      %v520 = vadd.f32 0.0, %v519
      %v521 = vpop.f32.mrb[0].mxu0
      %v522 = vpop.f32.mrb[0].mxu0
      %v523 = vadd.f32 0.0, %v522
      %v524 = vpop.f32.mrb[0].mxu0
      %525 = vmatprep.mubr.bf16.mxu0 0
      %526 = vmatmul.mubr.bf16.gmra.mrb[0].mxu0 %v467
      %v527 = vpop.f32.mrb[0].mxu0
      %v528 = vadd.f32 0.0, %v527
      %v529 = vpop.f32.mrb[0].mxu0
      %v530 = vpop.f32.mrb[0].mxu0
      %v531 = vadd.f32 0.0, %v530
      %v532 = vpop.f32.mrb[0].mxu0
      %533 = vdwg.mxu0
      %vm534 = vcmask 64512
      %535 = vst.msk [vmem:[%s317] sm:$0xff] %vm534, %v504
      %536 = vst.msk [vmem:[%s317 + $0x8] sm:$0xff] %vm534, %v507
      %537 = vst.msk [vmem:[%s317 + $0x10] sm:$0xff] %vm534, %v512
      %538 = vst.msk [vmem:[%s317 + $0x18] sm:$0xff] %vm534, %v515
      %539 = vst.msk [vmem:[%s317 + $0x20] sm:$0xff] %vm534, %v520
      %540 = vst.msk [vmem:[%s317 + $0x28] sm:$0xff] %vm534, %v523
      %541 = vst.msk [vmem:[%s317 + $0x30] sm:$0xff] %vm534, %v528
      %542 = vst.msk [vmem:[%s317 + $0x38] sm:$0xff] %vm534, %v531
      %v543 = vsel %vm534, %v504, 0.0
      %v544 = vsel %vm534, %v507, 0.0
      %v545 = vadd.f32 %v543, %v544
      %v546 = vsel %vm534, %v512, 0.0
      %v547 = vadd.f32 %v545, %v546
      %v548 = vsel %vm534, %v515, 0.0
      %v549 = vadd.f32 %v547, %v548
      %v550 = vsel %vm534, %v520, 0.0
      %v551 = vadd.f32 %v549, %v550
      %v552 = vsel %vm534, %v523, 0.0
      %v553 = vadd.f32 %v551, %v552
      %v554 = vsel %vm534, %v528, 0.0
      %v555 = vadd.f32 %v553, %v554
      %v556 = vsel %vm534, %v531, 0.0
      %v557 = vadd.f32 %v555, %v556
      %v558 = vrot.slane %v557, 4
      %v559 = vadd.f32 %v557, %v558
      %v560 = vrot.slane %v559, 2
      %v561 = vadd.f32 %v559, %v560
      %v562 = vrot.slane %v561, 1
      %v563 = vadd.f32 %v561, %v562
      %v564 = vmul.f32 %v563, 0.015625
      %v565 = vsub.f32 %v504, %v564
      %v566 = vsub.f32 %v507, %v564
      %v567 = vsub.f32 %v512, %v564
      %v568 = vsub.f32 %v515, %v564
      %v569 = vsub.f32 %v520, %v564
      %v570 = vsub.f32 %v523, %v564
      %v571 = vsub.f32 %v528, %v564
      %v572 = vsub.f32 %v531, %v564
      %vm573 = vcmask 57344
      %574 = vst.msk [vmem:[%s323] sm:$0x1] %vm573, %v563
      %v575 = vmul.f32 %v565, %v565
      %v576 = vmul.f32 %v566, %v566
      %v577 = vmul.f32 %v567, %v567
      %v578 = vmul.f32 %v568, %v568
      %v579 = vmul.f32 %v569, %v569
      %v580 = vmul.f32 %v570, %v570
      %v581 = vmul.f32 %v571, %v571
      %v582 = vmul.f32 %v572, %v572
      %v583 = vsel %vm534, %v575, 0.0
      %v584 = vsel %vm534, %v576, 0.0
      %v585 = vadd.f32 %v583, %v584
      %v586 = vsel %vm534, %v577, 0.0
      %v587 = vadd.f32 %v585, %v586
      %v588 = vsel %vm534, %v578, 0.0
      %v589 = vadd.f32 %v587, %v588
      %v590 = vsel %vm534, %v579, 0.0
      %v591 = vadd.f32 %v589, %v590
      %v592 = vsel %vm534, %v580, 0.0
      %v593 = vadd.f32 %v591, %v592
      %v594 = vsel %vm534, %v581, 0.0
      %v595 = vadd.f32 %v593, %v594
      %v596 = vsel %vm534, %v582, 0.0
      %v597 = vadd.f32 %v595, %v596
      %v598 = vrot.slane %v597, 4
      %v599 = vadd.f32 %v597, %v598
      %v600 = vrot.slane %v599, 2
      %v601 = vadd.f32 %v599, %v600
      %v602 = vrot.slane %v601, 1
      %v603 = vadd.f32 %v601, %v602
      %604 = vst.msk [vmem:[%s330] sm:$0x1] %vm573, %v603
      %s605 = smul.u32 4, %s23
      %p606 = scmp.lt.s32.totalorder %s22, 1
      %s607 = scalar_select %p606, %s22, 1
      %p608 = scmp.lt.s32.totalorder %s605, 15
      %s609 = scalar_select %p608, %s605, 15
      %s610 = smul.addr %s609, 2
      %s611 = smul.addr %s607, 32
      %s612 = sadd.s32 %s610, %s611
      %s613 = smul.addr %s612, 8
      %s614 = scalar_lea.vmem %s4, %s613
      %s615 = smul.u32 %s22, 4
      %s616 = sadd.s32 %s615, %s23
      %p617 = scmp.lt.s32.totalorder %s616, 7
      %s618 = scalar_select %p617, %s616, 7
      %s619 = scalar_lea.vmem %s5, %s618
      %s620 = smul.u32 %s22, 4
      %s621 = sadd.s32 %s620, %s23
      %p622 = scmp.lt.s32.totalorder %s621, 7
      %s623 = scalar_select %p622, %s621, 7
      %s624 = scalar_lea.vmem %s6, %s623
      // Predicated region
      $region37: #{inverted_residual_forward.7} parent=35 // pred_check
        %p625 = pneg %p141
      $region38: #{inverted_residual_forward.7} parent=35 // pred_check_branch
        %627 = sbr.rel (%p625) target = $region40
      $region39: #{inverted_residual_forward.7} parent=35 // pred_region
        %s628 = smul.u32 4, %s23
      $region40: #{inverted_residual_forward.7} parent=35 // pred_fallthru
        _
      // Predicated region
      $region41: #{inverted_residual_forward.7} parent=35 // pred_check
        %p629 = pneg %p171
      $region42: #{inverted_residual_forward.7} parent=35 // pred_check_branch
        %631 = sbr.rel (%p629) target = $region44
      $region43: #{inverted_residual_forward.7} parent=35 // pred_region
        %s632 = smul.u32 %s22, 4
        %s633 = sadd.s32 %s632, %s23
      $region44: #{inverted_residual_forward.7} parent=35 // pred_fallthru
        _
      // Predicated region
      $region45: #{inverted_residual_forward.7} parent=35 // pred_check
        %p634 = pneg %p201
      $region46: #{inverted_residual_forward.7} parent=35 // pred_check_branch
        %636 = sbr.rel (%p634) target = $region48
      $region47: #{inverted_residual_forward.7} parent=35 // pred_region
        %s637 = smul.u32 %s22, 4
        %s638 = sadd.s32 %s637, %s23
      $region48: #{inverted_residual_forward.7} parent=35 // pred_fallthru
        _
    $region36: #{inverted_residual_forward.7} parent=5 // pred_fallthru
      _
    %p639 = scmp.le.s32.totalorder 2, %s13
    // Predicated region
    $region49: #{inverted_residual_forward.7} parent=5 // pred_check
      %p640 = pneg %p639
    $region50: #{inverted_residual_forward.7} parent=5 // pred_check_branch
      %642 = sbr.rel (%p640) target = $region52
    $region51: #{inverted_residual_forward.7} parent=5 // pred_region
      %s643 = ssub.s32 %s13, 2
      // Predicated region
      $region53: #{inverted_residual_forward.7} parent=51 // pred_check
        %p644 = pneg %p147
      $region54: #{inverted_residual_forward.7} parent=51 // pred_check_branch
        %646 = sbr.rel (%p644) target = $region56
      $region55: #{inverted_residual_forward.7} parent=51 // pred_region
        %s647 = smul.u32 4, %s25
        %p648 = scmp.lt.s32.totalorder %s24, 1
        %s649 = scalar_select %p648, %s24, 1
        %p650 = scmp.lt.s32.totalorder %s647, 15
        %s651 = scalar_select %p650, %s647, 15
        %s652 = smul.addr %s651, 2
        %s653 = smul.addr %s649, 32
        %s654 = sadd.s32 %s652, %s653
        %s655 = smul.addr %s654, 8
        %s656 = scalar_lea.vmem %s4, %s655
      $region56: #{inverted_residual_forward.7} parent=51 // pred_fallthru
        _
      // Predicated region
      $region57: #{inverted_residual_forward.7} parent=51 // pred_check
        %p657 = pneg %p177
      $region58: #{inverted_residual_forward.7} parent=51 // pred_check_branch
        %659 = sbr.rel (%p657) target = $region60
      $region59: #{inverted_residual_forward.7} parent=51 // pred_region
        %s660 = smul.u32 %s24, 4
        %s661 = sadd.s32 %s660, %s25
        %p662 = scmp.lt.s32.totalorder %s661, 7
        %s663 = scalar_select %p662, %s661, 7
        %s664 = scalar_lea.vmem %s5, %s663
      $region60: #{inverted_residual_forward.7} parent=51 // pred_fallthru
        _
      // Predicated region
      $region61: #{inverted_residual_forward.7} parent=51 // pred_check
        %p665 = pneg %p207
      $region62: #{inverted_residual_forward.7} parent=51 // pred_check_branch
        %667 = sbr.rel (%p665) target = $region64
      $region63: #{inverted_residual_forward.7} parent=51 // pred_region
        %s668 = smul.u32 %s24, 4
        %s669 = sadd.s32 %s668, %s25
        %p670 = scmp.lt.s32.totalorder %s669, 7
        %s671 = scalar_select %p670, %s669, 7
        %s672 = scalar_lea.vmem %s6, %s671
      $region64: #{inverted_residual_forward.7} parent=51 // pred_fallthru
        _
    $region52: #{inverted_residual_forward.7} parent=5 // pred_fallthru
      _
  $region6: #{inverted_residual_forward.7} parent=0 // loop_footer
    %s17 = sadd.s32 1, %s13
  $region7: #{inverted_residual_forward.7} parent=0 // loop_footer_branch
    %12 = sbr.rel target = $region3
  $region8: #{inverted_residual_forward.7} parent=0 // loop_exit
    _

// kernel: inverted_residual_forward.4
$region0: #{inverted_residual_forward.4}
  #allocation0 [shape = 'u32[]', space=smem, size = 0x4, offset = 0x4, fixed_abs, tag = 'smem constant byte address 0x4 - core index']
  #allocation1 [shape = 'u32[144,128]{1,0:T(1,128)}', space=vmem, size = 0x12000, scoped, tag = 'internal scratch']
  %s0 = inlined_call_operand.vmem [shape: bf16[2,16,16,8], index: 0, kind: input, shape index: {}]
  %s1 = inlined_call_operand.vmem [shape: f32[8,1,8], index: 1, kind: output, shape index: {0}]
  %s2 = inlined_call_operand.vmem [shape: f32[8,1,8], index: 2, kind: output, shape index: {1}]
  %3 = xla_tuple %s1, %s2
  %s4 = sld [smem:[#allocation0]]
  $region45: #{inverted_residual_forward.4} parent=0
    _
  %s6 = ssub.s32 1, %s4
  %s7 = scalar_select 0, %s6, %s4
  loop: start=0, step=1, limit=10
  $region2: #{inverted_residual_forward.4} parent=0 // loop_pre_header
    _
  $region3: #{inverted_residual_forward.4} parent=0 // loop_header
    %s9 = sphi 0, %s13
    %p10 = scmp.ge.s32.totalorder %s9, 10
    %s16 = sphi 0, %s28
    %s17 = sphi 0, %s24
    %s18 = sphi 0, %s16
    %s19 = sphi 0, %s17
    %s20 = sphi 0, %s18
    %s21 = sphi 0, %s19
    %s33 = sphi 0, %s35
    %s36 = sphi 0, %s33
    %s37 = sphi 0, %s36
    %s53 = sphi 0, %s37
    %s63 = sphi 0, %s65
    %s66 = sphi 0, %s63
    %s67 = sphi 0, %s66
    %s83 = sphi 0, %s67
    %s93 = sphi 0, %s95
    %s96 = sphi 0, %s93
    %s97 = sphi 0, %s96
    %s113 = sphi 0, %s97
  $region4: #{inverted_residual_forward.4} parent=0 // loop_header_branch
    %12 = sbr.rel (%p10) target = $region8
  $region5: #{inverted_residual_forward.4} parent=0 // loop_body
    %s14 = ssub.s32 %s9, 1
    %s15 = ssub.s32 %s9, 2
    %s22 = sadd.s32 1, %s17
    %p23 = scmp.ge.s32.totalorder %s22, 4
    %s24 = scalar_select %p23, 0, %s22
    %s25 = sadd.s32 1, %s16
    %s26 = scalar_select %p23, %s25, %s16
    %p27 = scmp.ge.s32.totalorder %s26, 2
    %s28 = scalar_select %p27, 0, %s26
    %s29 = ssub.s32 %s16, %s28
    %s30 = ssub.s32 %s17, %s24
    %s31 = sor.u32 %s29, %s30
    %p32 = scmp.eq.s32.totalorder %s31, 0
    %s34 = sadd.s32 %s33, 1
    %s35 = scalar_select %p32, %s33, %s34
    %p38 = pneg %p32
    %p39 = scmp.eq.s32.totalorder %s9, 7
    %p40 = por %p38, %p39
    %p41 = scmp.ne.s32.totalorder %s33, %s36
    %p42 = scmp.eq.s32.totalorder %s9, 0
    %p43 = por %p41, %p42
    %p44 = scmp.ne.s32.totalorder %s33, %s36
    %p45 = scmp.eq.s32.totalorder %s14, 7
    %p46 = por %p44, %p45
    %p47 = scmp.ne.s32.totalorder %s36, %s37
    %p48 = scmp.eq.s32.totalorder %s14, 0
    %p49 = por %p47, %p48
    %p50 = scmp.ne.s32.totalorder %s36, %s37
    %p51 = scmp.eq.s32.totalorder %s15, 7
    %p52 = por %p50, %p51
    %p54 = scmp.ne.s32.totalorder %s37, %s53
    %p55 = scmp.eq.s32.totalorder %s15, 0
    %p56 = por %p54, %p55
    %s57 = smul.u32 %s16, 4
    %s58 = sadd.s32 %s57, %s17
    %s59 = smul.u32 %s28, 4
    %s60 = sadd.s32 %s59, %s24
    %s61 = ssub.s32 %s58, %s60
    %p62 = scmp.eq.s32.totalorder %s61, 0
    %s64 = sadd.s32 %s63, 1
    %s65 = scalar_select %p62, %s63, %s64
    %p68 = pneg %p62
    %p69 = scmp.eq.s32.totalorder %s9, 7
    %p70 = por %p68, %p69
    %p71 = scmp.ne.s32.totalorder %s63, %s66
    %p72 = scmp.eq.s32.totalorder %s9, 0
    %p73 = por %p71, %p72
    %p74 = scmp.ne.s32.totalorder %s63, %s66
    %p75 = scmp.eq.s32.totalorder %s14, 7
    %p76 = por %p74, %p75
    %p77 = scmp.ne.s32.totalorder %s66, %s67
    %p78 = scmp.eq.s32.totalorder %s14, 0
    %p79 = por %p77, %p78
    %p80 = scmp.ne.s32.totalorder %s66, %s67
    %p81 = scmp.eq.s32.totalorder %s15, 7
    %p82 = por %p80, %p81
    %p84 = scmp.ne.s32.totalorder %s67, %s83
    %p85 = scmp.eq.s32.totalorder %s15, 0
    %p86 = por %p84, %p85
    %s87 = smul.u32 %s16, 4
    %s88 = sadd.s32 %s87, %s17
    %s89 = smul.u32 %s28, 4
    %s90 = sadd.s32 %s89, %s24
    %s91 = ssub.s32 %s88, %s90
    %p92 = scmp.eq.s32.totalorder %s91, 0
    %s94 = sadd.s32 %s93, 1
    %s95 = scalar_select %p92, %s93, %s94
    %p98 = pneg %p92
    %p99 = scmp.eq.s32.totalorder %s9, 7
    %p100 = por %p98, %p99
    %p101 = scmp.ne.s32.totalorder %s93, %s96
    %p102 = scmp.eq.s32.totalorder %s9, 0
    %p103 = por %p101, %p102
    %p104 = scmp.ne.s32.totalorder %s93, %s96
    %p105 = scmp.eq.s32.totalorder %s14, 7
    %p106 = por %p104, %p105
    %p107 = scmp.ne.s32.totalorder %s96, %s97
    %p108 = scmp.eq.s32.totalorder %s14, 0
    %p109 = por %p107, %p108
    %p110 = scmp.ne.s32.totalorder %s96, %s97
    %p111 = scmp.eq.s32.totalorder %s15, 7
    %p112 = por %p110, %p111
    %p114 = scmp.ne.s32.totalorder %s97, %s113
    %p115 = scmp.eq.s32.totalorder %s15, 0
    %p116 = por %p114, %p115
    %p117 = scmp.le.s32.totalorder 1, %s9
    %p118 = scmp.lt.s32.totalorder %s9, 9
    %p119 = pnand %p117, %p118
    %p120 = pneg %p119
    // Predicated region
    $region9: #{inverted_residual_forward.4} parent=5 // pred_check
      _
    $region10: #{inverted_residual_forward.4} parent=5 // pred_check_branch
      %122 = sbr.rel (%p119) target = $region12
    $region11: #{inverted_residual_forward.4} parent=5 // pred_region
      %s123 = ssub.s32 %s9, 1
    $region12: #{inverted_residual_forward.4} parent=5 // pred_fallthru
      _
    %p124 = scmp.lt.s32.totalorder %s9, 8
    // Predicated region
    $region13: #{inverted_residual_forward.4} parent=5 // pred_check
      %p125 = pneg %p124
    $region14: #{inverted_residual_forward.4} parent=5 // pred_check_branch
      %127 = sbr.rel (%p125) target = $region16
    $region15: #{inverted_residual_forward.4} parent=5 // pred_region
      // Predicated region
      $region17: #{inverted_residual_forward.4} parent=15 // pred_check
        %p128 = pneg %p43
      $region18: #{inverted_residual_forward.4} parent=15 // pred_check_branch
        %130 = sbr.rel (%p128) target = $region20
      $region19: #{inverted_residual_forward.4} parent=15 // pred_region
        %s131 = smul.u32 4, %s17
        %p132 = scmp.lt.s32.totalorder %s16, 1
        %s133 = scalar_select %p132, %s16, 1
        %p134 = scmp.lt.s32.totalorder %s131, 15
        %s135 = scalar_select %p134, %s131, 15
        %s136 = smul.addr %s135, 2
        %s137 = smul.addr %s133, 32
        %s138 = sadd.s32 %s136, %s137
        %s139 = smul.addr %s138, 4
        %s140 = scalar_lea.vmem %s0, %s139
        %s141 = smul.u32 4, %s17
      $region20: #{inverted_residual_forward.4} parent=15 // pred_fallthru
        _
    $region16: #{inverted_residual_forward.4} parent=5 // pred_fallthru
      _
    %p142 = scmp.le.s32.totalorder 1, %s9
    %p143 = scmp.lt.s32.totalorder %s9, 9
    %p144 = pnand %p142, %p143
    %p145 = pneg %p144
    // Predicated region
    $region21: #{inverted_residual_forward.4} parent=5 // pred_check
      _
    $region22: #{inverted_residual_forward.4} parent=5 // pred_check_branch
      %147 = sbr.rel (%p144) target = $region24
    $region23: #{inverted_residual_forward.4} parent=5 // pred_region
      %s148 = ssub.s32 %s9, 1
      %s149 = smul.u32 4, %s19
      %p150 = scmp.lt.s32.totalorder %s18, 1
      %s151 = scalar_select %p150, %s18, 1
      %p152 = scmp.lt.s32.totalorder %s149, 15
      %s153 = scalar_select %p152, %s149, 15
      %s154 = smul.addr %s153, 2
      %s155 = smul.addr %s151, 32
      %s156 = sadd.s32 %s154, %s155
      %s157 = smul.addr %s156, 4
      %s158 = scalar_lea.vmem %s0, %s157
      %p159 = pneg %p49
      %p160 = pneg %p46
      %p161 = pneg %p79
      %p162 = pneg %p76
      %s163 = smul.u32 %s18, 4
      %s164 = sadd.s32 %s163, %s19
      %p165 = scmp.lt.s32.totalorder %s164, 7
      %s166 = scalar_select %p165, %s164, 7
      %s167 = scalar_lea.vmem %s1, %s166
      %p168 = pneg %p109
      %p169 = pneg %p106
      %s170 = smul.u32 %s18, 4
      %s171 = sadd.s32 %s170, %s19
      %p172 = scmp.lt.s32.totalorder %s171, 7
      %s173 = scalar_select %p172, %s171, 7
      %s174 = scalar_lea.vmem %s2, %s173
      %s175 = smul.u32 4, %s19
      %p176 = scmp.lt.s32.totalorder %s18, 1
      %s177 = scalar_select %p176, %s18, 1
      %p178 = scmp.lt.s32.totalorder %s175, 15
      %s179 = scalar_select %p178, %s175, 15
      %s180 = smul.addr %s179, 2
      %s181 = smul.addr %s177, 32
      %s182 = sadd.s32 %s180, %s181
      %s183 = smul.addr %s182, 4
      %s184 = scalar_lea.vmem %s0, %s183
      %s185 = smul.u32 4, %s19
      %s186 = smul.u32 %s18, 4
      %s187 = sadd.s32 %s186, %s19
      %p188 = scmp.lt.s32.totalorder %s187, 7
      %s189 = scalar_select %p188, %s187, 7
      %s190 = scalar_lea.vmem %s1, %s189
      %s191 = smul.u32 %s18, 4
      %s192 = sadd.s32 %s191, %s19
      %s193 = smul.u32 %s18, 4
      %s194 = sadd.s32 %s193, %s19
      %p195 = scmp.lt.s32.totalorder %s194, 7
      %s196 = scalar_select %p195, %s194, 7
      %s197 = scalar_lea.vmem %s2, %s196
      %s198 = smul.u32 %s18, 4
      %s199 = sadd.s32 %s198, %s19
      %v200 = vld [vmem:[%s184] sm:$0xf]
      %v201 = vld [vmem:[%s184 + $0x4] sm:$0xf]
      %v202 = vld [vmem:[%s184 + $0x8] sm:$0xf]
      %v203 = vld [vmem:[%s184 + $0xc] sm:$0xf]
      %v204 = vld [vmem:[%s184 + $0x10] sm:$0xf]
      %v205 = vld [vmem:[%s184 + $0x14] sm:$0xf]
      %v206 = vld [vmem:[%s184 + $0x18] sm:$0xf]
      %v207 = vld [vmem:[%s184 + $0x1c] sm:$0xf]
      %v208 = vunpack.c.l.bf16 %v200
      %v209 = vunpack.c.l.bf16 %v201
      %v210 = vunpack.c.l.bf16 %v202
      %v211 = vunpack.c.l.bf16 %v203
      %v212 = vunpack.c.l.bf16 %v204
      %v213 = vunpack.c.l.bf16 %v205
      %v214 = vunpack.c.l.bf16 %v206
      %v215 = vunpack.c.l.bf16 %v207
      %vm216 = vcmask 64512
      %v217 = vsel %vm216, %v208, 0.0
      %v218 = vsel %vm216, %v209, 0.0
      %v219 = vadd.f32 %v217, %v218
      %v220 = vsel %vm216, %v210, 0.0
      %v221 = vadd.f32 %v219, %v220
      %v222 = vsel %vm216, %v211, 0.0
      %v223 = vadd.f32 %v221, %v222
      %v224 = vsel %vm216, %v212, 0.0
      %v225 = vadd.f32 %v223, %v224
      %v226 = vsel %vm216, %v213, 0.0
      %v227 = vadd.f32 %v225, %v226
      %v228 = vsel %vm216, %v214, 0.0
      %v229 = vadd.f32 %v227, %v228
      %v230 = vsel %vm216, %v215, 0.0
      %v231 = vadd.f32 %v229, %v230
      %v232 = vrot.slane %v231, 4
      %v233 = vadd.f32 %v231, %v232
      %v234 = vrot.slane %v233, 2
      %v235 = vadd.f32 %v233, %v234
      %v236 = vrot.slane %v235, 1
      %v237 = vadd.f32 %v235, %v236
      %v238 = vmul.f32 %v237, 0.015625
      %v239 = vsub.f32 %v208, %v238
      %v240 = vsub.f32 %v209, %v238
      %v241 = vsub.f32 %v210, %v238
      %v242 = vsub.f32 %v211, %v238
      %v243 = vsub.f32 %v212, %v238
      %v244 = vsub.f32 %v213, %v238
      %v245 = vsub.f32 %v214, %v238
      %v246 = vsub.f32 %v215, %v238
      %vm247 = vcmask 57344
      %248 = vst.msk [vmem:[%s190] sm:$0x1] %vm247, %v237
      %v249 = vmul.f32 %v239, %v239
      %v250 = vmul.f32 %v240, %v240
      %v251 = vmul.f32 %v241, %v241
      %v252 = vmul.f32 %v242, %v242
      %v253 = vmul.f32 %v243, %v243
      %v254 = vmul.f32 %v244, %v244
      %v255 = vmul.f32 %v245, %v245
      %v256 = vmul.f32 %v246, %v246
      %v257 = vsel %vm216, %v249, 0.0
      %v258 = vsel %vm216, %v250, 0.0
      %v259 = vadd.f32 %v257, %v258
      %v260 = vsel %vm216, %v251, 0.0
      %v261 = vadd.f32 %v259, %v260
      %v262 = vsel %vm216, %v252, 0.0
      %v263 = vadd.f32 %v261, %v262
      %v264 = vsel %vm216, %v253, 0.0
      %v265 = vadd.f32 %v263, %v264
      %v266 = vsel %vm216, %v254, 0.0
      %v267 = vadd.f32 %v265, %v266
      %v268 = vsel %vm216, %v255, 0.0
      %v269 = vadd.f32 %v267, %v268
      %v270 = vsel %vm216, %v256, 0.0
      %v271 = vadd.f32 %v269, %v270
      %v272 = vrot.slane %v271, 4
      %v273 = vadd.f32 %v271, %v272
      %v274 = vrot.slane %v273, 2
      %v275 = vadd.f32 %v273, %v274
      %v276 = vrot.slane %v275, 1
      %v277 = vadd.f32 %v275, %v276
      %278 = vst.msk [vmem:[%s197] sm:$0x1] %vm247, %v277
      %s279 = smul.u32 %s18, 4
      %s280 = sadd.s32 %s279, %s19
      %p281 = scmp.lt.s32.totalorder %s280, 7
      %s282 = scalar_select %p281, %s280, 7
      %s283 = scalar_lea.vmem %s1, %s282
      %s284 = smul.u32 %s18, 4
      %s285 = sadd.s32 %s284, %s19
      %p286 = scmp.lt.s32.totalorder %s285, 7
      %s287 = scalar_select %p286, %s285, 7
      %s288 = scalar_lea.vmem %s2, %s287
      // Predicated region
      $region25: #{inverted_residual_forward.4} parent=23 // pred_check
        %p289 = pneg %p76
      $region26: #{inverted_residual_forward.4} parent=23 // pred_check_branch
        %291 = sbr.rel (%p289) target = $region28
      $region27: #{inverted_residual_forward.4} parent=23 // pred_region
        %s292 = smul.u32 %s18, 4
        %s293 = sadd.s32 %s292, %s19
      $region28: #{inverted_residual_forward.4} parent=23 // pred_fallthru
        _
      // Predicated region
      $region29: #{inverted_residual_forward.4} parent=23 // pred_check
        %p294 = pneg %p106
      $region30: #{inverted_residual_forward.4} parent=23 // pred_check_branch
        %296 = sbr.rel (%p294) target = $region32
      $region31: #{inverted_residual_forward.4} parent=23 // pred_region
        %s297 = smul.u32 %s18, 4
        %s298 = sadd.s32 %s297, %s19
      $region32: #{inverted_residual_forward.4} parent=23 // pred_fallthru
        _
    $region24: #{inverted_residual_forward.4} parent=5 // pred_fallthru
      _
    %p299 = scmp.le.s32.totalorder 2, %s9
    // Predicated region
    $region33: #{inverted_residual_forward.4} parent=5 // pred_check
      %p300 = pneg %p299
    $region34: #{inverted_residual_forward.4} parent=5 // pred_check_branch
      %302 = sbr.rel (%p300) target = $region36
    $region35: #{inverted_residual_forward.4} parent=5 // pred_region
      %s303 = ssub.s32 %s9, 2
      // Predicated region
      $region37: #{inverted_residual_forward.4} parent=35 // pred_check
        %p304 = pneg %p82
      $region38: #{inverted_residual_forward.4} parent=35 // pred_check_branch
        %306 = sbr.rel (%p304) target = $region40
      $region39: #{inverted_residual_forward.4} parent=35 // pred_region
        %s307 = smul.u32 %s20, 4
        %s308 = sadd.s32 %s307, %s21
        %p309 = scmp.lt.s32.totalorder %s308, 7
        %s310 = scalar_select %p309, %s308, 7
        %s311 = scalar_lea.vmem %s1, %s310
      $region40: #{inverted_residual_forward.4} parent=35 // pred_fallthru
        _
      // Predicated region
      $region41: #{inverted_residual_forward.4} parent=35 // pred_check
        %p312 = pneg %p112
      $region42: #{inverted_residual_forward.4} parent=35 // pred_check_branch
        %314 = sbr.rel (%p312) target = $region44
      $region43: #{inverted_residual_forward.4} parent=35 // pred_region
        %s315 = smul.u32 %s20, 4
        %s316 = sadd.s32 %s315, %s21
        %p317 = scmp.lt.s32.totalorder %s316, 7
        %s318 = scalar_select %p317, %s316, 7
        %s319 = scalar_lea.vmem %s2, %s318
      $region44: #{inverted_residual_forward.4} parent=35 // pred_fallthru
        _
    $region36: #{inverted_residual_forward.4} parent=5 // pred_fallthru
      _
  $region6: #{inverted_residual_forward.4} parent=0 // loop_footer
    %s13 = sadd.s32 1, %s9
  $region7: #{inverted_residual_forward.4} parent=0 // loop_footer_branch
    %8 = sbr.rel target = $region3
  $region8: #{inverted_residual_forward.4} parent=0 // loop_exit
    _

// kernel: inverted_residual_forward.6
$region0: #{inverted_residual_forward.6}
  #allocation0 [shape = 'u32[]', space=smem, size = 0x4, offset = 0x4, fixed_abs, tag = 'smem constant byte address 0x4 - core index']
  #allocation1 [shape = 'u32[144,128]{1,0:T(1,128)}', space=vmem, size = 0x12000, scoped, tag = 'internal scratch']
  #allocation2 [shape = 'f32[1,6,16,32]{3,2,1,0:T(8,128)}', space=vmem, size = 0xc000, scoped, tag = 'scratch operand']
  %s0 = inlined_call_operand.vmem [shape: bf16[2,16,16,32], index: 0, kind: input, shape index: {}, may-alias: {0,1,2}]
  %s1 = inlined_call_operand.vmem [shape: bf16[2,16,16,32], index: 1, kind: input, shape index: {}, may-alias: {0,1,2}]
  %s2 = inlined_call_operand.vmem [shape: bf16[2,16,16,32], index: 2, kind: input, shape index: {}, may-alias: {0,1,2}]
  %s3 = inlined_call_operand.vmem [shape: f32[1,32], index: 3, kind: input, shape index: {}]
  %s4 = inlined_call_operand.vmem [shape: f32[1,32], index: 4, kind: input, shape index: {}]
  %s5 = inlined_call_operand.vmem [shape: f32[9,32], index: 5, kind: input, shape index: {}]
  %s6 = inlined_call_operand.vmem [shape: bf16[2,16,16,32], index: 6, kind: output, shape index: {0}]
  %s7 = inlined_call_operand.vmem [shape: f32[8,1,32], index: 7, kind: output, shape index: {1}]
  %s8 = inlined_call_operand.vmem [shape: f32[8,1,32], index: 8, kind: output, shape index: {2}]
  %9 = xla_tuple %s6, %s7, %s8
  %s10 = sld [smem:[#allocation0]]
  $region73: #{inverted_residual_forward.6} parent=0
    _
  %s12 = ssub.s32 1, %s10
  %s13 = scalar_select 0, %s12, %s10
  loop: start=0, step=1, limit=10
  $region2: #{inverted_residual_forward.6} parent=0 // loop_pre_header
    _
  $region3: #{inverted_residual_forward.6} parent=0 // loop_header
    %s15 = sphi 0, %s19
    %p16 = scmp.ge.s32.totalorder %s15, 10
    %s22 = sphi 0, %s34
    %s23 = sphi 0, %s30
    %s24 = sphi 0, %s22
    %s25 = sphi 0, %s23
    %s26 = sphi 0, %s24
    %s27 = sphi 0, %s25
    %s39 = sphi 0, %s41
    %s42 = sphi 0, %s39
    %s43 = sphi 0, %s42
    %s59 = sphi 0, %s43
    %s75 = sphi 0, %s77
    %s78 = sphi 0, %s75
    %s79 = sphi 0, %s78
    %s95 = sphi 0, %s79
    %s111 = sphi 0, %s113
    %s114 = sphi 0, %s111
    %s115 = sphi 0, %s114
    %s131 = sphi 0, %s115
    %s135 = sphi 0, %s135
    %s137 = sphi 0, %s135
    %s138 = sphi 0, %s137
    %s152 = sphi 0, %s138
    %s156 = sphi 0, %s156
    %s158 = sphi 0, %s156
    %s159 = sphi 0, %s158
    %s173 = sphi 0, %s159
    %s177 = sphi 0, %s177
    %s179 = sphi 0, %s177
    %s180 = sphi 0, %s179
    %s194 = sphi 0, %s180
    %s202 = sphi 0, %s204
    %s205 = sphi 0, %s202
    %s206 = sphi 0, %s205
    %s222 = sphi 0, %s206
    %s232 = sphi 0, %s234
    %s235 = sphi 0, %s232
    %s236 = sphi 0, %s235
    %s252 = sphi 0, %s236
    %s262 = sphi 0, %s264
    %s265 = sphi 0, %s262
    %s266 = sphi 0, %s265
    %s282 = sphi 0, %s266
  $region4: #{inverted_residual_forward.6} parent=0 // loop_header_branch
    %18 = sbr.rel (%p16) target = $region8
  $region5: #{inverted_residual_forward.6} parent=0 // loop_body
    %s20 = ssub.s32 %s15, 1
    %s21 = ssub.s32 %s15, 2
    %s28 = sadd.s32 1, %s23
    %p29 = scmp.ge.s32.totalorder %s28, 4
    %s30 = scalar_select %p29, 0, %s28
    %s31 = sadd.s32 1, %s22
    %s32 = scalar_select %p29, %s31, %s22
    %p33 = scmp.ge.s32.totalorder %s32, 2
    %s34 = scalar_select %p33, 0, %s32
    %s35 = ssub.s32 %s22, %s34
    %s36 = ssub.s32 %s23, %s30
    %s37 = sor.u32 %s35, %s36
    %p38 = scmp.eq.s32.totalorder %s37, 0
    %s40 = sadd.s32 %s39, 1
    %s41 = scalar_select %p38, %s39, %s40
    %p44 = pneg %p38
    %p45 = scmp.eq.s32.totalorder %s15, 7
    %p46 = por %p44, %p45
    %p47 = scmp.ne.s32.totalorder %s39, %s42
    %p48 = scmp.eq.s32.totalorder %s15, 0
    %p49 = por %p47, %p48
    %p50 = scmp.ne.s32.totalorder %s39, %s42
    %p51 = scmp.eq.s32.totalorder %s20, 7
    %p52 = por %p50, %p51
    %p53 = scmp.ne.s32.totalorder %s42, %s43
    %p54 = scmp.eq.s32.totalorder %s20, 0
    %p55 = por %p53, %p54
    %p56 = scmp.ne.s32.totalorder %s42, %s43
    %p57 = scmp.eq.s32.totalorder %s21, 7
    %p58 = por %p56, %p57
    %p60 = scmp.ne.s32.totalorder %s43, %s59
    %p61 = scmp.eq.s32.totalorder %s21, 0
    %p62 = por %p60, %p61
    %s63 = smul.u32 %s23, 4
    %s64 = ssub.s32 %s63, 1
    %p65 = scmp.gt.s32.totalorder %s64, 0
    %s66 = scalar_select %p65, %s64, 0
    %s67 = smul.u32 %s30, 4
    %s68 = ssub.s32 %s67, 1
    %p69 = scmp.gt.s32.totalorder %s68, 0
    %s70 = scalar_select %p69, %s68, 0
    %s71 = ssub.s32 %s22, %s34
    %s72 = ssub.s32 %s66, %s70
    %s73 = sor.u32 %s71, %s72
    %p74 = scmp.eq.s32.totalorder %s73, 0
    %s76 = sadd.s32 %s75, 1
    %s77 = scalar_select %p74, %s75, %s76
    %p80 = pneg %p74
    %p81 = scmp.eq.s32.totalorder %s15, 7
    %p82 = por %p80, %p81
    %p83 = scmp.ne.s32.totalorder %s75, %s78
    %p84 = scmp.eq.s32.totalorder %s15, 0
    %p85 = por %p83, %p84
    %p86 = scmp.ne.s32.totalorder %s75, %s78
    %p87 = scmp.eq.s32.totalorder %s20, 7
    %p88 = por %p86, %p87
    %p89 = scmp.ne.s32.totalorder %s78, %s79
    %p90 = scmp.eq.s32.totalorder %s20, 0
    %p91 = por %p89, %p90
    %p92 = scmp.ne.s32.totalorder %s78, %s79
    %p93 = scmp.eq.s32.totalorder %s21, 7
    %p94 = por %p92, %p93
    %p96 = scmp.ne.s32.totalorder %s79, %s95
    %p97 = scmp.eq.s32.totalorder %s21, 0
    %p98 = por %p96, %p97
    %s99 = sadd.s32 %s23, 1
    %s100 = smul.u32 %s99, 4
    %p101 = scmp.lt.s32.totalorder %s100, 15
    %s102 = scalar_select %p101, %s100, 15
    %s103 = sadd.s32 %s30, 1
    %s104 = smul.u32 %s103, 4
    %p105 = scmp.lt.s32.totalorder %s104, 15
    %s106 = scalar_select %p105, %s104, 15
    %s107 = ssub.s32 %s22, %s34
    %s108 = ssub.s32 %s102, %s106
    %s109 = sor.u32 %s107, %s108
    %p110 = scmp.eq.s32.totalorder %s109, 0
    %s112 = sadd.s32 %s111, 1
    %s113 = scalar_select %p110, %s111, %s112
    %p116 = pneg %p110
    %p117 = scmp.eq.s32.totalorder %s15, 7
    %p118 = por %p116, %p117
    %p119 = scmp.ne.s32.totalorder %s111, %s114
    %p120 = scmp.eq.s32.totalorder %s15, 0
    %p121 = por %p119, %p120
    %p122 = scmp.ne.s32.totalorder %s111, %s114
    %p123 = scmp.eq.s32.totalorder %s20, 7
    %p124 = por %p122, %p123
    %p125 = scmp.ne.s32.totalorder %s114, %s115
    %p126 = scmp.eq.s32.totalorder %s20, 0
    %p127 = por %p125, %p126
    %p128 = scmp.ne.s32.totalorder %s114, %s115
    %p129 = scmp.eq.s32.totalorder %s21, 7
    %p130 = por %p128, %p129
    %p132 = scmp.ne.s32.totalorder %s115, %s131
    %p133 = scmp.eq.s32.totalorder %s21, 0
    %p134 = por %p132, %p133
    %s136 = sadd.s32 %s135, 1
    %p139 = scmp.eq.s32.totalorder %s15, 7
    %p140 = scmp.ne.s32.totalorder %s135, %s137
    %p141 = scmp.eq.s32.totalorder %s15, 0
    %p142 = por %p140, %p141
    %p143 = scmp.ne.s32.totalorder %s135, %s137
    %p144 = scmp.eq.s32.totalorder %s20, 7
    %p145 = por %p143, %p144
    %p146 = scmp.ne.s32.totalorder %s137, %s138
    %p147 = scmp.eq.s32.totalorder %s20, 0
    %p148 = por %p146, %p147
    %p149 = scmp.ne.s32.totalorder %s137, %s138
    %p150 = scmp.eq.s32.totalorder %s21, 7
    %p151 = por %p149, %p150
    %p153 = scmp.ne.s32.totalorder %s138, %s152
    %p154 = scmp.eq.s32.totalorder %s21, 0
    %p155 = por %p153, %p154
    %s157 = sadd.s32 %s156, 1
    %p160 = scmp.eq.s32.totalorder %s15, 7
    %p161 = scmp.ne.s32.totalorder %s156, %s158
    %p162 = scmp.eq.s32.totalorder %s15, 0
    %p163 = por %p161, %p162
    %p164 = scmp.ne.s32.totalorder %s156, %s158
    %p165 = scmp.eq.s32.totalorder %s20, 7
    %p166 = por %p164, %p165
    %p167 = scmp.ne.s32.totalorder %s158, %s159
    %p168 = scmp.eq.s32.totalorder %s20, 0
    %p169 = por %p167, %p168
    %p170 = scmp.ne.s32.totalorder %s158, %s159
    %p171 = scmp.eq.s32.totalorder %s21, 7
    %p172 = por %p170, %p171
    %p174 = scmp.ne.s32.totalorder %s159, %s173
    %p175 = scmp.eq.s32.totalorder %s21, 0
    %p176 = por %p174, %p175
    %s178 = sadd.s32 %s177, 1
    %p181 = scmp.eq.s32.totalorder %s15, 7
    %p182 = scmp.ne.s32.totalorder %s177, %s179
    %p183 = scmp.eq.s32.totalorder %s15, 0
    %p184 = por %p182, %p183
    %p185 = scmp.ne.s32.totalorder %s177, %s179
    %p186 = scmp.eq.s32.totalorder %s20, 7
    %p187 = por %p185, %p186
    %p188 = scmp.ne.s32.totalorder %s179, %s180
    %p189 = scmp.eq.s32.totalorder %s20, 0
    %p190 = por %p188, %p189
    %p191 = scmp.ne.s32.totalorder %s179, %s180
    %p192 = scmp.eq.s32.totalorder %s21, 7
    %p193 = por %p191, %p192
    %p195 = scmp.ne.s32.totalorder %s180, %s194
    %p196 = scmp.eq.s32.totalorder %s21, 0
    %p197 = por %p195, %p196
    %s198 = ssub.s32 %s22, %s34
    %s199 = ssub.s32 %s23, %s30
    %s200 = sor.u32 %s198, %s199
    %p201 = scmp.eq.s32.totalorder %s200, 0
    %s203 = sadd.s32 %s202, 1
    %s204 = scalar_select %p201, %s202, %s203
    %p207 = pneg %p201
    %p208 = scmp.eq.s32.totalorder %s15, 7
    %p209 = por %p207, %p208
    %p210 = scmp.ne.s32.totalorder %s202, %s205
    %p211 = scmp.eq.s32.totalorder %s15, 0
    %p212 = por %p210, %p211
    %p213 = scmp.ne.s32.totalorder %s202, %s205
    %p214 = scmp.eq.s32.totalorder %s20, 7
    %p215 = por %p213, %p214
    %p216 = scmp.ne.s32.totalorder %s205, %s206
    %p217 = scmp.eq.s32.totalorder %s20, 0
    %p218 = por %p216, %p217
    %p219 = scmp.ne.s32.totalorder %s205, %s206
    %p220 = scmp.eq.s32.totalorder %s21, 7
    %p221 = por %p219, %p220
    %p223 = scmp.ne.s32.totalorder %s206, %s222
    %p224 = scmp.eq.s32.totalorder %s21, 0
    %p225 = por %p223, %p224
    %s226 = smul.u32 %s22, 4
    %s227 = sadd.s32 %s226, %s23
    %s228 = smul.u32 %s34, 4
    %s229 = sadd.s32 %s228, %s30
    %s230 = ssub.s32 %s227, %s229
    %p231 = scmp.eq.s32.totalorder %s230, 0
    %s233 = sadd.s32 %s232, 1
    %s234 = scalar_select %p231, %s232, %s233
    %p237 = pneg %p231
    %p238 = scmp.eq.s32.totalorder %s15, 7
    %p239 = por %p237, %p238
    %p240 = scmp.ne.s32.totalorder %s232, %s235
    %p241 = scmp.eq.s32.totalorder %s15, 0
    %p242 = por %p240, %p241
    %p243 = scmp.ne.s32.totalorder %s232, %s235
    %p244 = scmp.eq.s32.totalorder %s20, 7
    %p245 = por %p243, %p244
    %p246 = scmp.ne.s32.totalorder %s235, %s236
    %p247 = scmp.eq.s32.totalorder %s20, 0
    %p248 = por %p246, %p247
    %p249 = scmp.ne.s32.totalorder %s235, %s236
    %p250 = scmp.eq.s32.totalorder %s21, 7
    %p251 = por %p249, %p250
    %p253 = scmp.ne.s32.totalorder %s236, %s252
    %p254 = scmp.eq.s32.totalorder %s21, 0
    %p255 = por %p253, %p254
    %s256 = smul.u32 %s22, 4
    %s257 = sadd.s32 %s256, %s23
    %s258 = smul.u32 %s34, 4
    %s259 = sadd.s32 %s258, %s30
    %s260 = ssub.s32 %s257, %s259
    %p261 = scmp.eq.s32.totalorder %s260, 0
    %s263 = sadd.s32 %s262, 1
    %s264 = scalar_select %p261, %s262, %s263
    %p267 = pneg %p261
    %p268 = scmp.eq.s32.totalorder %s15, 7
    %p269 = por %p267, %p268
    %p270 = scmp.ne.s32.totalorder %s262, %s265
    %p271 = scmp.eq.s32.totalorder %s15, 0
    %p272 = por %p270, %p271
    %p273 = scmp.ne.s32.totalorder %s262, %s265
    %p274 = scmp.eq.s32.totalorder %s20, 7
    %p275 = por %p273, %p274
    %p276 = scmp.ne.s32.totalorder %s265, %s266
    %p277 = scmp.eq.s32.totalorder %s20, 0
    %p278 = por %p276, %p277
    %p279 = scmp.ne.s32.totalorder %s265, %s266
    %p280 = scmp.eq.s32.totalorder %s21, 7
    %p281 = por %p279, %p280
    %p283 = scmp.ne.s32.totalorder %s266, %s282
    %p284 = scmp.eq.s32.totalorder %s21, 0
    %p285 = por %p283, %p284
    %p286 = scmp.le.s32.totalorder 1, %s15
    %p287 = scmp.lt.s32.totalorder %s15, 9
    %p288 = pnand %p286, %p287
    %p289 = pneg %p288
    // Predicated region
    $region9: #{inverted_residual_forward.6} parent=5 // pred_check
      _
    $region10: #{inverted_residual_forward.6} parent=5 // pred_check_branch
      %291 = sbr.rel (%p288) target = $region12
    $region11: #{inverted_residual_forward.6} parent=5 // pred_region
      %s292 = ssub.s32 %s15, 1
      // Predicated region
      $region13: #{inverted_residual_forward.6} parent=11 // pred_check
        %p293 = pneg %p148
      $region14: #{inverted_residual_forward.6} parent=11 // pred_check_branch
        %295 = sbr.rel (%p293) target = $region16
      $region15: #{inverted_residual_forward.6} parent=11 // pred_region
        _
      $region16: #{inverted_residual_forward.6} parent=11 // pred_fallthru
        _
      // Predicated region
      $region17: #{inverted_residual_forward.6} parent=11 // pred_check
        %p296 = pneg %p169
      $region18: #{inverted_residual_forward.6} parent=11 // pred_check_branch
        %298 = sbr.rel (%p296) target = $region20
      $region19: #{inverted_residual_forward.6} parent=11 // pred_region
        _
      $region20: #{inverted_residual_forward.6} parent=11 // pred_fallthru
        _
      // Predicated region
      $region21: #{inverted_residual_forward.6} parent=11 // pred_check
        %p299 = pneg %p190
      $region22: #{inverted_residual_forward.6} parent=11 // pred_check_branch
        %301 = sbr.rel (%p299) target = $region24
      $region23: #{inverted_residual_forward.6} parent=11 // pred_region
        _
      $region24: #{inverted_residual_forward.6} parent=11 // pred_fallthru
        _
    $region12: #{inverted_residual_forward.6} parent=5 // pred_fallthru
      _
    %p302 = scmp.lt.s32.totalorder %s15, 8
    // Predicated region
    $region25: #{inverted_residual_forward.6} parent=5 // pred_check
      %p303 = pneg %p302
    $region26: #{inverted_residual_forward.6} parent=5 // pred_check_branch
      %305 = sbr.rel (%p303) target = $region28
    $region27: #{inverted_residual_forward.6} parent=5 // pred_region
      // Predicated region
      $region29: #{inverted_residual_forward.6} parent=27 // pred_check
        %p306 = pneg %p49
      $region30: #{inverted_residual_forward.6} parent=27 // pred_check_branch
        %308 = sbr.rel (%p306) target = $region32
      $region31: #{inverted_residual_forward.6} parent=27 // pred_region
        %s309 = smul.u32 4, %s23
        %p310 = scmp.lt.s32.totalorder %s22, 1
        %s311 = scalar_select %p310, %s22, 1
        %p312 = scmp.lt.s32.totalorder %s309, 15
        %s313 = scalar_select %p312, %s309, 15
        %s314 = smul.addr %s313, 2
        %s315 = smul.addr %s311, 32
        %s316 = sadd.s32 %s314, %s315
        %s317 = smul.addr %s316, 4
        %s318 = scalar_lea.vmem %s0, %s317
        %s319 = smul.u32 4, %s23
      $region32: #{inverted_residual_forward.6} parent=27 // pred_fallthru
        _
      // Predicated region
      $region33: #{inverted_residual_forward.6} parent=27 // pred_check
        %p320 = pneg %p85
      $region34: #{inverted_residual_forward.6} parent=27 // pred_check_branch
        %322 = sbr.rel (%p320) target = $region36
      $region35: #{inverted_residual_forward.6} parent=27 // pred_region
        %s323 = smul.u32 %s23, 4
        %s324 = ssub.s32 %s323, 1
        %p325 = scmp.gt.s32.totalorder %s324, 0
        %s326 = scalar_select %p325, %s324, 0
        %p327 = scmp.lt.s32.totalorder %s22, 1
        %s328 = scalar_select %p327, %s22, 1
        %p329 = scmp.lt.s32.totalorder %s326, 15
        %s330 = scalar_select %p329, %s326, 15
        %s331 = smul.addr %s330, 2
        %s332 = smul.addr %s328, 32
        %s333 = sadd.s32 %s331, %s332
        %s334 = smul.addr %s333, 4
        %s335 = scalar_lea.vmem %s1, %s334
        %s336 = smul.u32 %s23, 4
        %s337 = ssub.s32 %s336, 1
        %p338 = scmp.gt.s32.totalorder %s337, 0
        %s339 = scalar_select %p338, %s337, 0
      $region36: #{inverted_residual_forward.6} parent=27 // pred_fallthru
        _
      // Predicated region
      $region37: #{inverted_residual_forward.6} parent=27 // pred_check
        %p340 = pneg %p121
      $region38: #{inverted_residual_forward.6} parent=27 // pred_check_branch
        %342 = sbr.rel (%p340) target = $region40
      $region39: #{inverted_residual_forward.6} parent=27 // pred_region
        %s343 = sadd.s32 %s23, 1
        %s344 = smul.u32 %s343, 4
        %p345 = scmp.lt.s32.totalorder %s344, 15
        %s346 = scalar_select %p345, %s344, 15
        %p347 = scmp.lt.s32.totalorder %s22, 1
        %s348 = scalar_select %p347, %s22, 1
        %p349 = scmp.lt.s32.totalorder %s346, 15
        %s350 = scalar_select %p349, %s346, 15
        %s351 = smul.addr %s350, 2
        %s352 = smul.addr %s348, 32
        %s353 = sadd.s32 %s351, %s352
        %s354 = smul.addr %s353, 4
        %s355 = scalar_lea.vmem %s2, %s354
        %s356 = sadd.s32 %s23, 1
        %s357 = smul.u32 %s356, 4
        %p358 = scmp.lt.s32.totalorder %s357, 15
        %s359 = scalar_select %p358, %s357, 15
      $region40: #{inverted_residual_forward.6} parent=27 // pred_fallthru
        _
    $region28: #{inverted_residual_forward.6} parent=5 // pred_fallthru
      _
    %p360 = scmp.le.s32.totalorder 1, %s15
    %p361 = scmp.lt.s32.totalorder %s15, 9
    %p362 = pnand %p360, %p361
    %p363 = pneg %p362
    // Predicated region
    $region41: #{inverted_residual_forward.6} parent=5 // pred_check
      _
    $region42: #{inverted_residual_forward.6} parent=5 // pred_check_branch
      %365 = sbr.rel (%p362) target = $region44
    $region43: #{inverted_residual_forward.6} parent=5 // pred_region
      %s366 = ssub.s32 %s15, 1
      %s367 = smul.u32 4, %s25
      %p368 = scmp.lt.s32.totalorder %s24, 1
      %s369 = scalar_select %p368, %s24, 1
      %p370 = scmp.lt.s32.totalorder %s367, 15
      %s371 = scalar_select %p370, %s367, 15
      %s372 = smul.addr %s371, 2
      %s373 = smul.addr %s369, 32
      %s374 = sadd.s32 %s372, %s373
      %s375 = smul.addr %s374, 4
      %s376 = scalar_lea.vmem %s0, %s375
      %p377 = pneg %p55
      %p378 = pneg %p52
      %s379 = smul.u32 %s25, 4
      %s380 = ssub.s32 %s379, 1
      %p381 = scmp.gt.s32.totalorder %s380, 0
      %s382 = scalar_select %p381, %s380, 0
      %p383 = scmp.lt.s32.totalorder %s24, 1
      %s384 = scalar_select %p383, %s24, 1
      %p385 = scmp.lt.s32.totalorder %s382, 15
      %s386 = scalar_select %p385, %s382, 15
      %s387 = smul.addr %s386, 2
      %s388 = smul.addr %s384, 32
      %s389 = sadd.s32 %s387, %s388
      %s390 = smul.addr %s389, 4
      %s391 = scalar_lea.vmem %s1, %s390
      %p392 = pneg %p91
      %p393 = pneg %p88
      %s394 = sadd.s32 %s25, 1
      %s395 = smul.u32 %s394, 4
      %p396 = scmp.lt.s32.totalorder %s395, 15
      %s397 = scalar_select %p396, %s395, 15
      %p398 = scmp.lt.s32.totalorder %s24, 1
      %s399 = scalar_select %p398, %s24, 1
      %p400 = scmp.lt.s32.totalorder %s397, 15
      %s401 = scalar_select %p400, %s397, 15
      %s402 = smul.addr %s401, 2
      %s403 = smul.addr %s399, 32
      %s404 = sadd.s32 %s402, %s403
      %s405 = smul.addr %s404, 4
      %s406 = scalar_lea.vmem %s2, %s405
      %p407 = pneg %p127
      %p408 = pneg %p124
      %p409 = pneg %p148
      %p410 = pneg %p145
      %p411 = pneg %p169
      %p412 = pneg %p166
      %p413 = pneg %p190
      %p414 = pneg %p187
      %p415 = pneg %p218
      %p416 = pneg %p215
      %s417 = smul.u32 4, %s25
      %p418 = scmp.lt.s32.totalorder %s24, 1
      %s419 = scalar_select %p418, %s24, 1
      %p420 = scmp.lt.s32.totalorder %s417, 15
      %s421 = scalar_select %p420, %s417, 15
      %s422 = smul.addr %s421, 2
      %s423 = smul.addr %s419, 32
      %s424 = sadd.s32 %s422, %s423
      %s425 = smul.addr %s424, 4
      %s426 = scalar_lea.vmem %s6, %s425
      %p427 = pneg %p248
      %p428 = pneg %p245
      %s429 = smul.u32 %s24, 4
      %s430 = sadd.s32 %s429, %s25
      %p431 = scmp.lt.s32.totalorder %s430, 7
      %s432 = scalar_select %p431, %s430, 7
      %s433 = scalar_lea.vmem %s7, %s432
      %p434 = pneg %p278
      %p435 = pneg %p275
      %s436 = smul.u32 %s24, 4
      %s437 = sadd.s32 %s436, %s25
      %p438 = scmp.lt.s32.totalorder %s437, 7
      %s439 = scalar_select %p438, %s437, 7
      %s440 = scalar_lea.vmem %s8, %s439
      %s441 = smul.u32 4, %s25
      %p442 = scmp.lt.s32.totalorder %s24, 1
      %s443 = scalar_select %p442, %s24, 1
      %p444 = scmp.lt.s32.totalorder %s441, 15
      %s445 = scalar_select %p444, %s441, 15
      %s446 = smul.addr %s445, 2
      %s447 = smul.addr %s443, 32
      %s448 = sadd.s32 %s446, %s447
      %s449 = smul.addr %s448, 4
      %s450 = scalar_lea.vmem %s0, %s449
      %s451 = smul.u32 4, %s25
      %s452 = smul.u32 %s25, 4
      %s453 = ssub.s32 %s452, 1
      %p454 = scmp.gt.s32.totalorder %s453, 0
      %s455 = scalar_select %p454, %s453, 0
      %p456 = scmp.lt.s32.totalorder %s24, 1
      %s457 = scalar_select %p456, %s24, 1
      %p458 = scmp.lt.s32.totalorder %s455, 15
      %s459 = scalar_select %p458, %s455, 15
      %s460 = smul.addr %s459, 2
      %s461 = smul.addr %s457, 32
      %s462 = sadd.s32 %s460, %s461
      %s463 = smul.addr %s462, 4
      %s464 = scalar_lea.vmem %s1, %s463
      %s465 = smul.u32 %s25, 4
      %s466 = ssub.s32 %s465, 1
      %p467 = scmp.gt.s32.totalorder %s466, 0
      %s468 = scalar_select %p467, %s466, 0
      %s469 = sadd.s32 %s25, 1
      %s470 = smul.u32 %s469, 4
      %p471 = scmp.lt.s32.totalorder %s470, 15
      %s472 = scalar_select %p471, %s470, 15
      %p473 = scmp.lt.s32.totalorder %s24, 1
      %s474 = scalar_select %p473, %s24, 1
      %p475 = scmp.lt.s32.totalorder %s472, 15
      %s476 = scalar_select %p475, %s472, 15
      %s477 = smul.addr %s476, 2
      %s478 = smul.addr %s474, 32
      %s479 = sadd.s32 %s477, %s478
      %s480 = smul.addr %s479, 4
      %s481 = scalar_lea.vmem %s2, %s480
      %s482 = sadd.s32 %s25, 1
      %s483 = smul.u32 %s482, 4
      %p484 = scmp.lt.s32.totalorder %s483, 15
      %s485 = scalar_select %p484, %s483, 15
      %s486 = smul.u32 4, %s25
      %p487 = scmp.lt.s32.totalorder %s24, 1
      %s488 = scalar_select %p487, %s24, 1
      %p489 = scmp.lt.s32.totalorder %s486, 15
      %s490 = scalar_select %p489, %s486, 15
      %s491 = smul.addr %s490, 2
      %s492 = smul.addr %s488, 32
      %s493 = sadd.s32 %s491, %s492
      %s494 = smul.addr %s493, 4
      %s495 = scalar_lea.vmem %s6, %s494
      %s496 = smul.u32 4, %s25
      %s497 = smul.u32 %s24, 4
      %s498 = sadd.s32 %s497, %s25
      %p499 = scmp.lt.s32.totalorder %s498, 7
      %s500 = scalar_select %p499, %s498, 7
      %s501 = scalar_lea.vmem %s7, %s500
      %s502 = smul.u32 %s24, 4
      %s503 = sadd.s32 %s502, %s25
      %s504 = smul.u32 %s24, 4
      %s505 = sadd.s32 %s504, %s25
      %p506 = scmp.lt.s32.totalorder %s505, 7
      %s507 = scalar_select %p506, %s505, 7
      %s508 = scalar_lea.vmem %s8, %s507
      %s509 = smul.u32 %s24, 4
      %s510 = sadd.s32 %s509, %s25
      %v511 = vld [vmem:[%s3] sm:$0x1]
      %v512 = vld [vmem:[%s4] sm:$0x1]
      %v513 = vld [vmem:[%s450] sm:$0xf]
      %v514 = vld [vmem:[%s450 + $0x4] sm:$0xf]
      %v515 = vld [vmem:[%s450 + $0x8] sm:$0xf]
      %v516 = vld [vmem:[%s450 + $0xc] sm:$0xf]
      %v517 = vld [vmem:[%s450 + $0x10] sm:$0xf]
      %v518 = vld [vmem:[%s450 + $0x14] sm:$0xf]
      %v519 = vld [vmem:[%s450 + $0x18] sm:$0xf]
      %v520 = vld [vmem:[%s450 + $0x1c] sm:$0xf]
      %v521 = vunpack.c.l.bf16 %v513
      %v522 = vunpack.c.l.bf16 %v514
      %v523 = vunpack.c.l.bf16 %v515
      %v524 = vunpack.c.l.bf16 %v516
      %v525 = vunpack.c.l.bf16 %v517
      %v526 = vunpack.c.l.bf16 %v518
      %v527 = vunpack.c.l.bf16 %v519
      %v528 = vunpack.c.l.bf16 %v520
      %v530 = vlaneseq
      %v531 = vshrl.u32 %v530, 7
      %v532 = vsub.s32 0, %v531
      %v533 = vrot.slane %v511, %v532
      %v535 = vmul.f32 %v521, %v533
      %v536 = vmul.f32 %v522, %v533
      %v537 = vmul.f32 %v523, %v533
      %v538 = vmul.f32 %v524, %v533
      %v539 = vmul.f32 %v525, %v533
      %v540 = vmul.f32 %v526, %v533
      %v541 = vmul.f32 %v527, %v533
      %v542 = vmul.f32 %v528, %v533
      %v544 = vlaneseq
      %v545 = vshrl.u32 %v544, 7
      %v546 = vsub.s32 0, %v545
      %v547 = vrot.slane %v512, %v546
      %v549 = vadd.f32 %v535, %v547
      %v550 = vadd.f32 %v536, %v547
      %v551 = vadd.f32 %v537, %v547
      %v552 = vadd.f32 %v538, %v547
      %v553 = vadd.f32 %v539, %v547
      %v554 = vadd.f32 %v540, %v547
      %v555 = vadd.f32 %v541, %v547
      %v556 = vadd.f32 %v542, %v547
      %v557 = vxor.u32 %v549, 2147483648
      %v558 = vxor.u32 %v550, 2147483648
      %v559 = vxor.u32 %v551, 2147483648
      %v560 = vxor.u32 %v552, 2147483648
      %v561 = vxor.u32 %v553, 2147483648
      %v562 = vxor.u32 %v554, 2147483648
      %v563 = vxor.u32 %v555, 2147483648
      %v564 = vxor.u32 %v556, 2147483648
      %v565 = vmul.f32 %v557, 1.442695
      %v566 = vpow.pop %v565
      %v567 = vmul.f32 %v558, 1.442695
      %v568 = vpow.pop %v567
      %v569 = vmul.f32 %v559, 1.442695
      %v570 = vpow.pop %v569
      %v571 = vmul.f32 %v560, 1.442695
      %v572 = vpow.pop %v571
      %v573 = vmul.f32 %v561, 1.442695
      %v574 = vpow.pop %v573
      %v575 = vmul.f32 %v562, 1.442695
      %v576 = vpow.pop %v575
      %v577 = vmul.f32 %v563, 1.442695
      %v578 = vpow.pop %v577
      %v579 = vmul.f32 %v564, 1.442695
      %v580 = vpow.pop %v579
      %v581 = vadd.f32 %v566, 1.0
      %v582 = vadd.f32 %v568, 1.0
      %v583 = vadd.f32 %v570, 1.0
      %v584 = vadd.f32 %v572, 1.0
      %v585 = vadd.f32 %v574, 1.0
      %v586 = vadd.f32 %v576, 1.0
      %v587 = vadd.f32 %v578, 1.0
      %v588 = vadd.f32 %v580, 1.0
      %v589 = vrcp.pop %v581
      %v590 = vmul.f32 1.0, %v589
      %v591 = vrcp.pop %v582
      %v592 = vmul.f32 1.0, %v591
      %v593 = vrcp.pop %v583
      %v594 = vmul.f32 1.0, %v593
      %v595 = vrcp.pop %v584
      %v596 = vmul.f32 1.0, %v595
      %v597 = vrcp.pop %v585
      %v598 = vmul.f32 1.0, %v597
      %v599 = vrcp.pop %v586
      %v600 = vmul.f32 1.0, %v599
      %v601 = vrcp.pop %v587
      %v602 = vmul.f32 1.0, %v601
      %v603 = vrcp.pop %v588
      %v604 = vmul.f32 1.0, %v603
      %v605 = vmul.f32 %v549, %v590
      %v606 = vmul.f32 %v550, %v592
      %v607 = vmul.f32 %v551, %v594
      %v608 = vmul.f32 %v552, %v596
      %v609 = vmul.f32 %v553, %v598
      %v610 = vmul.f32 %v554, %v600
      %v611 = vmul.f32 %v555, %v602
      %v612 = vmul.f32 %v556, %v604
      %v613 = vld [vmem:[%s464] sm:$0xf]
      %v614 = vld [vmem:[%s464 + $0x4] sm:$0xf]
      %v615 = vunpack.c.l.bf16 %v613
      %v616 = vunpack.c.l.bf16 %v614
      %v617 = vmul.f32 %v615, %v533
      %v618 = vmul.f32 %v616, %v533
      %v619 = vadd.f32 %v617, %v547
      %v620 = vadd.f32 %v618, %v547
      %v621 = vxor.u32 %v619, 2147483648
      %v622 = vxor.u32 %v620, 2147483648
      %v623 = vmul.f32 %v621, 1.442695
      %v624 = vpow.pop %v623
      %v625 = vmul.f32 %v622, 1.442695
      %v626 = vpow.pop %v625
      %v627 = vadd.f32 %v624, 1.0
      %v628 = vadd.f32 %v626, 1.0
      %v629 = vrcp.pop %v627
      %v630 = vmul.f32 1.0, %v629
      %v631 = vrcp.pop %v628
      %v632 = vmul.f32 1.0, %v631
      %v633 = vmul.f32 %v619, %v630
      %v634 = vmul.f32 %v620, %v632
      %v635 = vld [vmem:[%s481] sm:$0xf]
      %v636 = vld [vmem:[%s481 + $0x4] sm:$0xf]
      %v637 = vunpack.c.l.bf16 %v635
      %v638 = vunpack.c.l.bf16 %v636
      %v639 = vmul.f32 %v637, %v533
      %v640 = vmul.f32 %v638, %v533
      %v641 = vadd.f32 %v639, %v547
      %v642 = vadd.f32 %v640, %v547
      %v643 = vxor.u32 %v641, 2147483648
      %v644 = vxor.u32 %v642, 2147483648
      %v645 = vmul.f32 %v643, 1.442695
      %v646 = vpow.pop %v645
      %v647 = vmul.f32 %v644, 1.442695
      %v648 = vpow.pop %v647
      %v649 = vadd.f32 %v646, 1.0
      %v650 = vadd.f32 %v648, 1.0
      %v651 = vrcp.pop %v649
      %v652 = vmul.f32 1.0, %v651
      %v653 = vrcp.pop %v650
      %v654 = vmul.f32 1.0, %v653
      %v655 = vmul.f32 %v641, %v652
      %v656 = vmul.f32 %v642, %v654
      %p657 = scmp.gt.s32.totalorder %s25, 0
      %s658 = scalar_select %p657, 1, 0
      %v659 = vstv %s658
      %vm660 = vcmp.eq.s32.totalorder %v659, 1
      %v661 = vsel %vm660, %v633, 0.0
      %v662 = vsel %vm660, %v634, 0.0
      %p663 = scmp.lt.s32.totalorder %s25, 3
      %s664 = scalar_select %p663, 1, 0
      %v665 = vstv %s664
      %vm666 = vcmp.eq.s32.totalorder %v665, 1
      %v667 = vsel %vm666, %v655, 0.0
      %v668 = vsel %vm666, %v656, 0.0
      %vm669 = vcmask 261120
      %670 = vst.msk [vmem:[#allocation2] sm:$0xff] %vm669, %v661
      %671 = vst.msk [vmem:[#allocation2 + $0x8] sm:$0xff] %vm669, %v662
      %s672 = scalar_lea.vmem [#allocation2], 16
      %673 = vst.msk [vmem:[%s672] sm:$0xff] %vm669, %v605
      %674 = vst.msk [vmem:[%s672 + $0x8] sm:$0xff] %vm669, %v606
      %675 = vst.msk [vmem:[%s672 + $0x10] sm:$0xff] %vm669, %v607
      %676 = vst.msk [vmem:[%s672 + $0x18] sm:$0xff] %vm669, %v608
      %677 = vst.msk [vmem:[%s672 + $0x20] sm:$0xff] %vm669, %v609
      %678 = vst.msk [vmem:[%s672 + $0x28] sm:$0xff] %vm669, %v610
      %679 = vst.msk [vmem:[%s672 + $0x30] sm:$0xff] %vm669, %v611
      %680 = vst.msk [vmem:[%s672 + $0x38] sm:$0xff] %vm669, %v612
      %s681 = scalar_lea.vmem [#allocation2], 80
      %682 = vst.msk [vmem:[%s681] sm:$0xff] %vm669, %v667
      %683 = vst.msk [vmem:[%s681 + $0x8] sm:$0xff] %vm669, %v668
      %v684 = vld [vmem:[%s5] sm:$0xff]
      %v685 = vld [vmem:[%s5 + $0x8] sm:$0x1]
      %v686 = vlaneseq
      %v687 = vshrl.u32 %v686, 7
      %v688 = vadd.s32 %v687, 8
      %v689 = vadd.s32 %v687, 4294967295
      %v690 = vadd.s32 %v688, 4294967295
      %vm691 = vcmp.ge.s32.totalorder %v689, 0
      %vm692 = vcmp.ge.s32.totalorder %v690, 0
      %vm693 = vcmp.lt.s32.totalorder %v689, 16
      %vm694 = vcmp.lt.s32.totalorder %v690, 16
      %vm695 = vmand %vm691, %vm693
      %vm696 = vmand %vm692, %vm694
      %v697 = vadd.s32 %v687, 1
      %v698 = vadd.s32 %v688, 1
      %vm699 = vcmp.ge.s32.totalorder %v697, 0
      %vm700 = vcmp.ge.s32.totalorder %v698, 0
      %vm701 = vcmp.lt.s32.totalorder %v697, 16
      %vm702 = vcmp.lt.s32.totalorder %v698, 16
      %vm703 = vmand %vm699, %vm701
      %vm704 = vmand %vm700, %vm702
      %v705 = vld [vmem:[#allocation2] sm:$0xff]
      %v706 = vld [vmem:[#allocation2 + $0x8] sm:$0xff]
      %v707 = vld [vmem:[#allocation2 + $0x10] sm:$0xff]
      %v708 = vld [vmem:[#allocation2 + $0x18] sm:$0xff]
      %v709 = vld [vmem:[#allocation2 + $0x20] sm:$0xff]
      %v710 = vld [vmem:[#allocation2 + $0x28] sm:$0xff]
      %v711 = vld [vmem:[#allocation2 + $0x30] sm:$0xff]
      %v712 = vld [vmem:[#allocation2 + $0x38] sm:$0xff]
      %v713 = vrot.slane %v705, 7
      %v714 = vrot.slane %v707, 7
      %v715 = vrot.slane %v709, 7
      %v716 = vrot.slane %v711, 7
      %v717 = vrot.slane %v706, 7
      %v718 = vrot.slane %v708, 7
      %v719 = vrot.slane %v710, 7
      %v720 = vrot.slane %v712, 7
      %vm721 = vcmp.lt.s32.totalorder %v687, 1
      %v722 = vsel %vm721, %v713, %v717
      %v723 = vsel %vm721, %v714, %v718
      %v724 = vsel %vm721, %v715, %v719
      %v725 = vsel %vm721, %v716, %v720
      %v726 = vsel %vm721, %v717, %v713
      %v727 = vsel %vm721, %v718, %v714
      %v728 = vsel %vm721, %v719, %v715
      %v729 = vsel %vm721, %v720, %v716
      %v730 = vsel %vm695, 1, 0
      %v731 = vsel %vm696, 1, 0
      %vm732 = vcmp.eq.s32.totalorder %v730, 1
      %vm733 = vcmp.eq.s32.totalorder %v731, 1
      %v734 = vsel %vm732, %v726, 0.0
      %v735 = vsel %vm733, %v722, 0.0
      %v736 = vsel %vm732, %v727, 0.0
      %v737 = vsel %vm733, %v723, 0.0
      %v738 = vsel %vm732, %v728, 0.0
      %v739 = vsel %vm733, %v724, 0.0
      %v740 = vsel %vm732, %v729, 0.0
      %v741 = vsel %vm733, %v725, 0.0
      %v742 = vlaneseq
      %v743 = vshrl.u32 %v742, 7
      %v744 = vsub.s32 0, %v743
      %v745 = vrot.slane %v684, %v744
      %v746 = vmul.f32 %v734, %v745
      %v747 = vmul.f32 %v735, %v745
      %v748 = vmul.f32 %v736, %v745
      %v749 = vmul.f32 %v737, %v745
      %v750 = vmul.f32 %v738, %v745
      %v751 = vmul.f32 %v739, %v745
      %v752 = vmul.f32 %v740, %v745
      %v753 = vmul.f32 %v741, %v745
      %v754 = vadd.f32 %v746, 0.0
      %v755 = vadd.f32 %v747, 0.0
      %v756 = vadd.f32 %v748, 0.0
      %v757 = vadd.f32 %v749, 0.0
      %v758 = vadd.f32 %v750, 0.0
      %v759 = vadd.f32 %v751, 0.0
      %v760 = vadd.f32 %v752, 0.0
      %v761 = vadd.f32 %v753, 0.0
      %v762 = vlaneseq
      %v763 = vshrl.u32 %v762, 7
      %v764 = vsub.s32 1, %v763
      %v765 = vrot.slane %v684, %v764
      %v766 = vmul.f32 %v705, %v765
      %v767 = vmul.f32 %v706, %v765
      %v768 = vmul.f32 %v707, %v765
      %v769 = vmul.f32 %v708, %v765
      %v770 = vmul.f32 %v709, %v765
      %v771 = vmul.f32 %v710, %v765
      %v772 = vmul.f32 %v711, %v765
      %v773 = vmul.f32 %v712, %v765
      %v774 = vadd.f32 %v754, %v766
      %v775 = vadd.f32 %v755, %v767
      %v776 = vadd.f32 %v756, %v768
      %v777 = vadd.f32 %v757, %v769
      %v778 = vadd.f32 %v758, %v770
      %v779 = vadd.f32 %v759, %v771
      %v780 = vadd.f32 %v760, %v772
      %v781 = vadd.f32 %v761, %v773
      %v782 = vrot.slane %v705, 1
      %v783 = vrot.slane %v707, 1
      %v784 = vrot.slane %v709, 1
      %v785 = vrot.slane %v711, 1
      %v786 = vrot.slane %v706, 1
      %v787 = vrot.slane %v708, 1
      %v788 = vrot.slane %v710, 1
      %v789 = vrot.slane %v712, 1
      %vm790 = vcmp.lt.s32.totalorder %v687, 7
      %v791 = vsel %vm790, %v782, %v786
      %v792 = vsel %vm790, %v783, %v787
      %v793 = vsel %vm790, %v784, %v788
      %v794 = vsel %vm790, %v785, %v789
      %v795 = vsel %vm790, %v786, %v782
      %v796 = vsel %vm790, %v787, %v783
      %v797 = vsel %vm790, %v788, %v784
      %v798 = vsel %vm790, %v789, %v785
      %v799 = vsel %vm703, 1, 0
      %v800 = vsel %vm704, 1, 0
      %vm801 = vcmp.eq.s32.totalorder %v799, 1
      %vm802 = vcmp.eq.s32.totalorder %v800, 1
      %v803 = vsel %vm801, %v791, 0.0
      %v804 = vsel %vm802, %v795, 0.0
      %v805 = vsel %vm801, %v792, 0.0
      %v806 = vsel %vm802, %v796, 0.0
      %v807 = vsel %vm801, %v793, 0.0
      %v808 = vsel %vm802, %v797, 0.0
      %v809 = vsel %vm801, %v794, 0.0
      %v810 = vsel %vm802, %v798, 0.0
      %v811 = vlaneseq
      %v812 = vshrl.u32 %v811, 7
      %v813 = vsub.s32 2, %v812
      %v814 = vrot.slane %v684, %v813
      %v815 = vmul.f32 %v803, %v814
      %v816 = vmul.f32 %v804, %v814
      %v817 = vmul.f32 %v805, %v814
      %v818 = vmul.f32 %v806, %v814
      %v819 = vmul.f32 %v807, %v814
      %v820 = vmul.f32 %v808, %v814
      %v821 = vmul.f32 %v809, %v814
      %v822 = vmul.f32 %v810, %v814
      %v823 = vadd.f32 %v774, %v815
      %v824 = vadd.f32 %v775, %v816
      %v825 = vadd.f32 %v776, %v817
      %v826 = vadd.f32 %v777, %v818
      %v827 = vadd.f32 %v778, %v819
      %v828 = vadd.f32 %v779, %v820
      %v829 = vadd.f32 %v780, %v821
      %v830 = vadd.f32 %v781, %v822
      %v831 = vld [vmem:[%s672] sm:$0xff]
      %v832 = vld [vmem:[%s672 + $0x8] sm:$0xff]
      %v833 = vld [vmem:[%s672 + $0x10] sm:$0xff]
      %v834 = vld [vmem:[%s672 + $0x18] sm:$0xff]
      %v835 = vld [vmem:[%s672 + $0x20] sm:$0xff]
      %v836 = vld [vmem:[%s672 + $0x28] sm:$0xff]
      %v837 = vld [vmem:[%s672 + $0x30] sm:$0xff]
      %v838 = vld [vmem:[%s672 + $0x38] sm:$0xff]
      %v839 = vrot.slane %v831, 7
      %v840 = vrot.slane %v833, 7
      %v841 = vrot.slane %v835, 7
      %v842 = vrot.slane %v837, 7
      %v843 = vrot.slane %v832, 7
      %v844 = vrot.slane %v834, 7
      %v845 = vrot.slane %v836, 7
      %v846 = vrot.slane %v838, 7
      %v847 = vsel %vm721, %v839, %v843
      %v848 = vsel %vm721, %v840, %v844
      %v849 = vsel %vm721, %v841, %v845
      %v850 = vsel %vm721, %v842, %v846
      %v851 = vsel %vm721, %v843, %v839
      %v852 = vsel %vm721, %v844, %v840
      %v853 = vsel %vm721, %v845, %v841
      %v854 = vsel %vm721, %v846, %v842
      %v855 = vsel %vm732, %v851, 0.0
      %v856 = vsel %vm733, %v847, 0.0
      %v857 = vsel %vm732, %v852, 0.0
      %v858 = vsel %vm733, %v848, 0.0
      %v859 = vsel %vm732, %v853, 0.0
      %v860 = vsel %vm733, %v849, 0.0
      %v861 = vsel %vm732, %v854, 0.0
      %v862 = vsel %vm733, %v850, 0.0
      %v863 = vlaneseq
      %v864 = vshrl.u32 %v863, 7
      %v865 = vsub.s32 3, %v864
      %v866 = vrot.slane %v684, %v865
      %v867 = vmul.f32 %v855, %v866
      %v868 = vmul.f32 %v856, %v866
      %v869 = vmul.f32 %v857, %v866
      %v870 = vmul.f32 %v858, %v866
      %v871 = vmul.f32 %v859, %v866
      %v872 = vmul.f32 %v860, %v866
      %v873 = vmul.f32 %v861, %v866
      %v874 = vmul.f32 %v862, %v866
      %v875 = vadd.f32 %v823, %v867
      %v876 = vadd.f32 %v824, %v868
      %v877 = vadd.f32 %v825, %v869
      %v878 = vadd.f32 %v826, %v870
      %v879 = vadd.f32 %v827, %v871
      %v880 = vadd.f32 %v828, %v872
      %v881 = vadd.f32 %v829, %v873
      %v882 = vadd.f32 %v830, %v874
      %v883 = vlaneseq
      %v884 = vshrl.u32 %v883, 7
      %v885 = vsub.s32 4, %v884
      %v886 = vrot.slane %v684, %v885
      %v887 = vmul.f32 %v831, %v886
      %v888 = vmul.f32 %v832, %v886
      %v889 = vmul.f32 %v833, %v886
      %v890 = vmul.f32 %v834, %v886
      %v891 = vmul.f32 %v835, %v886
      %v892 = vmul.f32 %v836, %v886
      %v893 = vmul.f32 %v837, %v886
      %v894 = vmul.f32 %v838, %v886
      %v895 = vadd.f32 %v875, %v887
      %v896 = vadd.f32 %v876, %v888
      %v897 = vadd.f32 %v877, %v889
      %v898 = vadd.f32 %v878, %v890
      %v899 = vadd.f32 %v879, %v891
      %v900 = vadd.f32 %v880, %v892
      %v901 = vadd.f32 %v881, %v893
      %v902 = vadd.f32 %v882, %v894
      %v903 = vrot.slane %v831, 1
      %v904 = vrot.slane %v833, 1
      %v905 = vrot.slane %v835, 1
      %v906 = vrot.slane %v837, 1
      %v907 = vrot.slane %v832, 1
      %v908 = vrot.slane %v834, 1
      %v909 = vrot.slane %v836, 1
      %v910 = vrot.slane %v838, 1
      %v911 = vsel %vm790, %v903, %v907
      %v912 = vsel %vm790, %v904, %v908
      %v913 = vsel %vm790, %v905, %v909
      %v914 = vsel %vm790, %v906, %v910
      %v915 = vsel %vm790, %v907, %v903
      %v916 = vsel %vm790, %v908, %v904
      %v917 = vsel %vm790, %v909, %v905
      %v918 = vsel %vm790, %v910, %v906
      %v919 = vsel %vm801, %v911, 0.0
      %v920 = vsel %vm802, %v915, 0.0
      %v921 = vsel %vm801, %v912, 0.0
      %v922 = vsel %vm802, %v916, 0.0
      %v923 = vsel %vm801, %v913, 0.0
      %v924 = vsel %vm802, %v917, 0.0
      %v925 = vsel %vm801, %v914, 0.0
      %v926 = vsel %vm802, %v918, 0.0
      %v927 = vlaneseq
      %v928 = vshrl.u32 %v927, 7
      %v929 = vsub.s32 5, %v928
      %v930 = vrot.slane %v684, %v929
      %v931 = vmul.f32 %v919, %v930
      %v932 = vmul.f32 %v920, %v930
      %v933 = vmul.f32 %v921, %v930
      %v934 = vmul.f32 %v922, %v930
      %v935 = vmul.f32 %v923, %v930
      %v936 = vmul.f32 %v924, %v930
      %v937 = vmul.f32 %v925, %v930
      %v938 = vmul.f32 %v926, %v930
      %v939 = vadd.f32 %v895, %v931
      %v940 = vadd.f32 %v896, %v932
      %v941 = vadd.f32 %v897, %v933
      %v942 = vadd.f32 %v898, %v934
      %v943 = vadd.f32 %v899, %v935
      %v944 = vadd.f32 %v900, %v936
      %v945 = vadd.f32 %v901, %v937
      %v946 = vadd.f32 %v902, %v938
      %s947 = scalar_lea.vmem [#allocation2], 32
      %v948 = vld [vmem:[%s947] sm:$0xff]
      %v949 = vld [vmem:[%s947 + $0x8] sm:$0xff]
      %v950 = vld [vmem:[%s947 + $0x10] sm:$0xff]
      %v951 = vld [vmem:[%s947 + $0x18] sm:$0xff]
      %v952 = vld [vmem:[%s947 + $0x20] sm:$0xff]
      %v953 = vld [vmem:[%s947 + $0x28] sm:$0xff]
      %v954 = vld [vmem:[%s947 + $0x30] sm:$0xff]
      %v955 = vld [vmem:[%s947 + $0x38] sm:$0xff]
      %v956 = vrot.slane %v948, 7
      %v957 = vrot.slane %v950, 7
      %v958 = vrot.slane %v952, 7
      %v959 = vrot.slane %v954, 7
      %v960 = vrot.slane %v949, 7
      %v961 = vrot.slane %v951, 7
      %v962 = vrot.slane %v953, 7
      %v963 = vrot.slane %v955, 7
      %v964 = vsel %vm721, %v956, %v960
      %v965 = vsel %vm721, %v957, %v961
      %v966 = vsel %vm721, %v958, %v962
      %v967 = vsel %vm721, %v959, %v963
      %v968 = vsel %vm721, %v960, %v956
      %v969 = vsel %vm721, %v961, %v957
      %v970 = vsel %vm721, %v962, %v958
      %v971 = vsel %vm721, %v963, %v959
      %v972 = vsel %vm732, %v968, 0.0
      %v973 = vsel %vm733, %v964, 0.0
      %v974 = vsel %vm732, %v969, 0.0
      %v975 = vsel %vm733, %v965, 0.0
      %v976 = vsel %vm732, %v970, 0.0
      %v977 = vsel %vm733, %v966, 0.0
      %v978 = vsel %vm732, %v971, 0.0
      %v979 = vsel %vm733, %v967, 0.0
      %v980 = vlaneseq
      %v981 = vshrl.u32 %v980, 7
      %v982 = vsub.s32 6, %v981
      %v983 = vrot.slane %v684, %v982
      %v984 = vmul.f32 %v972, %v983
      %v985 = vmul.f32 %v973, %v983
      %v986 = vmul.f32 %v974, %v983
      %v987 = vmul.f32 %v975, %v983
      %v988 = vmul.f32 %v976, %v983
      %v989 = vmul.f32 %v977, %v983
      %v990 = vmul.f32 %v978, %v983
      %v991 = vmul.f32 %v979, %v983
      %v992 = vadd.f32 %v939, %v984
      %v993 = vadd.f32 %v940, %v985
      %v994 = vadd.f32 %v941, %v986
      %v995 = vadd.f32 %v942, %v987
      %v996 = vadd.f32 %v943, %v988
      %v997 = vadd.f32 %v944, %v989
      %v998 = vadd.f32 %v945, %v990
      %v999 = vadd.f32 %v946, %v991
      %v1000 = vlaneseq
      %v1001 = vshrl.u32 %v1000, 7
      %v1002 = vsub.s32 7, %v1001
      %v1003 = vrot.slane %v684, %v1002
      %v1004 = vmul.f32 %v948, %v1003
      %v1005 = vmul.f32 %v949, %v1003
      %v1006 = vmul.f32 %v950, %v1003
      %v1007 = vmul.f32 %v951, %v1003
      %v1008 = vmul.f32 %v952, %v1003
      %v1009 = vmul.f32 %v953, %v1003
      %v1010 = vmul.f32 %v954, %v1003
      %v1011 = vmul.f32 %v955, %v1003
      %v1012 = vadd.f32 %v992, %v1004
      %v1013 = vadd.f32 %v993, %v1005
      %v1014 = vadd.f32 %v994, %v1006
      %v1015 = vadd.f32 %v995, %v1007
      %v1016 = vadd.f32 %v996, %v1008
      %v1017 = vadd.f32 %v997, %v1009
      %v1018 = vadd.f32 %v998, %v1010
      %v1019 = vadd.f32 %v999, %v1011
      %v1020 = vrot.slane %v948, 1
      %v1021 = vrot.slane %v950, 1
      %v1022 = vrot.slane %v952, 1
      %v1023 = vrot.slane %v954, 1
      %v1024 = vrot.slane %v949, 1
      %v1025 = vrot.slane %v951, 1
      %v1026 = vrot.slane %v953, 1
      %v1027 = vrot.slane %v955, 1
      %v1028 = vsel %vm790, %v1020, %v1024
      %v1029 = vsel %vm790, %v1021, %v1025
      %v1030 = vsel %vm790, %v1022, %v1026
      %v1031 = vsel %vm790, %v1023, %v1027
      %v1032 = vsel %vm790, %v1024, %v1020
      %v1033 = vsel %vm790, %v1025, %v1021
      %v1034 = vsel %vm790, %v1026, %v1022
      %v1035 = vsel %vm790, %v1027, %v1023
      %v1036 = vsel %vm801, %v1028, 0.0
      %v1037 = vsel %vm802, %v1032, 0.0
      %v1038 = vsel %vm801, %v1029, 0.0
      %v1039 = vsel %vm802, %v1033, 0.0
      %v1040 = vsel %vm801, %v1030, 0.0
      %v1041 = vsel %vm802, %v1034, 0.0
      %v1042 = vsel %vm801, %v1031, 0.0
      %v1043 = vsel %vm802, %v1035, 0.0
      %v1044 = vlaneseq
      %v1045 = vshrl.u32 %v1044, 7
      %v1046 = vsub.s32 0, %v1045
      %v1047 = vrot.slane %v685, %v1046
      %v1048 = vmul.f32 %v1036, %v1047
      %v1049 = vmul.f32 %v1037, %v1047
      %v1050 = vmul.f32 %v1038, %v1047
      %v1051 = vmul.f32 %v1039, %v1047
      %v1052 = vmul.f32 %v1040, %v1047
      %v1053 = vmul.f32 %v1041, %v1047
      %v1054 = vmul.f32 %v1042, %v1047
      %v1055 = vmul.f32 %v1043, %v1047
      %v1056 = vadd.f32 %v1012, %v1048
      %v1057 = vadd.f32 %v1013, %v1049
      %v1058 = vadd.f32 %v1014, %v1050
      %v1059 = vadd.f32 %v1015, %v1051
      %v1060 = vadd.f32 %v1016, %v1052
      %v1061 = vadd.f32 %v1017, %v1053
      %v1062 = vadd.f32 %v1018, %v1054
      %v1063 = vadd.f32 %v1019, %v1055
      %v1064 = vpack.c.bf16 %v1057, %v1056
      %v1065 = vpack.c.bf16 %v1059, %v1058
      %v1066 = vpack.c.bf16 %v1061, %v1060
      %v1067 = vpack.c.bf16 %v1063, %v1062
      %v1072 = vunpack.c.l.b16 %v1064
      %v1073 = vunpack.c.h.b16 %v1064
      %v1074 = vunpack.c.l.b16 %v1065
      %v1075 = vunpack.c.h.b16 %v1065
      %v1076 = vunpack.c.l.b16 %v1066
      %v1077 = vunpack.c.h.b16 %v1066
      %v1078 = vunpack.c.l.b16 %v1067
      %v1079 = vunpack.c.h.b16 %v1067
      %v1080 = vpack.c.b16 %v1072, %v1072
      %v1081 = vpack.c.b16 %v1073, %v1073
      %v1082 = vpack.c.b16 %v1074, %v1074
      %v1083 = vpack.c.b16 %v1075, %v1075
      %v1084 = vpack.c.b16 %v1076, %v1076
      %v1085 = vpack.c.b16 %v1077, %v1077
      %v1086 = vpack.c.b16 %v1078, %v1078
      %v1087 = vpack.c.b16 %v1079, %v1079
      %vm1096 = vcmask 257024
      %1097 = vst.msk [vmem:[%s495] sm:$0xf] %vm1096, %v1080
      %1098 = vst.msk [vmem:[%s495 + $0x4] sm:$0xf] %vm1096, %v1081
      %1099 = vst.msk [vmem:[%s495 + $0x8] sm:$0xf] %vm1096, %v1082
      %1100 = vst.msk [vmem:[%s495 + $0xc] sm:$0xf] %vm1096, %v1083
      %1101 = vst.msk [vmem:[%s495 + $0x10] sm:$0xf] %vm1096, %v1084
      %1102 = vst.msk [vmem:[%s495 + $0x14] sm:$0xf] %vm1096, %v1085
      %1103 = vst.msk [vmem:[%s495 + $0x18] sm:$0xf] %vm1096, %v1086
      %1104 = vst.msk [vmem:[%s495 + $0x1c] sm:$0xf] %vm1096, %v1087
      %v1105 = vsel %vm669, %v1056, 0.0
      %v1106 = vsel %vm669, %v1057, 0.0
      %v1107 = vadd.f32 %v1105, %v1106
      %v1108 = vsel %vm669, %v1058, 0.0
      %v1109 = vadd.f32 %v1107, %v1108
      %v1110 = vsel %vm669, %v1059, 0.0
      %v1111 = vadd.f32 %v1109, %v1110
      %v1112 = vsel %vm669, %v1060, 0.0
      %v1113 = vadd.f32 %v1111, %v1112
      %v1114 = vsel %vm669, %v1061, 0.0
      %v1115 = vadd.f32 %v1113, %v1114
      %v1116 = vsel %vm669, %v1062, 0.0
      %v1117 = vadd.f32 %v1115, %v1116
      %v1118 = vsel %vm669, %v1063, 0.0
      %v1119 = vadd.f32 %v1117, %v1118
      %v1120 = vrot.slane %v1119, 4
      %v1121 = vadd.f32 %v1119, %v1120
      %v1122 = vrot.slane %v1121, 2
      %v1123 = vadd.f32 %v1121, %v1122
      %v1124 = vrot.slane %v1123, 1
      %v1125 = vadd.f32 %v1123, %v1124
      %v1126 = vmul.f32 %v1125, 0.015625
      %v1127 = vsub.f32 %v1056, %v1126
      %v1128 = vsub.f32 %v1057, %v1126
      %v1129 = vsub.f32 %v1058, %v1126
      %v1130 = vsub.f32 %v1059, %v1126
      %v1131 = vsub.f32 %v1060, %v1126
      %v1132 = vsub.f32 %v1061, %v1126
      %v1133 = vsub.f32 %v1062, %v1126
      %v1134 = vsub.f32 %v1063, %v1126
      %vm1135 = vcmask 253952
      %1136 = vst.msk [vmem:[%s501] sm:$0x1] %vm1135, %v1125
      %v1137 = vmul.f32 %v1127, %v1127
      %v1138 = vmul.f32 %v1128, %v1128
      %v1139 = vmul.f32 %v1129, %v1129
      %v1140 = vmul.f32 %v1130, %v1130
      %v1141 = vmul.f32 %v1131, %v1131
      %v1142 = vmul.f32 %v1132, %v1132
      %v1143 = vmul.f32 %v1133, %v1133
      %v1144 = vmul.f32 %v1134, %v1134
      %v1145 = vsel %vm669, %v1137, 0.0
      %v1146 = vsel %vm669, %v1138, 0.0
      %v1147 = vadd.f32 %v1145, %v1146
      %v1148 = vsel %vm669, %v1139, 0.0
      %v1149 = vadd.f32 %v1147, %v1148
      %v1150 = vsel %vm669, %v1140, 0.0
      %v1151 = vadd.f32 %v1149, %v1150
      %v1152 = vsel %vm669, %v1141, 0.0
      %v1153 = vadd.f32 %v1151, %v1152
      %v1154 = vsel %vm669, %v1142, 0.0
      %v1155 = vadd.f32 %v1153, %v1154
      %v1156 = vsel %vm669, %v1143, 0.0
      %v1157 = vadd.f32 %v1155, %v1156
      %v1158 = vsel %vm669, %v1144, 0.0
      %v1159 = vadd.f32 %v1157, %v1158
      %v1160 = vrot.slane %v1159, 4
      %v1161 = vadd.f32 %v1159, %v1160
      %v1162 = vrot.slane %v1161, 2
      %v1163 = vadd.f32 %v1161, %v1162
      %v1164 = vrot.slane %v1163, 1
      %v1165 = vadd.f32 %v1163, %v1164
      %1166 = vst.msk [vmem:[%s508] sm:$0x1] %vm1135, %v1165
      %s1167 = smul.u32 4, %s25
      %p1168 = scmp.lt.s32.totalorder %s24, 1
      %s1169 = scalar_select %p1168, %s24, 1
      %p1170 = scmp.lt.s32.totalorder %s1167, 15
      %s1171 = scalar_select %p1170, %s1167, 15
      %s1172 = smul.addr %s1171, 2
      %s1173 = smul.addr %s1169, 32
      %s1174 = sadd.s32 %s1172, %s1173
      %s1175 = smul.addr %s1174, 4
      %s1176 = scalar_lea.vmem %s6, %s1175
      %s1177 = smul.u32 %s24, 4
      %s1178 = sadd.s32 %s1177, %s25
      %p1179 = scmp.lt.s32.totalorder %s1178, 7
      %s1180 = scalar_select %p1179, %s1178, 7
      %s1181 = scalar_lea.vmem %s7, %s1180
      %s1182 = smul.u32 %s24, 4
      %s1183 = sadd.s32 %s1182, %s25
      %p1184 = scmp.lt.s32.totalorder %s1183, 7
      %s1185 = scalar_select %p1184, %s1183, 7
      %s1186 = scalar_lea.vmem %s8, %s1185
      // Predicated region
      $region45: #{inverted_residual_forward.6} parent=43 // pred_check
        %p1187 = pneg %p215
      $region46: #{inverted_residual_forward.6} parent=43 // pred_check_branch
        %1189 = sbr.rel (%p1187) target = $region48
      $region47: #{inverted_residual_forward.6} parent=43 // pred_region
        %s1190 = smul.u32 4, %s25
      $region48: #{inverted_residual_forward.6} parent=43 // pred_fallthru
        _
      // Predicated region
      $region49: #{inverted_residual_forward.6} parent=43 // pred_check
        %p1191 = pneg %p245
      $region50: #{inverted_residual_forward.6} parent=43 // pred_check_branch
        %1193 = sbr.rel (%p1191) target = $region52
      $region51: #{inverted_residual_forward.6} parent=43 // pred_region
        %s1194 = smul.u32 %s24, 4
        %s1195 = sadd.s32 %s1194, %s25
      $region52: #{inverted_residual_forward.6} parent=43 // pred_fallthru
        _
      // Predicated region
      $region53: #{inverted_residual_forward.6} parent=43 // pred_check
        %p1196 = pneg %p275
      $region54: #{inverted_residual_forward.6} parent=43 // pred_check_branch
        %1198 = sbr.rel (%p1196) target = $region56
      $region55: #{inverted_residual_forward.6} parent=43 // pred_region
        %s1199 = smul.u32 %s24, 4
        %s1200 = sadd.s32 %s1199, %s25
      $region56: #{inverted_residual_forward.6} parent=43 // pred_fallthru
        _
    $region44: #{inverted_residual_forward.6} parent=5 // pred_fallthru
      _
    %p1201 = scmp.le.s32.totalorder 2, %s15
    // Predicated region
    $region57: #{inverted_residual_forward.6} parent=5 // pred_check
      %p1202 = pneg %p1201
    $region58: #{inverted_residual_forward.6} parent=5 // pred_check_branch
      %1204 = sbr.rel (%p1202) target = $region60
    $region59: #{inverted_residual_forward.6} parent=5 // pred_region
      %s1205 = ssub.s32 %s15, 2
      // Predicated region
      $region61: #{inverted_residual_forward.6} parent=59 // pred_check
        %p1206 = pneg %p221
      $region62: #{inverted_residual_forward.6} parent=59 // pred_check_branch
        %1208 = sbr.rel (%p1206) target = $region64
      $region63: #{inverted_residual_forward.6} parent=59 // pred_region
        %s1209 = smul.u32 4, %s27
        %p1210 = scmp.lt.s32.totalorder %s26, 1
        %s1211 = scalar_select %p1210, %s26, 1
        %p1212 = scmp.lt.s32.totalorder %s1209, 15
        %s1213 = scalar_select %p1212, %s1209, 15
        %s1214 = smul.addr %s1213, 2
        %s1215 = smul.addr %s1211, 32
        %s1216 = sadd.s32 %s1214, %s1215
        %s1217 = smul.addr %s1216, 4
        %s1218 = scalar_lea.vmem %s6, %s1217
      $region64: #{inverted_residual_forward.6} parent=59 // pred_fallthru
        _
      // Predicated region
      $region65: #{inverted_residual_forward.6} parent=59 // pred_check
        %p1219 = pneg %p251
      $region66: #{inverted_residual_forward.6} parent=59 // pred_check_branch
        %1221 = sbr.rel (%p1219) target = $region68
      $region67: #{inverted_residual_forward.6} parent=59 // pred_region
        %s1222 = smul.u32 %s26, 4
        %s1223 = sadd.s32 %s1222, %s27
        %p1224 = scmp.lt.s32.totalorder %s1223, 7
        %s1225 = scalar_select %p1224, %s1223, 7
        %s1226 = scalar_lea.vmem %s7, %s1225
      $region68: #{inverted_residual_forward.6} parent=59 // pred_fallthru
        _
      // Predicated region
      $region69: #{inverted_residual_forward.6} parent=59 // pred_check
        %p1227 = pneg %p281
      $region70: #{inverted_residual_forward.6} parent=59 // pred_check_branch
        %1229 = sbr.rel (%p1227) target = $region72
      $region71: #{inverted_residual_forward.6} parent=59 // pred_region
        %s1230 = smul.u32 %s26, 4
        %s1231 = sadd.s32 %s1230, %s27
        %p1232 = scmp.lt.s32.totalorder %s1231, 7
        %s1233 = scalar_select %p1232, %s1231, 7
        %s1234 = scalar_lea.vmem %s8, %s1233
      $region72: #{inverted_residual_forward.6} parent=59 // pred_fallthru
        _
    $region60: #{inverted_residual_forward.6} parent=5 // pred_fallthru
      _
  $region6: #{inverted_residual_forward.6} parent=0 // loop_footer
    %s19 = sadd.s32 1, %s15
  $region7: #{inverted_residual_forward.6} parent=0 // loop_footer_branch
    %14 = sbr.rel target = $region3
  $region8: #{inverted_residual_forward.6} parent=0 // loop_exit
    _

</llo_original>
